<compile_context>
chip_gen: v6e
topology: v6e:2x2x1
jax: 0.10.0
libtpu: 0.0.40
codegen_flags: <defaults>
</compile_context>

<pallas_src>
import jax
import jax.numpy as jnp
from jax.experimental import pallas as pl
from jax.experimental.pallas import tpu as pltpu

# ----------------------- model / problem config -----------------------------
B = 2          # batch
S = 16         # input sequence length
L = 8          # projected ("p") sequence length
D = 32         # d_model
H = 4          # num_att_heads
DH = D // H    # d_head
FF = 64        # feed_forward_dim
EPS = 1e-5     # nn.LayerNorm default eps
SCALE = DH ** (-0.5)

BS = B * S
BL = B * L


# ------------------- packed-parameter slab layout ---------------------------
def _offsets(widths):
    segs, o = [], 0
    for w in widths:
        segs.append((o, o + w))
        o += w
    return segs, o

# weight slab (D rows):   [wk_p|wv_p|wq_u*s] | [wq_p*s] | [wk_u|wv_u] | wl | w1
(_WSEG, W_COLS) = _offsets([3 * D, D, 2 * D, D, FF])
(W_XKVQ, W_PQ, W_YKV, W_OUT, W_FF1) = _WSEG

# vector slab (1 row): biases + LayerNorm gammas/betas
(_VSEG, V_COLS) = _offsets([3 * D, D, 2 * D, D, FF, D, D, D, D, D, D, D])
(V_XKVQ, V_PQ, V_YKV, V_OUT, V_FF1, V_FF2,
 V_G_YP, V_B_YP, V_G_YX, V_B_YX, V_G_FF, V_B_FF) = _VSEG


# ------------------------------ kernel helpers ------------------------------
def _layer_norm(x, gamma, beta):
    # x: (N, D), gamma/beta: (1, D)
    mu = jnp.mean(x, axis=-1, keepdims=True)
    var = jnp.mean((x - mu) ** 2, axis=-1, keepdims=True)
    return (x - mu) * jax.lax.rsqrt(var + EPS) * gamma + beta


def _mha_heads(q, k, v, mask_row, ctx_ref, row0):
    """Multi-head attention for one batch element.

    q: (Tq, D) (scale already folded into the projection), k/v: (Tk, D),
    mask_row: (1, Tk) float {0,1}, 1. == masked key position.
    Writes per-head contexts into ctx_ref[row0:row0+Tq, :] at static lane
    offsets (no lane-dim concat)."""
    tq = q.shape[0]
    masked = mask_row > 0.5                        # hoisted out of head loop
    for h in range(H):                             # static unroll over heads
        c0, c1 = h * DH, (h + 1) * DH
        qh, kh, vh = q[:, c0:c1], k[:, c0:c1], v[:, c0:c1]
        # NT matmul: contract over d_head of both operands.
        s = jax.lax.dot_general(qh, kh, (((1,), (1,)), ((), ())),
                                preferred_element_type=jnp.float32)  # (Tq, Tk)
        s = jnp.where(masked, -10000.0, s)          # masked_fill_ semantics
        s = s - jnp.max(s, axis=-1, keepdims=True)
        e = jnp.exp(s)
        inv = pl.reciprocal(jnp.sum(e, axis=-1, keepdims=True), approx=True)
        ctx = jnp.dot(e, vh, preferred_element_type=jnp.float32) * inv
        ctx_ref[row0:row0 + tq, c0:c1] = ctx


# ---------------------------------- kernel ----------------------------------
def luna_kernel(x_ref, p_ref, imask_ref, pmask_ref, wslab_ref, vslab_ref,
                w2_ref, out_ref, yp_ref, yp_ctx, yx_ctx):
    x = x_ref[...]        # (B*S, D)
    p = p_ref[...]        # (B*L, D)
    im = imask_ref[...]   # (B, S) float {0,1}
    pm = pmask_ref[...]   # (B, L) float {0,1}

    # --- fused projections (batch-flattened) ---
    # x -> [K_pack | V_pack | Q_unpack(scaled)]
    xproj = (jnp.dot(x, wslab_ref[:, W_XKVQ[0]:W_XKVQ[1]],
                     preferred_element_type=jnp.float32)
             + vslab_ref[:, V_XKVQ[0]:V_XKVQ[1]])            # (B*S, 3D)
    kp = xproj[:, 0:D]
    vp = xproj[:, D:2 * D]
    qu = xproj[:, 2 * D:3 * D]
    # p -> Q_pack(scaled)
    qp = (jnp.dot(p, wslab_ref[:, W_PQ[0]:W_PQ[1]],
                  preferred_element_type=jnp.float32)
          + vslab_ref[:, V_PQ[0]:V_PQ[1]])                   # (B*L, D)

    # --- LUNA pack attention: query = p, key = value = inputs ---
    for b in range(B):
        _mha_heads(qp[b * L:(b + 1) * L],
                   kp[b * S:(b + 1) * S],
                   vp[b * S:(b + 1) * S],
                   im[b:b + 1, :], yp_ctx, b * L)

    yp_raw = yp_ctx[...]                                     # (B*L, D)

    # Yp -> [K_unpack | V_unpack] (fused, batch-flattened)
    ykv = (jnp.dot(yp_raw, wslab_ref[:, W_YKV[0]:W_YKV[1]],
                   preferred_element_type=jnp.float32)
           + vslab_ref[:, V_YKV[0]:V_YKV[1]])                # (B*L, 2D)
    ku = ykv[:, 0:D]
    vu = ykv[:, D:2 * D]

    # --- LUNA unpack attention: query = inputs, key = value = Yp ---
    for b in range(B):
        _mha_heads(qu[b * S:(b + 1) * S],
                   ku[b * L:(b + 1) * L],
                   vu[b * L:(b + 1) * L],
                   pm[b:b + 1, :], yx_ctx, b * S)

    # LUNA output linear on the flattened slab.
    yx = (jnp.dot(yx_ctx[...], wslab_ref[:, W_OUT[0]:W_OUT[1]],
                  preferred_element_type=jnp.float32)
          + vslab_ref[:, V_OUT[0]:V_OUT[1]])                 # (B*S, D)

    # --- residual + LayerNorms ---
    yp_out = _layer_norm(yp_raw + p,
                         vslab_ref[:, V_G_YP[0]:V_G_YP[1]],
                         vslab_ref[:, V_B_YP[0]:V_B_YP[1]])
    yx_n = _layer_norm(yx + x,
                       vslab_ref[:, V_G_YX[0]:V_G_YX[1]],
                       vslab_ref[:, V_B_YX[0]:V_B_YX[1]])

    # --- position-wise FFN (Linear -> ReLU -> Linear); dropout = identity ---
    h1 = jnp.maximum(
        jnp.dot(yx_n, wslab_ref[:, W_FF1[0]:W_FF1[1]],
                preferred_element_type=jnp.float32)
        + vslab_ref[:, V_FF1[0]:V_FF1[1]], 0.0)              # (B*S, FF)
    ffo = (jnp.dot(h1, w2_ref[...], preferred_element_type=jnp.float32)
           + vslab_ref[:, V_FF2[0]:V_FF2[1]])                # (B*S, D)
    out = _layer_norm(ffo + yx_n,
                      vslab_ref[:, V_G_FF[0]:V_G_FF[1]],
                      vslab_ref[:, V_B_FF[0]:V_B_FF[1]])

    out_ref[...] = out
    yp_ref[...] = yp_out


# --------------------------------- wrapper -----------------------------------
def _full_spec(shape):
    n = len(shape)
    return pl.BlockSpec(shape, lambda i, _n=n: (0,) * _n)


@jax.jit
def luna_encoder_layer(inputs, p, input_mask, p_mask, params):
    """inputs: (B,S,D) f32, p: (B,L,D) f32, masks: bool (B,S)/(B,L).
    Returns (outputs (B,S,D), Yp (B,L,D))."""
    (wq_p, bq_p, wk_p, bk_p, wv_p, bv_p,
     wq_u, bq_u, wk_u, bk_u, wv_u, bv_u,
     wl, bl, g_yp, be_yp, g_yx, be_yx, g_ff, be_ff,
     w1, b1, w2, b2) = params

    # Pack all parameters into 3 lane-contiguous inputs (3 DMAs instead of 24).
    # Attention scale is folded into the query projections.
    wslab = jnp.concatenate(
        [wk_p, wv_p, wq_u * SCALE, wq_p * SCALE, wk_u, wv_u, wl, w1], axis=1)
    vslab = jnp.concatenate(
        [bk_p, bv_p, bq_u * SCALE, bq_p * SCALE, bk_u, bv_u, bl, b1, b2,
         g_yp, be_yp, g_yx, be_yx, g_ff, be_ff], axis=1)

    x_flat = inputs.reshape(BS, D)
    p_flat = p.reshape(BL, D)
    imask = input_mask.astype(jnp.float32)   # (B, S), 1.0 == masked
    pmask = p_mask.astype(jnp.float32)       # (B, L)

    args = (x_flat, p_flat, imask, pmask, wslab, vslab, w2)

    out_flat, yp_flat = pl.pallas_call(
        luna_kernel,
        grid=(1,),   # single invocation: whole problem fits comfortably in VMEM
        in_specs=[_full_spec(a.shape) for a in args],
        out_specs=[_full_spec((BS, D)), _full_spec((BL, D))],
        out_shape=(jax.ShapeDtypeStruct((BS, D), jnp.float32),
                   jax.ShapeDtypeStruct((BL, D), jnp.float32)),
        scratch_shapes=[pltpu.VMEM((BL, D), jnp.float32),   # pack contexts
                        pltpu.VMEM((BS, D), jnp.float32)],  # unpack contexts
        compiler_params=pltpu.CompilerParams(
            dimension_semantics=("arbitrary",)),
    )(*args)
    return out_flat.reshape(B, S, D), yp_flat.reshape(B, L, D)


# --------------------------- pure-JAX reference ------------------------------
def _ln_ref(x, g, b):
    mu = jnp.mean(x, axis=-1, keepdims=True)
    var = jnp.mean((x - mu) ** 2, axis=-1, keepdims=True)
    return (x - mu) * jax.lax.rsqrt(var + EPS) * g + b


def _mha_ref(q_in, kv_in, wq, bq, wk, bk, wv, bv, mask):
    q = q_in @ wq + bq
    k = kv_in @ wk + bk
    v = kv_in @ wv + bv
    qh = q.reshape(B, -1, H, DH).transpose(0, 2, 1, 3)
    kh = k.reshape(B, -1, H, DH).transpose(0, 2, 1, 3)
    vh = v.reshape(B, -1, H, DH).transpose(0, 2, 1, 3)
    s = (qh * SCALE) @ kh.transpose(0, 1, 3, 2)
    if mask is not None:
        s = jnp.where(mask[:, None, None, :], -10000.0, s)
    p_attn = jax.nn.softmax(s, axis=-1)
    ctx = p_attn @ vh
    return ctx.transpose(0, 2, 1, 3).reshape(B, -1, D)


def luna_ref(inputs, p, input_mask, p_mask, params):
    (wq_p, bq_p, wk_p, bk_p, wv_p, bv_p,
     wq_u, bq_u, wk_u, bk_u, wv_u, bv_u,
     wl, bl, g_yp, be_yp, g_yx, be_yx, g_ff, be_ff,
     w1, b1, w2, b2) = params
    Yp = _mha_ref(p, inputs, wq_p, bq_p, wk_p, bk_p, wv_p, bv_p, input_mask)
    Yx = _mha_ref(inputs, Yp, wq_u, bq_u, wk_u, bk_u, wv_u, bv_u, p_mask)
    Yx = Yx @ wl + bl
    Yp = _ln_ref(Yp + p, g_yp, be_yp)
    Yx = _ln_ref(Yx + inputs, g_yx, be_yx)
    out = jnp.maximum(Yx @ w1 + b1, 0.0) @ w2 + b2
    out = _ln_ref(out + Yx, g_ff, be_ff)
    return out, Yp


# ----------------------------------- main ------------------------------------
def _make_params(key):
    ks = jax.random.split(key, 16)

    def rnd(k, shape, scale=0.1):
        return jax.random.normal(k, shape, jnp.float32) * scale

    # Weights stored pre-transposed as (in, out); y = x @ W + b (== nn.Linear).
    params = [
        rnd(ks[0], (D, D)), rnd(ks[1], (1, D)),    # pack  query proj
        rnd(ks[2], (D, D)), rnd(ks[3], (1, D)),    # pack  key   proj
        rnd(ks[4], (D, D)), rnd(ks[5], (1, D)),    # pack  value proj
        rnd(ks[6], (D, D)), rnd(ks[7], (1, D)),    # unpack query proj
        rnd(ks[8], (D, D)), rnd(ks[9], (1, D)),    # unpack key   proj
        rnd(ks[10], (D, D)), rnd(ks[11], (1, D)),  # unpack value proj
        rnd(ks[12], (D, D)), rnd(ks[13], (1, D)),  # LUNA output linear
        jnp.ones((1, D), jnp.float32), jnp.zeros((1, D), jnp.float32),   # Yp LN
        jnp.ones((1, D), jnp.float32), jnp.zeros((1, D), jnp.float32),   # Yx LN
        jnp.ones((1, D), jnp.float32), jnp.zeros((1, D), jnp.float32),   # FF LN
        rnd(ks[14], (D, FF)), jnp.zeros((1, FF), jnp.float32),           # FFN 1
        rnd(ks[15], (FF, D)), jnp.zeros((1, D), jnp.float32),            # FFN 2
    ]
    return params


if __name__ == "__main__":
    key = jax.random.PRNGKey(0)
    k_in, k_p, k_w = jax.random.split(key, 3)

    inputs = jax.random.normal(k_in, (B, S, D), jnp.float32)
    p = jax.random.normal(k_p, (B, L, D), jnp.float32)

    # Deterministic padding-style masks (True == masked position on key axis).
    input_mask = jnp.zeros((B, S), jnp.bool_).at[1, S - 3:].set(True)
    p_mask = jnp.zeros((B, L), jnp.bool_).at[0, L - 2:].set(True)

    params = _make_params(k_w)

    out, yp = luna_encoder_layer(inputs, p, input_mask, p_mask, params)
    out = jax.block_until_ready(out)
    yp = jax.block_until_ready(yp)

    out_ref, yp_ref = luna_ref(inputs, p, input_mask, p_mask, params)
    # Tolerance accounts for pl.reciprocal(approx=True) in the softmax path.
    assert jnp.allclose(out, out_ref, atol=2e-3, rtol=2e-3), "outputs mismatch"
    assert jnp.allclose(yp, yp_ref, atol=2e-3, rtol=2e-3), "Yp mismatch"

    print("KERNEL_OK")
</pallas_src>

<mosaic_0001>
module attributes {stable_mosaic.version = 11 : i64} {
  func.func @luna_kernel(%arg0: i32, %arg1: memref<32x32xf32, #tpu.memory_space<vmem>>, %arg2: memref<16x32xf32, #tpu.memory_space<vmem>>, %arg3: memref<2x16xf32, #tpu.memory_space<vmem>>, %arg4: memref<2x8xf32, #tpu.memory_space<vmem>>, %arg5: memref<32x288xf32, #tpu.memory_space<vmem>>, %arg6: memref<1x512xf32, #tpu.memory_space<vmem>>, %arg7: memref<64x32xf32, #tpu.memory_space<vmem>>, %arg8: memref<32x32xf32, #tpu.memory_space<vmem>>, %arg9: memref<16x32xf32, #tpu.memory_space<vmem>>, %arg10: memref<16x32xf32, #tpu.memory_space<vmem>>, %arg11: memref<32x32xf32, #tpu.memory_space<vmem>>) attributes {dimension_semantics = [#tpu.dimension_semantics<arbitrary>], iteration_bounds = array<i64: 1>, scalar_prefetch = 0 : i64, scratch_operands = 2 : i64, tpu.core_type = #tpu.core_type<tc>, window_params = [{pipeline_mode = #tpu.pipeline_mode<synchronous>, transform_indices = @transform_0, window_bounds = array<i64: 32, 32>}, {pipeline_mode = #tpu.pipeline_mode<synchronous>, transform_indices = @transform_1, window_bounds = array<i64: 16, 32>}, {pipeline_mode = #tpu.pipeline_mode<synchronous>, transform_indices = @transform_2, window_bounds = array<i64: 2, 16>}, {pipeline_mode = #tpu.pipeline_mode<synchronous>, transform_indices = @transform_3, window_bounds = array<i64: 2, 8>}, {pipeline_mode = #tpu.pipeline_mode<synchronous>, transform_indices = @transform_4, window_bounds = array<i64: 32, 288>}, {pipeline_mode = #tpu.pipeline_mode<synchronous>, transform_indices = @transform_5, window_bounds = array<i64: 1, 512>}, {pipeline_mode = #tpu.pipeline_mode<synchronous>, transform_indices = @transform_6, window_bounds = array<i64: 64, 32>}, {pipeline_mode = #tpu.pipeline_mode<synchronous>, transform_indices = @transform_7, window_bounds = array<i64: 32, 32>}, {pipeline_mode = #tpu.pipeline_mode<synchronous>, transform_indices = @transform_8, window_bounds = array<i64: 16, 32>}]} {
    %c0 = arith.constant 0 : index
    %c0_0 = arith.constant 0 : index
    %0 = vector.load %arg1[%c0, %c0_0] : memref<32x32xf32, #tpu.memory_space<vmem>>, vector<32x32xf32>
    %c0_1 = arith.constant 0 : index
    %c0_2 = arith.constant 0 : index
    %1 = vector.load %arg2[%c0_1, %c0_2] : memref<16x32xf32, #tpu.memory_space<vmem>>, vector<16x32xf32>
    %c0_3 = arith.constant 0 : index
    %c0_4 = arith.constant 0 : index
    %2 = vector.load %arg3[%c0_3, %c0_4] : memref<2x16xf32, #tpu.memory_space<vmem>>, vector<2x16xf32>
    %c0_5 = arith.constant 0 : index
    %c0_6 = arith.constant 0 : index
    %3 = vector.load %arg4[%c0_5, %c0_6] : memref<2x8xf32, #tpu.memory_space<vmem>>, vector<2x8xf32>
    %c0_7 = arith.constant 0 : index
    %c0_8 = arith.constant 0 : index
    %4 = vector.load %arg5[%c0_7, %c0_8] : memref<32x288xf32, #tpu.memory_space<vmem>>, vector<32x96xf32>
    %cst = arith.constant dense<0.000000e+00> : vector<32x96xf32>
    %5 = tpu.matmul %0, %4, %cst {dimension_numbers = #tpu.dot_dimension_numbers<[1], [0], [0], [1], [0, 0, 1, 1], [], []>} : vector<32x32xf32>, vector<32x96xf32>, vector<32x96xf32> -> vector<32x96xf32>
    %c0_9 = arith.constant 0 : index
    %c0_10 = arith.constant 0 : index
    %6 = vector.load %arg6[%c0_9, %c0_10] : memref<1x512xf32, #tpu.memory_space<vmem>>, vector<1x96xf32>
    %7 = vector.broadcast %6 : vector<1x96xf32> to vector<32x96xf32>
    %8 = arith.addf %5, %7 : vector<32x96xf32>
    %9 = vector.extract_strided_slice %8 {offsets = [0, 0], sizes = [32, 32], strides = [1, 1]} : vector<32x96xf32> to vector<32x32xf32>
    %10 = vector.extract_strided_slice %8 {offsets = [0, 32], sizes = [32, 32], strides = [1, 1]} : vector<32x96xf32> to vector<32x32xf32>
    %11 = vector.extract_strided_slice %8 {offsets = [0, 64], sizes = [32, 32], strides = [1, 1]} : vector<32x96xf32> to vector<32x32xf32>
    %c0_11 = arith.constant 0 : index
    %c96 = arith.constant 96 : index
    %12 = vector.load %arg5[%c0_11, %c96] : memref<32x288xf32, #tpu.memory_space<vmem>>, vector<32x32xf32>
    %cst_12 = arith.constant dense<0.000000e+00> : vector<16x32xf32>
    %13 = tpu.matmul %1, %12, %cst_12 {dimension_numbers = #tpu.dot_dimension_numbers<[1], [0], [0], [1], [0, 0, 1, 1], [], []>} : vector<16x32xf32>, vector<32x32xf32>, vector<16x32xf32> -> vector<16x32xf32>
    %c0_13 = arith.constant 0 : index
    %c96_14 = arith.constant 96 : index
    %14 = vector.load %arg6[%c0_13, %c96_14] : memref<1x512xf32, #tpu.memory_space<vmem>>, vector<1x32xf32>
    %15 = vector.broadcast %14 : vector<1x32xf32> to vector<16x32xf32>
    %16 = arith.addf %13, %15 : vector<16x32xf32>
    %17 = vector.extract_strided_slice %16 {offsets = [0, 0], sizes = [8, 32], strides = [1, 1]} : vector<16x32xf32> to vector<8x32xf32>
    %18 = vector.extract_strided_slice %9 {offsets = [0, 0], sizes = [16, 32], strides = [1, 1]} : vector<32x32xf32> to vector<16x32xf32>
    %19 = vector.extract_strided_slice %10 {offsets = [0, 0], sizes = [16, 32], strides = [1, 1]} : vector<32x32xf32> to vector<16x32xf32>
    %20 = vector.extract_strided_slice %2 {offsets = [0, 0], sizes = [1, 16], strides = [1, 1]} : vector<2x16xf32> to vector<1x16xf32>
    %cst_15 = arith.constant 5.000000e-01 : f32
    %21 = vector.broadcast %cst_15 : f32 to vector<1x16xf32>
    %22 = arith.cmpf ogt, %20, %21 : vector<1x16xf32>
    %23 = vector.extract_strided_slice %17 {offsets = [0, 0], sizes = [8, 8], strides = [1, 1]} : vector<8x32xf32> to vector<8x8xf32>
    %24 = vector.extract_strided_slice %18 {offsets = [0, 0], sizes = [16, 8], strides = [1, 1]} : vector<16x32xf32> to vector<16x8xf32>
    %25 = vector.extract_strided_slice %19 {offsets = [0, 0], sizes = [16, 8], strides = [1, 1]} : vector<16x32xf32> to vector<16x8xf32>
    %cst_16 = arith.constant dense<0.000000e+00> : vector<8x16xf32>
    %26 = tpu.matmul %23, %24, %cst_16 {dimension_numbers = #tpu.dot_dimension_numbers<[1], [1], [0], [0], [0, 0, 1, 0], [], []>} : vector<8x8xf32>, vector<16x8xf32>, vector<8x16xf32> -> vector<8x16xf32>
    %cst_17 = arith.constant -1.000000e+04 : f32
    %27 = vector.shape_cast %22 : vector<1x16xi1> to vector<1x16xi1>
    %28 = vector.broadcast %27 : vector<1x16xi1> to vector<8x16xi1>
    %29 = vector.broadcast %cst_17 : f32 to vector<8x16xf32>
    %30 = arith.select %28, %29, %26 : vector<8x16xi1>, vector<8x16xf32>
    %cst_18 = arith.constant dense<0xFF800000> : vector<8xf32>
    %31 = vector.multi_reduction <maximumf>, %30, %cst_18 [1] : vector<8x16xf32> to vector<8xf32>
    %32 = vector.shape_cast %31 : vector<8xf32> to vector<8x1xf32>
    %33 = vector.broadcast %32 : vector<8x1xf32> to vector<8x16xf32>
    %34 = arith.subf %30, %33 : vector<8x16xf32>
    %35 = math.exp %34 : vector<8x16xf32>
    %cst_19 = arith.constant dense<0.000000e+00> : vector<8xf32>
    %36 = vector.multi_reduction <add>, %35, %cst_19 [1] : vector<8x16xf32> to vector<8xf32>
    %37 = vector.shape_cast %36 : vector<8xf32> to vector<8x1xf32>
    %38 = tpu.reciprocal %37 {approx = true} : vector<8x1xf32> -> vector<8x1xf32>
    %cst_20 = arith.constant dense<0.000000e+00> : vector<8x8xf32>
    %39 = tpu.matmul %35, %25, %cst_20 {dimension_numbers = #tpu.dot_dimension_numbers<[1], [0], [0], [1], [0, 0, 1, 1], [], []>} : vector<8x16xf32>, vector<16x8xf32>, vector<8x8xf32> -> vector<8x8xf32>
    %40 = vector.broadcast %38 : vector<8x1xf32> to vector<8x8xf32>
    %41 = arith.mulf %39, %40 : vector<8x8xf32>
    %c0_21 = arith.constant 0 : index
    %c0_22 = arith.constant 0 : index
    %42 = vector.load %arg10[%c0_21, %c0_22] : memref<16x32xf32, #tpu.memory_space<vmem>>, vector<8x8xf32>
    tpu.vector_store %arg10[%c0_21, %c0_22], %41 {strides = array<i32>} : memref<16x32xf32, #tpu.memory_space<vmem>>, vector<8x8xf32>,
    %43 = vector.extract_strided_slice %17 {offsets = [0, 8], sizes = [8, 8], strides = [1, 1]} : vector<8x32xf32> to vector<8x8xf32>
    %44 = vector.extract_strided_slice %18 {offsets = [0, 8], sizes = [16, 8], strides = [1, 1]} : vector<16x32xf32> to vector<16x8xf32>
    %45 = vector.extract_strided_slice %19 {offsets = [0, 8], sizes = [16, 8], strides = [1, 1]} : vector<16x32xf32> to vector<16x8xf32>
    %cst_23 = arith.constant dense<0.000000e+00> : vector<8x16xf32>
    %46 = tpu.matmul %43, %44, %cst_23 {dimension_numbers = #tpu.dot_dimension_numbers<[1], [1], [0], [0], [0, 0, 1, 0], [], []>} : vector<8x8xf32>, vector<16x8xf32>, vector<8x16xf32> -> vector<8x16xf32>
    %cst_24 = arith.constant -1.000000e+04 : f32
    %47 = vector.shape_cast %22 : vector<1x16xi1> to vector<1x16xi1>
    %48 = vector.broadcast %47 : vector<1x16xi1> to vector<8x16xi1>
    %49 = vector.broadcast %cst_24 : f32 to vector<8x16xf32>
    %50 = arith.select %48, %49, %46 : vector<8x16xi1>, vector<8x16xf32>
    %cst_25 = arith.constant dense<0xFF800000> : vector<8xf32>
    %51 = vector.multi_reduction <maximumf>, %50, %cst_25 [1] : vector<8x16xf32> to vector<8xf32>
    %52 = vector.shape_cast %51 : vector<8xf32> to vector<8x1xf32>
    %53 = vector.broadcast %52 : vector<8x1xf32> to vector<8x16xf32>
    %54 = arith.subf %50, %53 : vector<8x16xf32>
    %55 = math.exp %54 : vector<8x16xf32>
    %cst_26 = arith.constant dense<0.000000e+00> : vector<8xf32>
    %56 = vector.multi_reduction <add>, %55, %cst_26 [1] : vector<8x16xf32> to vector<8xf32>
    %57 = vector.shape_cast %56 : vector<8xf32> to vector<8x1xf32>
    %58 = tpu.reciprocal %57 {approx = true} : vector<8x1xf32> -> vector<8x1xf32>
    %cst_27 = arith.constant dense<0.000000e+00> : vector<8x8xf32>
    %59 = tpu.matmul %55, %45, %cst_27 {dimension_numbers = #tpu.dot_dimension_numbers<[1], [0], [0], [1], [0, 0, 1, 1], [], []>} : vector<8x16xf32>, vector<16x8xf32>, vector<8x8xf32> -> vector<8x8xf32>
    %60 = vector.broadcast %58 : vector<8x1xf32> to vector<8x8xf32>
    %61 = arith.mulf %59, %60 : vector<8x8xf32>
    %c0_28 = arith.constant 0 : index
    %c8 = arith.constant 8 : index
    %62 = vector.load %arg10[%c0_28, %c8] : memref<16x32xf32, #tpu.memory_space<vmem>>, vector<8x8xf32>
    tpu.vector_store %arg10[%c0_28, %c8], %61 {strides = array<i32>} : memref<16x32xf32, #tpu.memory_space<vmem>>, vector<8x8xf32>,
    %63 = vector.extract_strided_slice %17 {offsets = [0, 16], sizes = [8, 8], strides = [1, 1]} : vector<8x32xf32> to vector<8x8xf32>
    %64 = vector.extract_strided_slice %18 {offsets = [0, 16], sizes = [16, 8], strides = [1, 1]} : vector<16x32xf32> to vector<16x8xf32>
    %65 = vector.extract_strided_slice %19 {offsets = [0, 16], sizes = [16, 8], strides = [1, 1]} : vector<16x32xf32> to vector<16x8xf32>
    %cst_29 = arith.constant dense<0.000000e+00> : vector<8x16xf32>
    %66 = tpu.matmul %63, %64, %cst_29 {dimension_numbers = #tpu.dot_dimension_numbers<[1], [1], [0], [0], [0, 0, 1, 0], [], []>} : vector<8x8xf32>, vector<16x8xf32>, vector<8x16xf32> -> vector<8x16xf32>
    %cst_30 = arith.constant -1.000000e+04 : f32
    %67 = vector.shape_cast %22 : vector<1x16xi1> to vector<1x16xi1>
    %68 = vector.broadcast %67 : vector<1x16xi1> to vector<8x16xi1>
    %69 = vector.broadcast %cst_30 : f32 to vector<8x16xf32>
    %70 = arith.select %68, %69, %66 : vector<8x16xi1>, vector<8x16xf32>
    %cst_31 = arith.constant dense<0xFF800000> : vector<8xf32>
    %71 = vector.multi_reduction <maximumf>, %70, %cst_31 [1] : vector<8x16xf32> to vector<8xf32>
    %72 = vector.shape_cast %71 : vector<8xf32> to vector<8x1xf32>
    %73 = vector.broadcast %72 : vector<8x1xf32> to vector<8x16xf32>
    %74 = arith.subf %70, %73 : vector<8x16xf32>
    %75 = math.exp %74 : vector<8x16xf32>
    %cst_32 = arith.constant dense<0.000000e+00> : vector<8xf32>
    %76 = vector.multi_reduction <add>, %75, %cst_32 [1] : vector<8x16xf32> to vector<8xf32>
    %77 = vector.shape_cast %76 : vector<8xf32> to vector<8x1xf32>
    %78 = tpu.reciprocal %77 {approx = true} : vector<8x1xf32> -> vector<8x1xf32>
    %cst_33 = arith.constant dense<0.000000e+00> : vector<8x8xf32>
    %79 = tpu.matmul %75, %65, %cst_33 {dimension_numbers = #tpu.dot_dimension_numbers<[1], [0], [0], [1], [0, 0, 1, 1], [], []>} : vector<8x16xf32>, vector<16x8xf32>, vector<8x8xf32> -> vector<8x8xf32>
    %80 = vector.broadcast %78 : vector<8x1xf32> to vector<8x8xf32>
    %81 = arith.mulf %79, %80 : vector<8x8xf32>
    %c0_34 = arith.constant 0 : index
    %c16 = arith.constant 16 : index
    %82 = vector.load %arg10[%c0_34, %c16] : memref<16x32xf32, #tpu.memory_space<vmem>>, vector<8x8xf32>
    tpu.vector_store %arg10[%c0_34, %c16], %81 {strides = array<i32>} : memref<16x32xf32, #tpu.memory_space<vmem>>, vector<8x8xf32>,
    %83 = vector.extract_strided_slice %17 {offsets = [0, 24], sizes = [8, 8], strides = [1, 1]} : vector<8x32xf32> to vector<8x8xf32>
    %84 = vector.extract_strided_slice %18 {offsets = [0, 24], sizes = [16, 8], strides = [1, 1]} : vector<16x32xf32> to vector<16x8xf32>
    %85 = vector.extract_strided_slice %19 {offsets = [0, 24], sizes = [16, 8], strides = [1, 1]} : vector<16x32xf32> to vector<16x8xf32>
    %cst_35 = arith.constant dense<0.000000e+00> : vector<8x16xf32>
    %86 = tpu.matmul %83, %84, %cst_35 {dimension_numbers = #tpu.dot_dimension_numbers<[1], [1], [0], [0], [0, 0, 1, 0], [], []>} : vector<8x8xf32>, vector<16x8xf32>, vector<8x16xf32> -> vector<8x16xf32>
    %cst_36 = arith.constant -1.000000e+04 : f32
    %87 = vector.shape_cast %22 : vector<1x16xi1> to vector<1x16xi1>
    %88 = vector.broadcast %87 : vector<1x16xi1> to vector<8x16xi1>
    %89 = vector.broadcast %cst_36 : f32 to vector<8x16xf32>
    %90 = arith.select %88, %89, %86 : vector<8x16xi1>, vector<8x16xf32>
    %cst_37 = arith.constant dense<0xFF800000> : vector<8xf32>
    %91 = vector.multi_reduction <maximumf>, %90, %cst_37 [1] : vector<8x16xf32> to vector<8xf32>
    %92 = vector.shape_cast %91 : vector<8xf32> to vector<8x1xf32>
    %93 = vector.broadcast %92 : vector<8x1xf32> to vector<8x16xf32>
    %94 = arith.subf %90, %93 : vector<8x16xf32>
    %95 = math.exp %94 : vector<8x16xf32>
    %cst_38 = arith.constant dense<0.000000e+00> : vector<8xf32>
    %96 = vector.multi_reduction <add>, %95, %cst_38 [1] : vector<8x16xf32> to vector<8xf32>
    %97 = vector.shape_cast %96 : vector<8xf32> to vector<8x1xf32>
    %98 = tpu.reciprocal %97 {approx = true} : vector<8x1xf32> -> vector<8x1xf32>
    %cst_39 = arith.constant dense<0.000000e+00> : vector<8x8xf32>
    %99 = tpu.matmul %95, %85, %cst_39 {dimension_numbers = #tpu.dot_dimension_numbers<[1], [0], [0], [1], [0, 0, 1, 1], [], []>} : vector<8x16xf32>, vector<16x8xf32>, vector<8x8xf32> -> vector<8x8xf32>
    %100 = vector.broadcast %98 : vector<8x1xf32> to vector<8x8xf32>
    %101 = arith.mulf %99, %100 : vector<8x8xf32>
    %c0_40 = arith.constant 0 : index
    %c24 = arith.constant 24 : index
    %102 = vector.load %arg10[%c0_40, %c24] : memref<16x32xf32, #tpu.memory_space<vmem>>, vector<8x8xf32>
    tpu.vector_store %arg10[%c0_40, %c24], %101 {strides = array<i32>} : memref<16x32xf32, #tpu.memory_space<vmem>>, vector<8x8xf32>,
    %103 = vector.extract_strided_slice %16 {offsets = [8, 0], sizes = [8, 32], strides = [1, 1]} : vector<16x32xf32> to vector<8x32xf32>
    %104 = vector.extract_strided_slice %9 {offsets = [16, 0], sizes = [16, 32], strides = [1, 1]} : vector<32x32xf32> to vector<16x32xf32>
    %105 = vector.extract_strided_slice %10 {offsets = [16, 0], sizes = [16, 32], strides = [1, 1]} : vector<32x32xf32> to vector<16x32xf32>
    %106 = vector.extract_strided_slice %2 {offsets = [1, 0], sizes = [1, 16], strides = [1, 1]} : vector<2x16xf32> to vector<1x16xf32>
    %cst_41 = arith.constant 5.000000e-01 : f32
    %107 = vector.broadcast %cst_41 : f32 to vector<1x16xf32>
    %108 = arith.cmpf ogt, %106, %107 : vector<1x16xf32>
    %109 = vector.extract_strided_slice %103 {offsets = [0, 0], sizes = [8, 8], strides = [1, 1]} : vector<8x32xf32> to vector<8x8xf32>
    %110 = vector.extract_strided_slice %104 {offsets = [0, 0], sizes = [16, 8], strides = [1, 1]} : vector<16x32xf32> to vector<16x8xf32>
    %111 = vector.extract_strided_slice %105 {offsets = [0, 0], sizes = [16, 8], strides = [1, 1]} : vector<16x32xf32> to vector<16x8xf32>
    %cst_42 = arith.constant dense<0.000000e+00> : vector<8x16xf32>
    %112 = tpu.matmul %109, %110, %cst_42 {dimension_numbers = #tpu.dot_dimension_numbers<[1], [1], [0], [0], [0, 0, 1, 0], [], []>} : vector<8x8xf32>, vector<16x8xf32>, vector<8x16xf32> -> vector<8x16xf32>
    %cst_43 = arith.constant -1.000000e+04 : f32
    %113 = vector.shape_cast %108 : vector<1x16xi1> to vector<1x16xi1>
    %114 = vector.broadcast %113 : vector<1x16xi1> to vector<8x16xi1>
    %115 = vector.broadcast %cst_43 : f32 to vector<8x16xf32>
    %116 = arith.select %114, %115, %112 : vector<8x16xi1>, vector<8x16xf32>
    %cst_44 = arith.constant dense<0xFF800000> : vector<8xf32>
    %117 = vector.multi_reduction <maximumf>, %116, %cst_44 [1] : vector<8x16xf32> to vector<8xf32>
    %118 = vector.shape_cast %117 : vector<8xf32> to vector<8x1xf32>
    %119 = vector.broadcast %118 : vector<8x1xf32> to vector<8x16xf32>
    %120 = arith.subf %116, %119 : vector<8x16xf32>
    %121 = math.exp %120 : vector<8x16xf32>
    %cst_45 = arith.constant dense<0.000000e+00> : vector<8xf32>
    %122 = vector.multi_reduction <add>, %121, %cst_45 [1] : vector<8x16xf32> to vector<8xf32>
    %123 = vector.shape_cast %122 : vector<8xf32> to vector<8x1xf32>
    %124 = tpu.reciprocal %123 {approx = true} : vector<8x1xf32> -> vector<8x1xf32>
    %cst_46 = arith.constant dense<0.000000e+00> : vector<8x8xf32>
    %125 = tpu.matmul %121, %111, %cst_46 {dimension_numbers = #tpu.dot_dimension_numbers<[1], [0], [0], [1], [0, 0, 1, 1], [], []>} : vector<8x16xf32>, vector<16x8xf32>, vector<8x8xf32> -> vector<8x8xf32>
    %126 = vector.broadcast %124 : vector<8x1xf32> to vector<8x8xf32>
    %127 = arith.mulf %125, %126 : vector<8x8xf32>
    %c8_47 = arith.constant 8 : index
    %c0_48 = arith.constant 0 : index
    %128 = vector.load %arg10[%c8_47, %c0_48] : memref<16x32xf32, #tpu.memory_space<vmem>>, vector<8x8xf32>
    tpu.vector_store %arg10[%c8_47, %c0_48], %127 {strides = array<i32>} : memref<16x32xf32, #tpu.memory_space<vmem>>, vector<8x8xf32>,
    %129 = vector.extract_strided_slice %103 {offsets = [0, 8], sizes = [8, 8], strides = [1, 1]} : vector<8x32xf32> to vector<8x8xf32>
    %130 = vector.extract_strided_slice %104 {offsets = [0, 8], sizes = [16, 8], strides = [1, 1]} : vector<16x32xf32> to vector<16x8xf32>
    %131 = vector.extract_strided_slice %105 {offsets = [0, 8], sizes = [16, 8], strides = [1, 1]} : vector<16x32xf32> to vector<16x8xf32>
    %cst_49 = arith.constant dense<0.000000e+00> : vector<8x16xf32>
    %132 = tpu.matmul %129, %130, %cst_49 {dimension_numbers = #tpu.dot_dimension_numbers<[1], [1], [0], [0], [0, 0, 1, 0], [], []>} : vector<8x8xf32>, vector<16x8xf32>, vector<8x16xf32> -> vector<8x16xf32>
    %cst_50 = arith.constant -1.000000e+04 : f32
    %133 = vector.shape_cast %108 : vector<1x16xi1> to vector<1x16xi1>
    %134 = vector.broadcast %133 : vector<1x16xi1> to vector<8x16xi1>
    %135 = vector.broadcast %cst_50 : f32 to vector<8x16xf32>
    %136 = arith.select %134, %135, %132 : vector<8x16xi1>, vector<8x16xf32>
    %cst_51 = arith.constant dense<0xFF800000> : vector<8xf32>
    %137 = vector.multi_reduction <maximumf>, %136, %cst_51 [1] : vector<8x16xf32> to vector<8xf32>
    %138 = vector.shape_cast %137 : vector<8xf32> to vector<8x1xf32>
    %139 = vector.broadcast %138 : vector<8x1xf32> to vector<8x16xf32>
    %140 = arith.subf %136, %139 : vector<8x16xf32>
    %141 = math.exp %140 : vector<8x16xf32>
    %cst_52 = arith.constant dense<0.000000e+00> : vector<8xf32>
    %142 = vector.multi_reduction <add>, %141, %cst_52 [1] : vector<8x16xf32> to vector<8xf32>
    %143 = vector.shape_cast %142 : vector<8xf32> to vector<8x1xf32>
    %144 = tpu.reciprocal %143 {approx = true} : vector<8x1xf32> -> vector<8x1xf32>
    %cst_53 = arith.constant dense<0.000000e+00> : vector<8x8xf32>
    %145 = tpu.matmul %141, %131, %cst_53 {dimension_numbers = #tpu.dot_dimension_numbers<[1], [0], [0], [1], [0, 0, 1, 1], [], []>} : vector<8x16xf32>, vector<16x8xf32>, vector<8x8xf32> -> vector<8x8xf32>
    %146 = vector.broadcast %144 : vector<8x1xf32> to vector<8x8xf32>
    %147 = arith.mulf %145, %146 : vector<8x8xf32>
    %c8_54 = arith.constant 8 : index
    %c8_55 = arith.constant 8 : index
    %148 = vector.load %arg10[%c8_54, %c8_55] : memref<16x32xf32, #tpu.memory_space<vmem>>, vector<8x8xf32>
    tpu.vector_store %arg10[%c8_54, %c8_55], %147 {strides = array<i32>} : memref<16x32xf32, #tpu.memory_space<vmem>>, vector<8x8xf32>,
    %149 = vector.extract_strided_slice %103 {offsets = [0, 16], sizes = [8, 8], strides = [1, 1]} : vector<8x32xf32> to vector<8x8xf32>
    %150 = vector.extract_strided_slice %104 {offsets = [0, 16], sizes = [16, 8], strides = [1, 1]} : vector<16x32xf32> to vector<16x8xf32>
    %151 = vector.extract_strided_slice %105 {offsets = [0, 16], sizes = [16, 8], strides = [1, 1]} : vector<16x32xf32> to vector<16x8xf32>
    %cst_56 = arith.constant dense<0.000000e+00> : vector<8x16xf32>
    %152 = tpu.matmul %149, %150, %cst_56 {dimension_numbers = #tpu.dot_dimension_numbers<[1], [1], [0], [0], [0, 0, 1, 0], [], []>} : vector<8x8xf32>, vector<16x8xf32>, vector<8x16xf32> -> vector<8x16xf32>
    %cst_57 = arith.constant -1.000000e+04 : f32
    %153 = vector.shape_cast %108 : vector<1x16xi1> to vector<1x16xi1>
    %154 = vector.broadcast %153 : vector<1x16xi1> to vector<8x16xi1>
    %155 = vector.broadcast %cst_57 : f32 to vector<8x16xf32>
    %156 = arith.select %154, %155, %152 : vector<8x16xi1>, vector<8x16xf32>
    %cst_58 = arith.constant dense<0xFF800000> : vector<8xf32>
    %157 = vector.multi_reduction <maximumf>, %156, %cst_58 [1] : vector<8x16xf32> to vector<8xf32>
    %158 = vector.shape_cast %157 : vector<8xf32> to vector<8x1xf32>
    %159 = vector.broadcast %158 : vector<8x1xf32> to vector<8x16xf32>
    %160 = arith.subf %156, %159 : vector<8x16xf32>
    %161 = math.exp %160 : vector<8x16xf32>
    %cst_59 = arith.constant dense<0.000000e+00> : vector<8xf32>
    %162 = vector.multi_reduction <add>, %161, %cst_59 [1] : vector<8x16xf32> to vector<8xf32>
    %163 = vector.shape_cast %162 : vector<8xf32> to vector<8x1xf32>
    %164 = tpu.reciprocal %163 {approx = true} : vector<8x1xf32> -> vector<8x1xf32>
    %cst_60 = arith.constant dense<0.000000e+00> : vector<8x8xf32>
    %165 = tpu.matmul %161, %151, %cst_60 {dimension_numbers = #tpu.dot_dimension_numbers<[1], [0], [0], [1], [0, 0, 1, 1], [], []>} : vector<8x16xf32>, vector<16x8xf32>, vector<8x8xf32> -> vector<8x8xf32>
    %166 = vector.broadcast %164 : vector<8x1xf32> to vector<8x8xf32>
    %167 = arith.mulf %165, %166 : vector<8x8xf32>
    %c8_61 = arith.constant 8 : index
    %c16_62 = arith.constant 16 : index
    %168 = vector.load %arg10[%c8_61, %c16_62] : memref<16x32xf32, #tpu.memory_space<vmem>>, vector<8x8xf32>
    tpu.vector_store %arg10[%c8_61, %c16_62], %167 {strides = array<i32>} : memref<16x32xf32, #tpu.memory_space<vmem>>, vector<8x8xf32>,
    %169 = vector.extract_strided_slice %103 {offsets = [0, 24], sizes = [8, 8], strides = [1, 1]} : vector<8x32xf32> to vector<8x8xf32>
    %170 = vector.extract_strided_slice %104 {offsets = [0, 24], sizes = [16, 8], strides = [1, 1]} : vector<16x32xf32> to vector<16x8xf32>
    %171 = vector.extract_strided_slice %105 {offsets = [0, 24], sizes = [16, 8], strides = [1, 1]} : vector<16x32xf32> to vector<16x8xf32>
    %cst_63 = arith.constant dense<0.000000e+00> : vector<8x16xf32>
    %172 = tpu.matmul %169, %170, %cst_63 {dimension_numbers = #tpu.dot_dimension_numbers<[1], [1], [0], [0], [0, 0, 1, 0], [], []>} : vector<8x8xf32>, vector<16x8xf32>, vector<8x16xf32> -> vector<8x16xf32>
    %cst_64 = arith.constant -1.000000e+04 : f32
    %173 = vector.shape_cast %108 : vector<1x16xi1> to vector<1x16xi1>
    %174 = vector.broadcast %173 : vector<1x16xi1> to vector<8x16xi1>
    %175 = vector.broadcast %cst_64 : f32 to vector<8x16xf32>
    %176 = arith.select %174, %175, %172 : vector<8x16xi1>, vector<8x16xf32>
    %cst_65 = arith.constant dense<0xFF800000> : vector<8xf32>
    %177 = vector.multi_reduction <maximumf>, %176, %cst_65 [1] : vector<8x16xf32> to vector<8xf32>
    %178 = vector.shape_cast %177 : vector<8xf32> to vector<8x1xf32>
    %179 = vector.broadcast %178 : vector<8x1xf32> to vector<8x16xf32>
    %180 = arith.subf %176, %179 : vector<8x16xf32>
    %181 = math.exp %180 : vector<8x16xf32>
    %cst_66 = arith.constant dense<0.000000e+00> : vector<8xf32>
    %182 = vector.multi_reduction <add>, %181, %cst_66 [1] : vector<8x16xf32> to vector<8xf32>
    %183 = vector.shape_cast %182 : vector<8xf32> to vector<8x1xf32>
    %184 = tpu.reciprocal %183 {approx = true} : vector<8x1xf32> -> vector<8x1xf32>
    %cst_67 = arith.constant dense<0.000000e+00> : vector<8x8xf32>
    %185 = tpu.matmul %181, %171, %cst_67 {dimension_numbers = #tpu.dot_dimension_numbers<[1], [0], [0], [1], [0, 0, 1, 1], [], []>} : vector<8x16xf32>, vector<16x8xf32>, vector<8x8xf32> -> vector<8x8xf32>
    %186 = vector.broadcast %184 : vector<8x1xf32> to vector<8x8xf32>
    %187 = arith.mulf %185, %186 : vector<8x8xf32>
    %c8_68 = arith.constant 8 : index
    %c24_69 = arith.constant 24 : index
    %188 = vector.load %arg10[%c8_68, %c24_69] : memref<16x32xf32, #tpu.memory_space<vmem>>, vector<8x8xf32>
    tpu.vector_store %arg10[%c8_68, %c24_69], %187 {strides = array<i32>} : memref<16x32xf32, #tpu.memory_space<vmem>>, vector<8x8xf32>,
    %c0_70 = arith.constant 0 : index
    %c0_71 = arith.constant 0 : index
    %189 = vector.load %arg10[%c0_70, %c0_71] : memref<16x32xf32, #tpu.memory_space<vmem>>, vector<16x32xf32>
    %c0_72 = arith.constant 0 : index
    %c128 = arith.constant 128 : index
    %190 = vector.load %arg5[%c0_72, %c128] : memref<32x288xf32, #tpu.memory_space<vmem>>, vector<32x64xf32>
    %cst_73 = arith.constant dense<0.000000e+00> : vector<16x64xf32>
    %191 = tpu.matmul %189, %190, %cst_73 {dimension_numbers = #tpu.dot_dimension_numbers<[1], [0], [0], [1], [0, 0, 1, 1], [], []>} : vector<16x32xf32>, vector<32x64xf32>, vector<16x64xf32> -> vector<16x64xf32>
    %c0_74 = arith.constant 0 : index
    %c128_75 = arith.constant 128 : index
    %192 = vector.load %arg6[%c0_74, %c128_75] : memref<1x512xf32, #tpu.memory_space<vmem>>, vector<1x64xf32>
    %193 = vector.broadcast %192 : vector<1x64xf32> to vector<16x64xf32>
    %194 = arith.addf %191, %193 : vector<16x64xf32>
    %195 = vector.extract_strided_slice %194 {offsets = [0, 0], sizes = [16, 32], strides = [1, 1]} : vector<16x64xf32> to vector<16x32xf32>
    %196 = vector.extract_strided_slice %194 {offsets = [0, 32], sizes = [16, 32], strides = [1, 1]} : vector<16x64xf32> to vector<16x32xf32>
    %197 = vector.extract_strided_slice %11 {offsets = [0, 0], sizes = [16, 32], strides = [1, 1]} : vector<32x32xf32> to vector<16x32xf32>
    %198 = vector.extract_strided_slice %195 {offsets = [0, 0], sizes = [8, 32], strides = [1, 1]} : vector<16x32xf32> to vector<8x32xf32>
    %199 = vector.extract_strided_slice %196 {offsets = [0, 0], sizes = [8, 32], strides = [1, 1]} : vector<16x32xf32> to vector<8x32xf32>
    %200 = vector.extract_strided_slice %3 {offsets = [0, 0], sizes = [1, 8], strides = [1, 1]} : vector<2x8xf32> to vector<1x8xf32>
    %cst_76 = arith.constant 5.000000e-01 : f32
    %201 = vector.broadcast %cst_76 : f32 to vector<1x8xf32>
    %202 = arith.cmpf ogt, %200, %201 : vector<1x8xf32>
    %203 = vector.extract_strided_slice %197 {offsets = [0, 0], sizes = [16, 8], strides = [1, 1]} : vector<16x32xf32> to vector<16x8xf32>
    %204 = vector.extract_strided_slice %198 {offsets = [0, 0], sizes = [8, 8], strides = [1, 1]} : vector<8x32xf32> to vector<8x8xf32>
    %205 = vector.extract_strided_slice %199 {offsets = [0, 0], sizes = [8, 8], strides = [1, 1]} : vector<8x32xf32> to vector<8x8xf32>
    %cst_77 = arith.constant dense<0.000000e+00> : vector<16x8xf32>
    %206 = tpu.matmul %203, %204, %cst_77 {dimension_numbers = #tpu.dot_dimension_numbers<[1], [1], [0], [0], [0, 0, 1, 0], [], []>} : vector<16x8xf32>, vector<8x8xf32>, vector<16x8xf32> -> vector<16x8xf32>
    %cst_78 = arith.constant -1.000000e+04 : f32
    %207 = vector.shape_cast %202 : vector<1x8xi1> to vector<1x8xi1>
    %208 = vector.broadcast %207 : vector<1x8xi1> to vector<16x8xi1>
    %209 = vector.broadcast %cst_78 : f32 to vector<16x8xf32>
    %210 = arith.select %208, %209, %206 : vector<16x8xi1>, vector<16x8xf32>
    %cst_79 = arith.constant dense<0xFF800000> : vector<16xf32>
    %211 = vector.multi_reduction <maximumf>, %210, %cst_79 [1] : vector<16x8xf32> to vector<16xf32>
    %212 = vector.shape_cast %211 : vector<16xf32> to vector<16x1xf32>
    %213 = vector.broadcast %212 : vector<16x1xf32> to vector<16x8xf32>
    %214 = arith.subf %210, %213 : vector<16x8xf32>
    %215 = math.exp %214 : vector<16x8xf32>
    %cst_80 = arith.constant dense<0.000000e+00> : vector<16xf32>
    %216 = vector.multi_reduction <add>, %215, %cst_80 [1] : vector<16x8xf32> to vector<16xf32>
    %217 = vector.shape_cast %216 : vector<16xf32> to vector<16x1xf32>
    %218 = tpu.reciprocal %217 {approx = true} : vector<16x1xf32> -> vector<16x1xf32>
    %cst_81 = arith.constant dense<0.000000e+00> : vector<16x8xf32>
    %219 = tpu.matmul %215, %205, %cst_81 {dimension_numbers = #tpu.dot_dimension_numbers<[1], [0], [0], [1], [0, 0, 1, 1], [], []>} : vector<16x8xf32>, vector<8x8xf32>, vector<16x8xf32> -> vector<16x8xf32>
    %220 = vector.broadcast %218 : vector<16x1xf32> to vector<16x8xf32>
    %221 = arith.mulf %219, %220 : vector<16x8xf32>
    %c0_82 = arith.constant 0 : index
    %c0_83 = arith.constant 0 : index
    %222 = vector.load %arg11[%c0_82, %c0_83] : memref<32x32xf32, #tpu.memory_space<vmem>>, vector<16x8xf32>
    tpu.vector_store %arg11[%c0_82, %c0_83], %221 {strides = array<i32>} : memref<32x32xf32, #tpu.memory_space<vmem>>, vector<16x8xf32>,
    %223 = vector.extract_strided_slice %197 {offsets = [0, 8], sizes = [16, 8], strides = [1, 1]} : vector<16x32xf32> to vector<16x8xf32>
    %224 = vector.extract_strided_slice %198 {offsets = [0, 8], sizes = [8, 8], strides = [1, 1]} : vector<8x32xf32> to vector<8x8xf32>
    %225 = vector.extract_strided_slice %199 {offsets = [0, 8], sizes = [8, 8], strides = [1, 1]} : vector<8x32xf32> to vector<8x8xf32>
    %cst_84 = arith.constant dense<0.000000e+00> : vector<16x8xf32>
    %226 = tpu.matmul %223, %224, %cst_84 {dimension_numbers = #tpu.dot_dimension_numbers<[1], [1], [0], [0], [0, 0, 1, 0], [], []>} : vector<16x8xf32>, vector<8x8xf32>, vector<16x8xf32> -> vector<16x8xf32>
    %cst_85 = arith.constant -1.000000e+04 : f32
    %227 = vector.shape_cast %202 : vector<1x8xi1> to vector<1x8xi1>
    %228 = vector.broadcast %227 : vector<1x8xi1> to vector<16x8xi1>
    %229 = vector.broadcast %cst_85 : f32 to vector<16x8xf32>
    %230 = arith.select %228, %229, %226 : vector<16x8xi1>, vector<16x8xf32>
    %cst_86 = arith.constant dense<0xFF800000> : vector<16xf32>
    %231 = vector.multi_reduction <maximumf>, %230, %cst_86 [1] : vector<16x8xf32> to vector<16xf32>
    %232 = vector.shape_cast %231 : vector<16xf32> to vector<16x1xf32>
    %233 = vector.broadcast %232 : vector<16x1xf32> to vector<16x8xf32>
    %234 = arith.subf %230, %233 : vector<16x8xf32>
    %235 = math.exp %234 : vector<16x8xf32>
    %cst_87 = arith.constant dense<0.000000e+00> : vector<16xf32>
    %236 = vector.multi_reduction <add>, %235, %cst_87 [1] : vector<16x8xf32> to vector<16xf32>
    %237 = vector.shape_cast %236 : vector<16xf32> to vector<16x1xf32>
    %238 = tpu.reciprocal %237 {approx = true} : vector<16x1xf32> -> vector<16x1xf32>
    %cst_88 = arith.constant dense<0.000000e+00> : vector<16x8xf32>
    %239 = tpu.matmul %235, %225, %cst_88 {dimension_numbers = #tpu.dot_dimension_numbers<[1], [0], [0], [1], [0, 0, 1, 1], [], []>} : vector<16x8xf32>, vector<8x8xf32>, vector<16x8xf32> -> vector<16x8xf32>
    %240 = vector.broadcast %238 : vector<16x1xf32> to vector<16x8xf32>
    %241 = arith.mulf %239, %240 : vector<16x8xf32>
    %c0_89 = arith.constant 0 : index
    %c8_90 = arith.constant 8 : index
    %242 = vector.load %arg11[%c0_89, %c8_90] : memref<32x32xf32, #tpu.memory_space<vmem>>, vector<16x8xf32>
    tpu.vector_store %arg11[%c0_89, %c8_90], %241 {strides = array<i32>} : memref<32x32xf32, #tpu.memory_space<vmem>>, vector<16x8xf32>,
    %243 = vector.extract_strided_slice %197 {offsets = [0, 16], sizes = [16, 8], strides = [1, 1]} : vector<16x32xf32> to vector<16x8xf32>
    %244 = vector.extract_strided_slice %198 {offsets = [0, 16], sizes = [8, 8], strides = [1, 1]} : vector<8x32xf32> to vector<8x8xf32>
    %245 = vector.extract_strided_slice %199 {offsets = [0, 16], sizes = [8, 8], strides = [1, 1]} : vector<8x32xf32> to vector<8x8xf32>
    %cst_91 = arith.constant dense<0.000000e+00> : vector<16x8xf32>
    %246 = tpu.matmul %243, %244, %cst_91 {dimension_numbers = #tpu.dot_dimension_numbers<[1], [1], [0], [0], [0, 0, 1, 0], [], []>} : vector<16x8xf32>, vector<8x8xf32>, vector<16x8xf32> -> vector<16x8xf32>
    %cst_92 = arith.constant -1.000000e+04 : f32
    %247 = vector.shape_cast %202 : vector<1x8xi1> to vector<1x8xi1>
    %248 = vector.broadcast %247 : vector<1x8xi1> to vector<16x8xi1>
    %249 = vector.broadcast %cst_92 : f32 to vector<16x8xf32>
    %250 = arith.select %248, %249, %246 : vector<16x8xi1>, vector<16x8xf32>
    %cst_93 = arith.constant dense<0xFF800000> : vector<16xf32>
    %251 = vector.multi_reduction <maximumf>, %250, %cst_93 [1] : vector<16x8xf32> to vector<16xf32>
    %252 = vector.shape_cast %251 : vector<16xf32> to vector<16x1xf32>
    %253 = vector.broadcast %252 : vector<16x1xf32> to vector<16x8xf32>
    %254 = arith.subf %250, %253 : vector<16x8xf32>
    %255 = math.exp %254 : vector<16x8xf32>
    %cst_94 = arith.constant dense<0.000000e+00> : vector<16xf32>
    %256 = vector.multi_reduction <add>, %255, %cst_94 [1] : vector<16x8xf32> to vector<16xf32>
    %257 = vector.shape_cast %256 : vector<16xf32> to vector<16x1xf32>
    %258 = tpu.reciprocal %257 {approx = true} : vector<16x1xf32> -> vector<16x1xf32>
    %cst_95 = arith.constant dense<0.000000e+00> : vector<16x8xf32>
    %259 = tpu.matmul %255, %245, %cst_95 {dimension_numbers = #tpu.dot_dimension_numbers<[1], [0], [0], [1], [0, 0, 1, 1], [], []>} : vector<16x8xf32>, vector<8x8xf32>, vector<16x8xf32> -> vector<16x8xf32>
    %260 = vector.broadcast %258 : vector<16x1xf32> to vector<16x8xf32>
    %261 = arith.mulf %259, %260 : vector<16x8xf32>
    %c0_96 = arith.constant 0 : index
    %c16_97 = arith.constant 16 : index
    %262 = vector.load %arg11[%c0_96, %c16_97] : memref<32x32xf32, #tpu.memory_space<vmem>>, vector<16x8xf32>
    tpu.vector_store %arg11[%c0_96, %c16_97], %261 {strides = array<i32>} : memref<32x32xf32, #tpu.memory_space<vmem>>, vector<16x8xf32>,
    %263 = vector.extract_strided_slice %197 {offsets = [0, 24], sizes = [16, 8], strides = [1, 1]} : vector<16x32xf32> to vector<16x8xf32>
    %264 = vector.extract_strided_slice %198 {offsets = [0, 24], sizes = [8, 8], strides = [1, 1]} : vector<8x32xf32> to vector<8x8xf32>
    %265 = vector.extract_strided_slice %199 {offsets = [0, 24], sizes = [8, 8], strides = [1, 1]} : vector<8x32xf32> to vector<8x8xf32>
    %cst_98 = arith.constant dense<0.000000e+00> : vector<16x8xf32>
    %266 = tpu.matmul %263, %264, %cst_98 {dimension_numbers = #tpu.dot_dimension_numbers<[1], [1], [0], [0], [0, 0, 1, 0], [], []>} : vector<16x8xf32>, vector<8x8xf32>, vector<16x8xf32> -> vector<16x8xf32>
    %cst_99 = arith.constant -1.000000e+04 : f32
    %267 = vector.shape_cast %202 : vector<1x8xi1> to vector<1x8xi1>
    %268 = vector.broadcast %267 : vector<1x8xi1> to vector<16x8xi1>
    %269 = vector.broadcast %cst_99 : f32 to vector<16x8xf32>
    %270 = arith.select %268, %269, %266 : vector<16x8xi1>, vector<16x8xf32>
    %cst_100 = arith.constant dense<0xFF800000> : vector<16xf32>
    %271 = vector.multi_reduction <maximumf>, %270, %cst_100 [1] : vector<16x8xf32> to vector<16xf32>
    %272 = vector.shape_cast %271 : vector<16xf32> to vector<16x1xf32>
    %273 = vector.broadcast %272 : vector<16x1xf32> to vector<16x8xf32>
    %274 = arith.subf %270, %273 : vector<16x8xf32>
    %275 = math.exp %274 : vector<16x8xf32>
    %cst_101 = arith.constant dense<0.000000e+00> : vector<16xf32>
    %276 = vector.multi_reduction <add>, %275, %cst_101 [1] : vector<16x8xf32> to vector<16xf32>
    %277 = vector.shape_cast %276 : vector<16xf32> to vector<16x1xf32>
    %278 = tpu.reciprocal %277 {approx = true} : vector<16x1xf32> -> vector<16x1xf32>
    %cst_102 = arith.constant dense<0.000000e+00> : vector<16x8xf32>
    %279 = tpu.matmul %275, %265, %cst_102 {dimension_numbers = #tpu.dot_dimension_numbers<[1], [0], [0], [1], [0, 0, 1, 1], [], []>} : vector<16x8xf32>, vector<8x8xf32>, vector<16x8xf32> -> vector<16x8xf32>
    %280 = vector.broadcast %278 : vector<16x1xf32> to vector<16x8xf32>
    %281 = arith.mulf %279, %280 : vector<16x8xf32>
    %c0_103 = arith.constant 0 : index
    %c24_104 = arith.constant 24 : index
    %282 = vector.load %arg11[%c0_103, %c24_104] : memref<32x32xf32, #tpu.memory_space<vmem>>, vector<16x8xf32>
    tpu.vector_store %arg11[%c0_103, %c24_104], %281 {strides = array<i32>} : memref<32x32xf32, #tpu.memory_space<vmem>>, vector<16x8xf32>,
    %283 = vector.extract_strided_slice %11 {offsets = [16, 0], sizes = [16, 32], strides = [1, 1]} : vector<32x32xf32> to vector<16x32xf32>
    %284 = vector.extract_strided_slice %195 {offsets = [8, 0], sizes = [8, 32], strides = [1, 1]} : vector<16x32xf32> to vector<8x32xf32>
    %285 = vector.extract_strided_slice %196 {offsets = [8, 0], sizes = [8, 32], strides = [1, 1]} : vector<16x32xf32> to vector<8x32xf32>
    %286 = vector.extract_strided_slice %3 {offsets = [1, 0], sizes = [1, 8], strides = [1, 1]} : vector<2x8xf32> to vector<1x8xf32>
    %cst_105 = arith.constant 5.000000e-01 : f32
    %287 = vector.broadcast %cst_105 : f32 to vector<1x8xf32>
    %288 = arith.cmpf ogt, %286, %287 : vector<1x8xf32>
    %289 = vector.extract_strided_slice %283 {offsets = [0, 0], sizes = [16, 8], strides = [1, 1]} : vector<16x32xf32> to vector<16x8xf32>
    %290 = vector.extract_strided_slice %284 {offsets = [0, 0], sizes = [8, 8], strides = [1, 1]} : vector<8x32xf32> to vector<8x8xf32>
    %291 = vector.extract_strided_slice %285 {offsets = [0, 0], sizes = [8, 8], strides = [1, 1]} : vector<8x32xf32> to vector<8x8xf32>
    %cst_106 = arith.constant dense<0.000000e+00> : vector<16x8xf32>
    %292 = tpu.matmul %289, %290, %cst_106 {dimension_numbers = #tpu.dot_dimension_numbers<[1], [1], [0], [0], [0, 0, 1, 0], [], []>} : vector<16x8xf32>, vector<8x8xf32>, vector<16x8xf32> -> vector<16x8xf32>
    %cst_107 = arith.constant -1.000000e+04 : f32
    %293 = vector.shape_cast %288 : vector<1x8xi1> to vector<1x8xi1>
    %294 = vector.broadcast %293 : vector<1x8xi1> to vector<16x8xi1>
    %295 = vector.broadcast %cst_107 : f32 to vector<16x8xf32>
    %296 = arith.select %294, %295, %292 : vector<16x8xi1>, vector<16x8xf32>
    %cst_108 = arith.constant dense<0xFF800000> : vector<16xf32>
    %297 = vector.multi_reduction <maximumf>, %296, %cst_108 [1] : vector<16x8xf32> to vector<16xf32>
    %298 = vector.shape_cast %297 : vector<16xf32> to vector<16x1xf32>
    %299 = vector.broadcast %298 : vector<16x1xf32> to vector<16x8xf32>
    %300 = arith.subf %296, %299 : vector<16x8xf32>
    %301 = math.exp %300 : vector<16x8xf32>
    %cst_109 = arith.constant dense<0.000000e+00> : vector<16xf32>
    %302 = vector.multi_reduction <add>, %301, %cst_109 [1] : vector<16x8xf32> to vector<16xf32>
    %303 = vector.shape_cast %302 : vector<16xf32> to vector<16x1xf32>
    %304 = tpu.reciprocal %303 {approx = true} : vector<16x1xf32> -> vector<16x1xf32>
    %cst_110 = arith.constant dense<0.000000e+00> : vector<16x8xf32>
    %305 = tpu.matmul %301, %291, %cst_110 {dimension_numbers = #tpu.dot_dimension_numbers<[1], [0], [0], [1], [0, 0, 1, 1], [], []>} : vector<16x8xf32>, vector<8x8xf32>, vector<16x8xf32> -> vector<16x8xf32>
    %306 = vector.broadcast %304 : vector<16x1xf32> to vector<16x8xf32>
    %307 = arith.mulf %305, %306 : vector<16x8xf32>
    %c16_111 = arith.constant 16 : index
    %c0_112 = arith.constant 0 : index
    %308 = vector.load %arg11[%c16_111, %c0_112] : memref<32x32xf32, #tpu.memory_space<vmem>>, vector<16x8xf32>
    tpu.vector_store %arg11[%c16_111, %c0_112], %307 {strides = array<i32>} : memref<32x32xf32, #tpu.memory_space<vmem>>, vector<16x8xf32>,
    %309 = vector.extract_strided_slice %283 {offsets = [0, 8], sizes = [16, 8], strides = [1, 1]} : vector<16x32xf32> to vector<16x8xf32>
    %310 = vector.extract_strided_slice %284 {offsets = [0, 8], sizes = [8, 8], strides = [1, 1]} : vector<8x32xf32> to vector<8x8xf32>
    %311 = vector.extract_strided_slice %285 {offsets = [0, 8], sizes = [8, 8], strides = [1, 1]} : vector<8x32xf32> to vector<8x8xf32>
    %cst_113 = arith.constant dense<0.000000e+00> : vector<16x8xf32>
    %312 = tpu.matmul %309, %310, %cst_113 {dimension_numbers = #tpu.dot_dimension_numbers<[1], [1], [0], [0], [0, 0, 1, 0], [], []>} : vector<16x8xf32>, vector<8x8xf32>, vector<16x8xf32> -> vector<16x8xf32>
    %cst_114 = arith.constant -1.000000e+04 : f32
    %313 = vector.shape_cast %288 : vector<1x8xi1> to vector<1x8xi1>
    %314 = vector.broadcast %313 : vector<1x8xi1> to vector<16x8xi1>
    %315 = vector.broadcast %cst_114 : f32 to vector<16x8xf32>
    %316 = arith.select %314, %315, %312 : vector<16x8xi1>, vector<16x8xf32>
    %cst_115 = arith.constant dense<0xFF800000> : vector<16xf32>
    %317 = vector.multi_reduction <maximumf>, %316, %cst_115 [1] : vector<16x8xf32> to vector<16xf32>
    %318 = vector.shape_cast %317 : vector<16xf32> to vector<16x1xf32>
    %319 = vector.broadcast %318 : vector<16x1xf32> to vector<16x8xf32>
    %320 = arith.subf %316, %319 : vector<16x8xf32>
    %321 = math.exp %320 : vector<16x8xf32>
    %cst_116 = arith.constant dense<0.000000e+00> : vector<16xf32>
    %322 = vector.multi_reduction <add>, %321, %cst_116 [1] : vector<16x8xf32> to vector<16xf32>
    %323 = vector.shape_cast %322 : vector<16xf32> to vector<16x1xf32>
    %324 = tpu.reciprocal %323 {approx = true} : vector<16x1xf32> -> vector<16x1xf32>
    %cst_117 = arith.constant dense<0.000000e+00> : vector<16x8xf32>
    %325 = tpu.matmul %321, %311, %cst_117 {dimension_numbers = #tpu.dot_dimension_numbers<[1], [0], [0], [1], [0, 0, 1, 1], [], []>} : vector<16x8xf32>, vector<8x8xf32>, vector<16x8xf32> -> vector<16x8xf32>
    %326 = vector.broadcast %324 : vector<16x1xf32> to vector<16x8xf32>
    %327 = arith.mulf %325, %326 : vector<16x8xf32>
    %c16_118 = arith.constant 16 : index
    %c8_119 = arith.constant 8 : index
    %328 = vector.load %arg11[%c16_118, %c8_119] : memref<32x32xf32, #tpu.memory_space<vmem>>, vector<16x8xf32>
    tpu.vector_store %arg11[%c16_118, %c8_119], %327 {strides = array<i32>} : memref<32x32xf32, #tpu.memory_space<vmem>>, vector<16x8xf32>,
    %329 = vector.extract_strided_slice %283 {offsets = [0, 16], sizes = [16, 8], strides = [1, 1]} : vector<16x32xf32> to vector<16x8xf32>
    %330 = vector.extract_strided_slice %284 {offsets = [0, 16], sizes = [8, 8], strides = [1, 1]} : vector<8x32xf32> to vector<8x8xf32>
    %331 = vector.extract_strided_slice %285 {offsets = [0, 16], sizes = [8, 8], strides = [1, 1]} : vector<8x32xf32> to vector<8x8xf32>
    %cst_120 = arith.constant dense<0.000000e+00> : vector<16x8xf32>
    %332 = tpu.matmul %329, %330, %cst_120 {dimension_numbers = #tpu.dot_dimension_numbers<[1], [1], [0], [0], [0, 0, 1, 0], [], []>} : vector<16x8xf32>, vector<8x8xf32>, vector<16x8xf32> -> vector<16x8xf32>
    %cst_121 = arith.constant -1.000000e+04 : f32
    %333 = vector.shape_cast %288 : vector<1x8xi1> to vector<1x8xi1>
    %334 = vector.broadcast %333 : vector<1x8xi1> to vector<16x8xi1>
    %335 = vector.broadcast %cst_121 : f32 to vector<16x8xf32>
    %336 = arith.select %334, %335, %332 : vector<16x8xi1>, vector<16x8xf32>
    %cst_122 = arith.constant dense<0xFF800000> : vector<16xf32>
    %337 = vector.multi_reduction <maximumf>, %336, %cst_122 [1] : vector<16x8xf32> to vector<16xf32>
    %338 = vector.shape_cast %337 : vector<16xf32> to vector<16x1xf32>
    %339 = vector.broadcast %338 : vector<16x1xf32> to vector<16x8xf32>
    %340 = arith.subf %336, %339 : vector<16x8xf32>
    %341 = math.exp %340 : vector<16x8xf32>
    %cst_123 = arith.constant dense<0.000000e+00> : vector<16xf32>
    %342 = vector.multi_reduction <add>, %341, %cst_123 [1] : vector<16x8xf32> to vector<16xf32>
    %343 = vector.shape_cast %342 : vector<16xf32> to vector<16x1xf32>
    %344 = tpu.reciprocal %343 {approx = true} : vector<16x1xf32> -> vector<16x1xf32>
    %cst_124 = arith.constant dense<0.000000e+00> : vector<16x8xf32>
    %345 = tpu.matmul %341, %331, %cst_124 {dimension_numbers = #tpu.dot_dimension_numbers<[1], [0], [0], [1], [0, 0, 1, 1], [], []>} : vector<16x8xf32>, vector<8x8xf32>, vector<16x8xf32> -> vector<16x8xf32>
    %346 = vector.broadcast %344 : vector<16x1xf32> to vector<16x8xf32>
    %347 = arith.mulf %345, %346 : vector<16x8xf32>
    %c16_125 = arith.constant 16 : index
    %c16_126 = arith.constant 16 : index
    %348 = vector.load %arg11[%c16_125, %c16_126] : memref<32x32xf32, #tpu.memory_space<vmem>>, vector<16x8xf32>
    tpu.vector_store %arg11[%c16_125, %c16_126], %347 {strides = array<i32>} : memref<32x32xf32, #tpu.memory_space<vmem>>, vector<16x8xf32>,
    %349 = vector.extract_strided_slice %283 {offsets = [0, 24], sizes = [16, 8], strides = [1, 1]} : vector<16x32xf32> to vector<16x8xf32>
    %350 = vector.extract_strided_slice %284 {offsets = [0, 24], sizes = [8, 8], strides = [1, 1]} : vector<8x32xf32> to vector<8x8xf32>
    %351 = vector.extract_strided_slice %285 {offsets = [0, 24], sizes = [8, 8], strides = [1, 1]} : vector<8x32xf32> to vector<8x8xf32>
    %cst_127 = arith.constant dense<0.000000e+00> : vector<16x8xf32>
    %352 = tpu.matmul %349, %350, %cst_127 {dimension_numbers = #tpu.dot_dimension_numbers<[1], [1], [0], [0], [0, 0, 1, 0], [], []>} : vector<16x8xf32>, vector<8x8xf32>, vector<16x8xf32> -> vector<16x8xf32>
    %cst_128 = arith.constant -1.000000e+04 : f32
    %353 = vector.shape_cast %288 : vector<1x8xi1> to vector<1x8xi1>
    %354 = vector.broadcast %353 : vector<1x8xi1> to vector<16x8xi1>
    %355 = vector.broadcast %cst_128 : f32 to vector<16x8xf32>
    %356 = arith.select %354, %355, %352 : vector<16x8xi1>, vector<16x8xf32>
    %cst_129 = arith.constant dense<0xFF800000> : vector<16xf32>
    %357 = vector.multi_reduction <maximumf>, %356, %cst_129 [1] : vector<16x8xf32> to vector<16xf32>
    %358 = vector.shape_cast %357 : vector<16xf32> to vector<16x1xf32>
    %359 = vector.broadcast %358 : vector<16x1xf32> to vector<16x8xf32>
    %360 = arith.subf %356, %359 : vector<16x8xf32>
    %361 = math.exp %360 : vector<16x8xf32>
    %cst_130 = arith.constant dense<0.000000e+00> : vector<16xf32>
    %362 = vector.multi_reduction <add>, %361, %cst_130 [1] : vector<16x8xf32> to vector<16xf32>
    %363 = vector.shape_cast %362 : vector<16xf32> to vector<16x1xf32>
    %364 = tpu.reciprocal %363 {approx = true} : vector<16x1xf32> -> vector<16x1xf32>
    %cst_131 = arith.constant dense<0.000000e+00> : vector<16x8xf32>
    %365 = tpu.matmul %361, %351, %cst_131 {dimension_numbers = #tpu.dot_dimension_numbers<[1], [0], [0], [1], [0, 0, 1, 1], [], []>} : vector<16x8xf32>, vector<8x8xf32>, vector<16x8xf32> -> vector<16x8xf32>
    %366 = vector.broadcast %364 : vector<16x1xf32> to vector<16x8xf32>
    %367 = arith.mulf %365, %366 : vector<16x8xf32>
    %c16_132 = arith.constant 16 : index
    %c24_133 = arith.constant 24 : index
    %368 = vector.load %arg11[%c16_132, %c24_133] : memref<32x32xf32, #tpu.memory_space<vmem>>, vector<16x8xf32>
    tpu.vector_store %arg11[%c16_132, %c24_133], %367 {strides = array<i32>} : memref<32x32xf32, #tpu.memory_space<vmem>>, vector<16x8xf32>,
    %c0_134 = arith.constant 0 : index
    %c0_135 = arith.constant 0 : index
    %369 = vector.load %arg11[%c0_134, %c0_135] : memref<32x32xf32, #tpu.memory_space<vmem>>, vector<32x32xf32>
    %c0_136 = arith.constant 0 : index
    %c192 = arith.constant 192 : index
    %370 = vector.load %arg5[%c0_136, %c192] : memref<32x288xf32, #tpu.memory_space<vmem>>, vector<32x32xf32>
    %cst_137 = arith.constant dense<0.000000e+00> : vector<32x32xf32>
    %371 = tpu.matmul %369, %370, %cst_137 {dimension_numbers = #tpu.dot_dimension_numbers<[1], [0], [0], [1], [0, 0, 1, 1], [], []>} : vector<32x32xf32>, vector<32x32xf32>, vector<32x32xf32> -> vector<32x32xf32>
    %c0_138 = arith.constant 0 : index
    %c192_139 = arith.constant 192 : index
    %372 = vector.load %arg6[%c0_138, %c192_139] : memref<1x512xf32, #tpu.memory_space<vmem>>, vector<1x32xf32>
    %373 = vector.broadcast %372 : vector<1x32xf32> to vector<32x32xf32>
    %374 = arith.addf %371, %373 : vector<32x32xf32>
    %375 = arith.addf %189, %1 : vector<16x32xf32>
    %c0_140 = arith.constant 0 : index
    %c320 = arith.constant 320 : index
    %376 = vector.load %arg6[%c0_140, %c320] : memref<1x512xf32, #tpu.memory_space<vmem>>, vector<1x32xf32>
    %c0_141 = arith.constant 0 : index
    %c352 = arith.constant 352 : index
    %377 = vector.load %arg6[%c0_141, %c352] : memref<1x512xf32, #tpu.memory_space<vmem>>, vector<1x32xf32>
    %cst_142 = arith.constant dense<0.000000e+00> : vector<16xf32>
    %378 = vector.multi_reduction <add>, %375, %cst_142 [1] : vector<16x32xf32> to vector<16xf32>
    %379 = vector.shape_cast %378 : vector<16xf32> to vector<16x1xf32>
    %cst_143 = arith.constant 3.200000e+01 : f32
    %380 = vector.broadcast %cst_143 : f32 to vector<16x1xf32>
    %381 = arith.divf %379, %380 : vector<16x1xf32>
    %382 = vector.broadcast %381 : vector<16x1xf32> to vector<16x32xf32>
    %383 = arith.subf %375, %382 : vector<16x32xf32>
    %384 = arith.mulf %383, %383 : vector<16x32xf32>
    %cst_144 = arith.constant dense<0.000000e+00> : vector<16xf32>
    %385 = vector.multi_reduction <add>, %384, %cst_144 [1] : vector<16x32xf32> to vector<16xf32>
    %386 = vector.shape_cast %385 : vector<16xf32> to vector<16x1xf32>
    %cst_145 = arith.constant 3.200000e+01 : f32
    %387 = vector.broadcast %cst_145 : f32 to vector<16x1xf32>
    %388 = arith.divf %386, %387 : vector<16x1xf32>
    %389 = vector.broadcast %381 : vector<16x1xf32> to vector<16x32xf32>
    %390 = arith.subf %375, %389 : vector<16x32xf32>
    %cst_146 = arith.constant 9.99999974E-6 : f32
    %391 = vector.broadcast %cst_146 : f32 to vector<16x1xf32>
    %392 = arith.addf %388, %391 : vector<16x1xf32>
    %393 = math.rsqrt %392 : vector<16x1xf32>
    %394 = vector.broadcast %393 : vector<16x1xf32> to vector<16x32xf32>
    %395 = arith.mulf %390, %394 : vector<16x32xf32>
    %396 = vector.broadcast %376 : vector<1x32xf32> to vector<16x32xf32>
    %397 = arith.mulf %395, %396 : vector<16x32xf32>
    %398 = vector.broadcast %377 : vector<1x32xf32> to vector<16x32xf32>
    %399 = arith.addf %397, %398 : vector<16x32xf32>
    %400 = arith.addf %374, %0 : vector<32x32xf32>
    %c0_147 = arith.constant 0 : index
    %c384 = arith.constant 384 : index
    %401 = vector.load %arg6[%c0_147, %c384] : memref<1x512xf32, #tpu.memory_space<vmem>>, vector<1x32xf32>
    %c0_148 = arith.constant 0 : index
    %c416 = arith.constant 416 : index
    %402 = vector.load %arg6[%c0_148, %c416] : memref<1x512xf32, #tpu.memory_space<vmem>>, vector<1x32xf32>
    %cst_149 = arith.constant dense<0.000000e+00> : vector<32xf32>
    %403 = vector.multi_reduction <add>, %400, %cst_149 [1] : vector<32x32xf32> to vector<32xf32>
    %404 = vector.shape_cast %403 : vector<32xf32> to vector<32x1xf32>
    %cst_150 = arith.constant 3.200000e+01 : f32
    %405 = vector.broadcast %cst_150 : f32 to vector<32x1xf32>
    %406 = arith.divf %404, %405 : vector<32x1xf32>
    %407 = vector.broadcast %406 : vector<32x1xf32> to vector<32x32xf32>
    %408 = arith.subf %400, %407 : vector<32x32xf32>
    %409 = arith.mulf %408, %408 : vector<32x32xf32>
    %cst_151 = arith.constant dense<0.000000e+00> : vector<32xf32>
    %410 = vector.multi_reduction <add>, %409, %cst_151 [1] : vector<32x32xf32> to vector<32xf32>
    %411 = vector.shape_cast %410 : vector<32xf32> to vector<32x1xf32>
    %cst_152 = arith.constant 3.200000e+01 : f32
    %412 = vector.broadcast %cst_152 : f32 to vector<32x1xf32>
    %413 = arith.divf %411, %412 : vector<32x1xf32>
    %414 = vector.broadcast %406 : vector<32x1xf32> to vector<32x32xf32>
    %415 = arith.subf %400, %414 : vector<32x32xf32>
    %cst_153 = arith.constant 9.99999974E-6 : f32
    %416 = vector.broadcast %cst_153 : f32 to vector<32x1xf32>
    %417 = arith.addf %413, %416 : vector<32x1xf32>
    %418 = math.rsqrt %417 : vector<32x1xf32>
    %419 = vector.broadcast %418 : vector<32x1xf32> to vector<32x32xf32>
    %420 = arith.mulf %415, %419 : vector<32x32xf32>
    %421 = vector.broadcast %401 : vector<1x32xf32> to vector<32x32xf32>
    %422 = arith.mulf %420, %421 : vector<32x32xf32>
    %423 = vector.broadcast %402 : vector<1x32xf32> to vector<32x32xf32>
    %424 = arith.addf %422, %423 : vector<32x32xf32>
    %c0_154 = arith.constant 0 : index
    %c224 = arith.constant 224 : index
    %425 = vector.load %arg5[%c0_154, %c224] : memref<32x288xf32, #tpu.memory_space<vmem>>, vector<32x64xf32>
    %cst_155 = arith.constant dense<0.000000e+00> : vector<32x64xf32>
    %426 = tpu.matmul %424, %425, %cst_155 {dimension_numbers = #tpu.dot_dimension_numbers<[1], [0], [0], [1], [0, 0, 1, 1], [], []>} : vector<32x32xf32>, vector<32x64xf32>, vector<32x64xf32> -> vector<32x64xf32>
    %c0_156 = arith.constant 0 : index
    %c224_157 = arith.constant 224 : index
    %427 = vector.load %arg6[%c0_156, %c224_157] : memref<1x512xf32, #tpu.memory_space<vmem>>, vector<1x64xf32>
    %428 = vector.broadcast %427 : vector<1x64xf32> to vector<32x64xf32>
    %429 = arith.addf %426, %428 : vector<32x64xf32>
    %cst_158 = arith.constant 0.000000e+00 : f32
    %430 = vector.broadcast %cst_158 : f32 to vector<32x64xf32>
    %431 = arith.maximumf %429, %430 : vector<32x64xf32>
    %c0_159 = arith.constant 0 : index
    %c0_160 = arith.constant 0 : index
    %432 = vector.load %arg7[%c0_159, %c0_160] : memref<64x32xf32, #tpu.memory_space<vmem>>, vector<64x32xf32>
    %cst_161 = arith.constant dense<0.000000e+00> : vector<32x32xf32>
    %433 = tpu.matmul %431, %432, %cst_161 {dimension_numbers = #tpu.dot_dimension_numbers<[1], [0], [0], [1], [0, 0, 1, 1], [], []>} : vector<32x64xf32>, vector<64x32xf32>, vector<32x32xf32> -> vector<32x32xf32>
    %c0_162 = arith.constant 0 : index
    %c288 = arith.constant 288 : index
    %434 = vector.load %arg6[%c0_162, %c288] : memref<1x512xf32, #tpu.memory_space<vmem>>, vector<1x32xf32>
    %435 = vector.broadcast %434 : vector<1x32xf32> to vector<32x32xf32>
    %436 = arith.addf %433, %435 : vector<32x32xf32>
    %437 = arith.addf %436, %424 : vector<32x32xf32>
    %c0_163 = arith.constant 0 : index
    %c448 = arith.constant 448 : index
    %438 = vector.load %arg6[%c0_163, %c448] : memref<1x512xf32, #tpu.memory_space<vmem>>, vector<1x32xf32>
    %c0_164 = arith.constant 0 : index
    %c480 = arith.constant 480 : index
    %439 = vector.load %arg6[%c0_164, %c480] : memref<1x512xf32, #tpu.memory_space<vmem>>, vector<1x32xf32>
    %cst_165 = arith.constant dense<0.000000e+00> : vector<32xf32>
    %440 = vector.multi_reduction <add>, %437, %cst_165 [1] : vector<32x32xf32> to vector<32xf32>
    %441 = vector.shape_cast %440 : vector<32xf32> to vector<32x1xf32>
    %cst_166 = arith.constant 3.200000e+01 : f32
    %442 = vector.broadcast %cst_166 : f32 to vector<32x1xf32>
    %443 = arith.divf %441, %442 : vector<32x1xf32>
    %444 = vector.broadcast %443 : vector<32x1xf32> to vector<32x32xf32>
    %445 = arith.subf %437, %444 : vector<32x32xf32>
    %446 = arith.mulf %445, %445 : vector<32x32xf32>
    %cst_167 = arith.constant dense<0.000000e+00> : vector<32xf32>
    %447 = vector.multi_reduction <add>, %446, %cst_167 [1] : vector<32x32xf32> to vector<32xf32>
    %448 = vector.shape_cast %447 : vector<32xf32> to vector<32x1xf32>
    %cst_168 = arith.constant 3.200000e+01 : f32
    %449 = vector.broadcast %cst_168 : f32 to vector<32x1xf32>
    %450 = arith.divf %448, %449 : vector<32x1xf32>
    %451 = vector.broadcast %443 : vector<32x1xf32> to vector<32x32xf32>
    %452 = arith.subf %437, %451 : vector<32x32xf32>
    %cst_169 = arith.constant 9.99999974E-6 : f32
    %453 = vector.broadcast %cst_169 : f32 to vector<32x1xf32>
    %454 = arith.addf %450, %453 : vector<32x1xf32>
    %455 = math.rsqrt %454 : vector<32x1xf32>
    %456 = vector.broadcast %455 : vector<32x1xf32> to vector<32x32xf32>
    %457 = arith.mulf %452, %456 : vector<32x32xf32>
    %458 = vector.broadcast %438 : vector<1x32xf32> to vector<32x32xf32>
    %459 = arith.mulf %457, %458 : vector<32x32xf32>
    %460 = vector.broadcast %439 : vector<1x32xf32> to vector<32x32xf32>
    %461 = arith.addf %459, %460 : vector<32x32xf32>
    %c0_170 = arith.constant 0 : index
    %c0_171 = arith.constant 0 : index
    %462 = vector.load %arg8[%c0_170, %c0_171] : memref<32x32xf32, #tpu.memory_space<vmem>>, vector<32x32xf32>
    tpu.vector_store %arg8[%c0_170, %c0_171], %461 {strides = array<i32>} : memref<32x32xf32, #tpu.memory_space<vmem>>, vector<32x32xf32>,
    %c0_172 = arith.constant 0 : index
    %c0_173 = arith.constant 0 : index
    %463 = vector.load %arg9[%c0_172, %c0_173] : memref<16x32xf32, #tpu.memory_space<vmem>>, vector<16x32xf32>
    tpu.vector_store %arg9[%c0_172, %c0_173], %399 {strides = array<i32>} : memref<16x32xf32, #tpu.memory_space<vmem>>, vector<16x32xf32>,
    return
  }
  func.func @transform_0(%arg0: i32) -> (i32, i32) {
    %c0_i32 = arith.constant 0 : i32
    %c0_i32_0 = arith.constant 0 : i32
    %c0_i32_1 = arith.constant 0 : i32
    return %c0_i32, %c0_i32_0 : i32, i32
  }
  func.func @transform_1(%arg0: i32) -> (i32, i32) {
    %c0_i32 = arith.constant 0 : i32
    %c0_i32_0 = arith.constant 0 : i32
    %c0_i32_1 = arith.constant 0 : i32
    return %c0_i32, %c0_i32_0 : i32, i32
  }
  func.func @transform_2(%arg0: i32) -> (i32, i32) {
    %c0_i32 = arith.constant 0 : i32
    %c0_i32_0 = arith.constant 0 : i32
    %c0_i32_1 = arith.constant 0 : i32
    return %c0_i32, %c0_i32_0 : i32, i32
  }
  func.func @transform_3(%arg0: i32) -> (i32, i32) {
    %c0_i32 = arith.constant 0 : i32
    %c0_i32_0 = arith.constant 0 : i32
    %c0_i32_1 = arith.constant 0 : i32
    return %c0_i32, %c0_i32_0 : i32, i32
  }
  func.func @transform_4(%arg0: i32) -> (i32, i32) {
    %c0_i32 = arith.constant 0 : i32
    %c0_i32_0 = arith.constant 0 : i32
    %c0_i32_1 = arith.constant 0 : i32
    return %c0_i32, %c0_i32_0 : i32, i32
  }
  func.func @transform_5(%arg0: i32) -> (i32, i32) {
    %c0_i32 = arith.constant 0 : i32
    %c0_i32_0 = arith.constant 0 : i32
    %c0_i32_1 = arith.constant 0 : i32
    return %c0_i32, %c0_i32_0 : i32, i32
  }
  func.func @transform_6(%arg0: i32) -> (i32, i32) {
    %c0_i32 = arith.constant 0 : i32
    %c0_i32_0 = arith.constant 0 : i32
    %c0_i32_1 = arith.constant 0 : i32
    return %c0_i32, %c0_i32_0 : i32, i32
  }
  func.func @transform_7(%arg0: i32) -> (i32, i32) {
    %c0_i32 = arith.constant 0 : i32
    %c0_i32_0 = arith.constant 0 : i32
    %c0_i32_1 = arith.constant 0 : i32
    return %c0_i32, %c0_i32_0 : i32, i32
  }
  func.func @transform_8(%arg0: i32) -> (i32, i32) {
    %c0_i32 = arith.constant 0 : i32
    %c0_i32_0 = arith.constant 0 : i32
    %c0_i32_1 = arith.constant 0 : i32
    return %c0_i32, %c0_i32_0 : i32, i32
  }
}

</mosaic_0001>

<llo_original>
// kernel: luna_encoder_layer.1
$region0: #{luna_encoder_layer.1}
  #allocation0 [shape = 'u32[]', space=smem, size = 0x4, offset = 0x4, fixed_abs, tag = 'smem constant byte address 0x4 - core index']
  #allocation1 [shape = 'u32[144,128]{1,0:T(1,128)}', space=vmem, size = 0x12000, scoped, tag = 'internal scratch']
  #allocation2 [shape = 'f32[16,32]{1,0:T(8,128)}', space=vmem, size = 0x2000, scoped, tag = 'scratch operand']
  #allocation3 [shape = 'f32[32,32]{1,0:T(8,128)}', space=vmem, size = 0x4000, scoped, tag = 'scratch operand']
  %s0 = inlined_call_operand.vmem [shape: f32[32,32], index: 0, kind: input, shape index: {}]
  %s1 = inlined_call_operand.vmem [shape: f32[16,32], index: 1, kind: input, shape index: {}]
  %s2 = inlined_call_operand.vmem [shape: f32[2,16], index: 2, kind: input, shape index: {}]
  %s3 = inlined_call_operand.vmem [shape: f32[2,8], index: 3, kind: input, shape index: {}]
  %s4 = inlined_call_operand.vmem [shape: f32[32,288], index: 4, kind: input, shape index: {}]
  %s5 = inlined_call_operand.vmem [shape: f32[1,512], index: 5, kind: input, shape index: {}]
  %s6 = inlined_call_operand.vmem [shape: f32[64,32], index: 6, kind: input, shape index: {}]
  %s7 = inlined_call_operand.hbm [shape: f32[32,32], index: 7, kind: output, shape index: {0}]
  %s8 = inlined_call_operand.hbm [shape: f32[16,32], index: 8, kind: output, shape index: {1}]
  %9 = xla_tuple %s7, %s8
  %s10 = sld [smem:[#allocation0]]
  $region46: #{luna_encoder_layer.1} parent=0
    _
  %s12 = ssub.s32 1, %s10
  %s13 = scalar_select 0, %s12, %s10
  $region1: #{luna_encoder_layer.1} parent=0
    #allocation4 [shape = 'u8[16384]{0}', space=vmem, size = 0x4000, scoped, tag = 'output window, operand 0, single buffered']
    #allocation5 [shape = 's32[1]{0}', space=sflag, size = 0x4, scoped, tag = 'scoped memory for luna_encoder_layer.1']
    #allocation6 [shape = 'u8[8192]{0}', space=vmem, size = 0x2000, scoped, tag = 'output window, operand 1, single buffered']
    #allocation7 [shape = 's32[1]{0}', space=sflag, size = 0x4, scoped, tag = 'scoped memory for luna_encoder_layer.1']
    %14 = vsyncpa [#allocation5], 0
    %15 = vsyncpa [#allocation7], 0
    // Predicated region
    $region2: #{luna_encoder_layer.1} parent=1 // pred_check
      _
    $region3: #{luna_encoder_layer.1} parent=1 // pred_check_branch
      %17 = sbr.rel (0) target = $region5
    $region4: #{luna_encoder_layer.1} parent=1 // pred_region
      _
    $region5: #{luna_encoder_layer.1} parent=1 // pred_fallthru
      _
    // Predicated region
    $region6: #{luna_encoder_layer.1} parent=1 // pred_check
      _
    $region7: #{luna_encoder_layer.1} parent=1 // pred_check_branch
      %19 = sbr.rel (0) target = $region9
    $region8: #{luna_encoder_layer.1} parent=1 // pred_region
      _
    $region9: #{luna_encoder_layer.1} parent=1 // pred_fallthru
      _
    // Predicated region
    $region10: #{luna_encoder_layer.1} parent=1 // pred_check
      _
    $region11: #{luna_encoder_layer.1} parent=1 // pred_check_branch
      %21 = sbr.rel (0) target = $region13
    $region12: #{luna_encoder_layer.1} parent=1 // pred_region
      _
    $region13: #{luna_encoder_layer.1} parent=1 // pred_fallthru
      _
    // Predicated region
    $region14: #{luna_encoder_layer.1} parent=1 // pred_check
      _
    $region15: #{luna_encoder_layer.1} parent=1 // pred_check_branch
      %23 = sbr.rel (0) target = $region17
    $region16: #{luna_encoder_layer.1} parent=1 // pred_region
      _
    $region17: #{luna_encoder_layer.1} parent=1 // pred_fallthru
      _
    // Predicated region
    $region18: #{luna_encoder_layer.1} parent=1 // pred_check
      _
    $region19: #{luna_encoder_layer.1} parent=1 // pred_check_branch
      %25 = sbr.rel (0) target = $region21
    $region20: #{luna_encoder_layer.1} parent=1 // pred_region
      _
    $region21: #{luna_encoder_layer.1} parent=1 // pred_fallthru
      _
    // Predicated region
    $region22: #{luna_encoder_layer.1} parent=1 // pred_check
      _
    $region23: #{luna_encoder_layer.1} parent=1 // pred_check_branch
      %27 = sbr.rel (0) target = $region25
    $region24: #{luna_encoder_layer.1} parent=1 // pred_region
      _
    $region25: #{luna_encoder_layer.1} parent=1 // pred_fallthru
      _
    // Predicated region
    $region26: #{luna_encoder_layer.1} parent=1 // pred_check
      _
    $region27: #{luna_encoder_layer.1} parent=1 // pred_check_branch
      %29 = sbr.rel (0) target = $region29
    $region28: #{luna_encoder_layer.1} parent=1 // pred_region
      _
    $region29: #{luna_encoder_layer.1} parent=1 // pred_fallthru
      _
    %v30 = vld [vmem:[%s0] sm:$0xff]
    %v31 = vld [vmem:[%s0 + $0x8] sm:$0xff]
    %v32 = vld [vmem:[%s0 + $0x10] sm:$0xff]
    %v33 = vld [vmem:[%s0 + $0x18] sm:$0xff]
    %v34 = vld [vmem:[%s1] sm:$0xff]
    %v35 = vld [vmem:[%s1 + $0x8] sm:$0xff]
    %v36 = vld [vmem:[%s2] sm:$0x3]
    %v37 = vld [vmem:[%s3] sm:$0x3]
    %v38 = vld [vmem:[%s4] sm:$0xff]
    %v39 = vld [vmem:[%s4 + $0x18] sm:$0xff]
    %v40 = vld [vmem:[%s4 + $0x30] sm:$0xff]
    %v41 = vld [vmem:[%s4 + $0x48] sm:$0xff]
    %v42 = vld [vmem:[%s5] sm:$0x1]
    %v44 = vlaneseq
    %v45 = vshrl.u32 %v44, 7
    %v46 = vsub.s32 0, %v45
    %v47 = vrot.slane %v42, %v46
    %vm49 = vcmask 261120
    %v51 = vsel %vm49, %v30, 0
    %v54 = vsel %vm49, %v31, 0
    %v57 = vsel %vm49, %v32, 0
    %v60 = vsel %vm49, %v33, 0
    %62 = vmatprep.subr.mxu0 0.0
    %63 = vmatpush1.msra.mxu0 0.0
    %64 = vmatprep.subr.mxu0 0.0
    %65 = vmatpush1.msra.mxu0 0.0
    %66 = vmatprep.subr.mxu0 0.0
    %67 = vmatpush1.msra.mxu0 0.0
    %68 = vmatprep.subr.mxu0 0.0
    %69 = vmatpush1.msra.mxu0 0.0
    %70 = vmatprep.subr.mxu0 0.0
    %71 = vmatpush1.msra.mxu0 0.0
    %72 = vmatprep.subr.mxu0 0.0
    %73 = vmatpush1.msra.mxu0 0.0
    %74 = vmatprep.subr.mxu0 0.0
    %75 = vmatpush1.msra.mxu0 0.0
    %76 = vmatprep.subr.mxu0 0.0
    %77 = vmatpush1.msra.mxu0 0.0
    %78 = vmatprep.subr.mxu0 0.0
    %79 = vmatpush1.msra.mxu0 0.0
    %80 = vmatprep.subr.mxu0 0.0
    %81 = vmatpush1.msra.mxu0 0.0
    %82 = vmatprep.subr.mxu0 0.0
    %83 = vmatpush1.msra.mxu0 0.0
    %84 = vmatprep.subr.mxu0 0.0
    %85 = vmatpush1.msra.mxu0 0.0
    %86 = vmatprep.subr.mxu0 0.0
    %87 = vmatpush1.msra.mxu0 %v41
    %88 = vmatprep.subr.mxu0 0.0
    %89 = vmatpush1.msra.mxu0 %v40
    %90 = vmatprep.subr.mxu0 0.0
    %91 = vmatpush1.msra.mxu0 %v39
    %92 = vmatprep.subr.mxu0 0.0
    %93 = vmatpush1.msra.mxu0 %v38
    %94 = vmatprep.subr.mxu0 0.0
    %95 = vmatpush2.msra.mxu0 0.0
    %96 = vmatprep.subr.mxu0 0.0
    %97 = vmatpush2.msra.mxu0 0.0
    %98 = vmatprep.subr.mxu0 0.0
    %99 = vmatpush2.msra.mxu0 0.0
    %100 = vmatprep.subr.mxu0 0.0
    %101 = vmatpush2.msra.mxu0 0.0
    %102 = vmatprep.subr.mxu0 0.0
    %103 = vmatpush2.msra.mxu0 0.0
    %104 = vmatprep.subr.mxu0 0.0
    %105 = vmatpush2.msra.mxu0 0.0
    %106 = vmatprep.subr.mxu0 0.0
    %107 = vmatpush2.msra.mxu0 0.0
    %108 = vmatprep.subr.mxu0 0.0
    %109 = vmatpush2.msra.mxu0 0.0
    %110 = vmatprep.subr.mxu0 0.0
    %111 = vmatpush2.msra.mxu0 0.0
    %112 = vmatprep.subr.mxu0 0.0
    %113 = vmatpush2.msra.mxu0 0.0
    %114 = vmatprep.subr.mxu0 0.0
    %115 = vmatpush2.msra.mxu0 0.0
    %116 = vmatprep.subr.mxu0 0.0
    %117 = vmatpush2.msra.mxu0 0.0
    %118 = vmatprep.subr.mxu0 0.0
    %119 = vmatpush2.msra.mxu0 0.0
    %120 = vmatprep.subr.mxu0 0.0
    %121 = vmatpush2.msra.mxu0 0.0
    %122 = vmatprep.subr.mxu0 0.0
    %123 = vmatpush2.msra.mxu0 0.0
    %124 = vmatprep.subr.mxu0 0.0
    %125 = vmatpush2.msra.mxu0 0.0
    %126 = vmatprep.mubr.f32.mxu0 0.0
    %127 = vmatmul.mubr.f32.gmra.mxu0 %v51
    %v128 = vpop.f32.mrf.mxu0
    %v129 = vadd.f32 %v47, %v128
    %v130 = vpop.f32.mrf.mxu0
    %131 = vmatprep.mubr.f32.mxu0 0.0
    %132 = vmatmul.mubr.f32.gmra.mxu0 %v54
    %v133 = vpop.f32.mrf.mxu0
    %v134 = vadd.f32 %v47, %v133
    %v135 = vpop.f32.mrf.mxu0
    %136 = vmatprep.mubr.f32.mxu0 0.0
    %137 = vmatmul.mubr.f32.gmra.mxu0 %v57
    %v138 = vpop.f32.mrf.mxu0
    %v139 = vadd.f32 %v47, %v138
    %v140 = vpop.f32.mrf.mxu0
    %141 = vmatprep.mubr.f32.mxu0 0.0
    %142 = vmatmul.mubr.f32.gmra.mxu0 %v60
    %v143 = vpop.f32.mrf.mxu0
    %v144 = vadd.f32 %v47, %v143
    %v145 = vpop.f32.mrf.mxu0
    %146 = vdwg.mxu0
    %151 = vrot.lane.b32.xlu0 %v38, 32
    %v152 = vpop.permute.xlu0 %151
    %153 = vrot.lane.b32.xlu0 %v39, 32
    %v154 = vpop.permute.xlu0 %153
    %155 = vrot.lane.b32.xlu0 %v40, 32
    %v156 = vpop.permute.xlu0 %155
    %157 = vrot.lane.b32.xlu0 %v41, 32
    %v158 = vpop.permute.xlu0 %157
    %163 = vrot.lane.b32.xlu0 %v47, 32
    %v164 = vpop.permute.xlu0 %163
    %v167 = vsel %vm49, %v34, 0
    %v170 = vsel %vm49, %v35, 0
    %172 = vmatprep.subr.mxu0 0.0
    %173 = vmatpush1.msra.mxu0 0.0
    %174 = vmatprep.subr.mxu0 0.0
    %175 = vmatpush1.msra.mxu0 0.0
    %176 = vmatprep.subr.mxu0 0.0
    %177 = vmatpush1.msra.mxu0 0.0
    %178 = vmatprep.subr.mxu0 0.0
    %179 = vmatpush1.msra.mxu0 0.0
    %180 = vmatprep.subr.mxu0 0.0
    %181 = vmatpush1.msra.mxu0 0.0
    %182 = vmatprep.subr.mxu0 0.0
    %183 = vmatpush1.msra.mxu0 0.0
    %184 = vmatprep.subr.mxu0 0.0
    %185 = vmatpush1.msra.mxu0 0.0
    %186 = vmatprep.subr.mxu0 0.0
    %187 = vmatpush1.msra.mxu0 0.0
    %188 = vmatprep.subr.mxu0 0.0
    %189 = vmatpush1.msra.mxu0 0.0
    %190 = vmatprep.subr.mxu0 0.0
    %191 = vmatpush1.msra.mxu0 0.0
    %192 = vmatprep.subr.mxu0 0.0
    %193 = vmatpush1.msra.mxu0 0.0
    %194 = vmatprep.subr.mxu0 0.0
    %195 = vmatpush1.msra.mxu0 0.0
    %196 = vmatprep.subr.mxu0 0.0
    %197 = vmatpush1.msra.mxu0 %v158
    %198 = vmatprep.subr.mxu0 0.0
    %199 = vmatpush1.msra.mxu0 %v156
    %200 = vmatprep.subr.mxu0 0.0
    %201 = vmatpush1.msra.mxu0 %v154
    %202 = vmatprep.subr.mxu0 0.0
    %203 = vmatpush1.msra.mxu0 %v152
    %204 = vmatprep.subr.mxu0 0.0
    %205 = vmatpush2.msra.mxu0 0.0
    %206 = vmatprep.subr.mxu0 0.0
    %207 = vmatpush2.msra.mxu0 0.0
    %208 = vmatprep.subr.mxu0 0.0
    %209 = vmatpush2.msra.mxu0 0.0
    %210 = vmatprep.subr.mxu0 0.0
    %211 = vmatpush2.msra.mxu0 0.0
    %212 = vmatprep.subr.mxu0 0.0
    %213 = vmatpush2.msra.mxu0 0.0
    %214 = vmatprep.subr.mxu0 0.0
    %215 = vmatpush2.msra.mxu0 0.0
    %216 = vmatprep.subr.mxu0 0.0
    %217 = vmatpush2.msra.mxu0 0.0
    %218 = vmatprep.subr.mxu0 0.0
    %219 = vmatpush2.msra.mxu0 0.0
    %220 = vmatprep.subr.mxu0 0.0
    %221 = vmatpush2.msra.mxu0 0.0
    %222 = vmatprep.subr.mxu0 0.0
    %223 = vmatpush2.msra.mxu0 0.0
    %224 = vmatprep.subr.mxu0 0.0
    %225 = vmatpush2.msra.mxu0 0.0
    %226 = vmatprep.subr.mxu0 0.0
    %227 = vmatpush2.msra.mxu0 0.0
    %228 = vmatprep.subr.mxu0 0.0
    %229 = vmatpush2.msra.mxu0 0.0
    %230 = vmatprep.subr.mxu0 0.0
    %231 = vmatpush2.msra.mxu0 0.0
    %232 = vmatprep.subr.mxu0 0.0
    %233 = vmatpush2.msra.mxu0 0.0
    %234 = vmatprep.subr.mxu0 0.0
    %235 = vmatpush2.msra.mxu0 0.0
    %236 = vmatprep.mubr.f32.mxu0 0.0
    %237 = vmatmul.mubr.f32.gmra.mxu0 %v167
    %v238 = vpop.f32.mrf.mxu0
    %v239 = vadd.f32 %v164, %v238
    %v240 = vpop.f32.mrf.mxu0
    %241 = vmatprep.mubr.f32.mxu0 0.0
    %242 = vmatmul.mubr.f32.gmra.mxu0 %v170
    %v243 = vpop.f32.mrf.mxu0
    %v244 = vadd.f32 %v164, %v243
    %v245 = vpop.f32.mrf.mxu0
    %246 = vdwg.mxu0
    %vm247 = vcmp.gt.f32.partialorder %v36, 0.5
    %vm248 = vcmask 64512
    %v250 = vsel %vm248, %v239, 0
    %v253 = vsel %vm248, %v129, 0
    %v256 = vsel %vm248, %v134, 0
    %258 = vmatprep.subr.mxu0 0.0
    %259 = vmatpush1.xpose.msra.mxu0 0.0
    %260 = vmatprep.subr.mxu0 0.0
    %261 = vmatpush1.xpose.msra.mxu0 0.0
    %262 = vmatprep.subr.mxu0 0.0
    %263 = vmatpush1.xpose.msra.mxu0 0.0
    %264 = vmatprep.subr.mxu0 0.0
    %265 = vmatpush1.xpose.msra.mxu0 0.0
    %266 = vmatprep.subr.mxu0 0.0
    %267 = vmatpush1.xpose.msra.mxu0 0.0
    %268 = vmatprep.subr.mxu0 0.0
    %269 = vmatpush1.xpose.msra.mxu0 0.0
    %270 = vmatprep.subr.mxu0 0.0
    %271 = vmatpush1.xpose.msra.mxu0 0.0
    %272 = vmatprep.subr.mxu0 0.0
    %273 = vmatpush1.xpose.msra.mxu0 0.0
    %274 = vmatprep.subr.mxu0 0.0
    %275 = vmatpush1.xpose.msra.mxu0 0.0
    %276 = vmatprep.subr.mxu0 0.0
    %277 = vmatpush1.xpose.msra.mxu0 0.0
    %278 = vmatprep.subr.mxu0 0.0
    %279 = vmatpush1.xpose.msra.mxu0 0.0
    %280 = vmatprep.subr.mxu0 0.0
    %281 = vmatpush1.xpose.msra.mxu0 0.0
    %282 = vmatprep.subr.mxu0 0.0
    %283 = vmatpush1.xpose.msra.mxu0 0.0
    %284 = vmatprep.subr.mxu0 0.0
    %285 = vmatpush1.xpose.msra.mxu0 0.0
    %286 = vmatprep.subr.mxu0 0.0
    %287 = vmatpush1.xpose.msra.mxu0 %v256
    %288 = vmatprep.subr.mxu0 0.0
    %289 = vmatpush1.xpose.msra.mxu0 %v253
    %290 = vmatprep.subr.mxu0 0.0
    %291 = vmatpush2.xpose.msra.mxu0 0.0
    %292 = vmatprep.subr.mxu0 0.0
    %293 = vmatpush2.xpose.msra.mxu0 0.0
    %294 = vmatprep.subr.mxu0 0.0
    %295 = vmatpush2.xpose.msra.mxu0 0.0
    %296 = vmatprep.subr.mxu0 0.0
    %297 = vmatpush2.xpose.msra.mxu0 0.0
    %298 = vmatprep.subr.mxu0 0.0
    %299 = vmatpush2.xpose.msra.mxu0 0.0
    %300 = vmatprep.subr.mxu0 0.0
    %301 = vmatpush2.xpose.msra.mxu0 0.0
    %302 = vmatprep.subr.mxu0 0.0
    %303 = vmatpush2.xpose.msra.mxu0 0.0
    %304 = vmatprep.subr.mxu0 0.0
    %305 = vmatpush2.xpose.msra.mxu0 0.0
    %306 = vmatprep.subr.mxu0 0.0
    %307 = vmatpush2.xpose.msra.mxu0 0.0
    %308 = vmatprep.subr.mxu0 0.0
    %309 = vmatpush2.xpose.msra.mxu0 0.0
    %310 = vmatprep.subr.mxu0 0.0
    %311 = vmatpush2.xpose.msra.mxu0 0.0
    %312 = vmatprep.subr.mxu0 0.0
    %313 = vmatpush2.xpose.msra.mxu0 0.0
    %314 = vmatprep.subr.mxu0 0.0
    %315 = vmatpush2.xpose.msra.mxu0 0.0
    %316 = vmatprep.subr.mxu0 0.0
    %317 = vmatpush2.xpose.msra.mxu0 0.0
    %318 = vmatprep.subr.mxu0 0.0
    %319 = vmatpush2.xpose.msra.mxu0 0.0
    %320 = vmatprep.subr.mxu0 0.0
    %321 = vmatpush2.xpose.msra.mxu0 0.0
    %322 = vmatprep.mubr.f32.mxu0 0.0
    %323 = vmatmul.mubr.f32.gmra.mxu0 %v250
    %v324 = vpop.f32.mrf.mxu0
    %v325 = vadd.f32 0.0, %v324
    %v326 = vpop.f32.mrf.mxu0
    %327 = vdwg.mxu0
    %v328 = vsel %vm247, 1, 0
    %v329 = vlaneseq
    %v330 = vshrl.u32 %v329, 7
    %v331 = vsub.s32 0, %v330
    %v332 = vrot.slane %v328, %v331
    %vm333 = vcmp.eq.s32.totalorder %v332, 1
    %v334 = vsel %vm333, -10000.0, %v325
    %vm335 = vcmask 130048
    %v336 = vsel %vm335, %v334, -inf
    %337 = vmax.xlane.f32.xlu0 %v336
    %v338 = vpop.xlane.xlu0 %337
    %v339 = vsub.f32 %v334, %v338
    %v340 = vmul.f32 %v339, 1.442695
    %v341 = vpow.pop %v340
    %v342 = vsel %vm335, %v341, 0.0
    %343 = vadd.xlane.f32.xlu0 %v342
    %v344 = vpop.xlane.xlu0 %343
    %v345 = vrcp.pop %v344
    %346 = vrot.lane.b32.xlu0 %v129, 96
    %v347 = vpop.permute.xlu0 %346
    %348 = vrot.lane.b32.xlu0 %v134, 96
    %v349 = vpop.permute.xlu0 %348
    %v353 = vsel %vm335, %v341, 0
    %355 = vmatprep.subr.mxu0 0.0
    %356 = vmatpush1.msra.mxu0 0.0
    %357 = vmatprep.subr.mxu0 0.0
    %358 = vmatpush1.msra.mxu0 0.0
    %359 = vmatprep.subr.mxu0 0.0
    %360 = vmatpush1.msra.mxu0 0.0
    %361 = vmatprep.subr.mxu0 0.0
    %362 = vmatpush1.msra.mxu0 0.0
    %363 = vmatprep.subr.mxu0 0.0
    %364 = vmatpush1.msra.mxu0 0.0
    %365 = vmatprep.subr.mxu0 0.0
    %366 = vmatpush1.msra.mxu0 0.0
    %367 = vmatprep.subr.mxu0 0.0
    %368 = vmatpush1.msra.mxu0 0.0
    %369 = vmatprep.subr.mxu0 0.0
    %370 = vmatpush1.msra.mxu0 0.0
    %371 = vmatprep.subr.mxu0 0.0
    %372 = vmatpush1.msra.mxu0 0.0
    %373 = vmatprep.subr.mxu0 0.0
    %374 = vmatpush1.msra.mxu0 0.0
    %375 = vmatprep.subr.mxu0 0.0
    %376 = vmatpush1.msra.mxu0 0.0
    %377 = vmatprep.subr.mxu0 0.0
    %378 = vmatpush1.msra.mxu0 0.0
    %379 = vmatprep.subr.mxu0 0.0
    %380 = vmatpush1.msra.mxu0 0.0
    %381 = vmatprep.subr.mxu0 0.0
    %382 = vmatpush1.msra.mxu0 0.0
    %383 = vmatprep.subr.mxu0 0.0
    %384 = vmatpush1.msra.mxu0 %v349
    %385 = vmatprep.subr.mxu0 0.0
    %386 = vmatpush1.msra.mxu0 %v347
    %387 = vmatprep.subr.mxu0 0.0
    %388 = vmatpush2.msra.mxu0 0.0
    %389 = vmatprep.subr.mxu0 0.0
    %390 = vmatpush2.msra.mxu0 0.0
    %391 = vmatprep.subr.mxu0 0.0
    %392 = vmatpush2.msra.mxu0 0.0
    %393 = vmatprep.subr.mxu0 0.0
    %394 = vmatpush2.msra.mxu0 0.0
    %395 = vmatprep.subr.mxu0 0.0
    %396 = vmatpush2.msra.mxu0 0.0
    %397 = vmatprep.subr.mxu0 0.0
    %398 = vmatpush2.msra.mxu0 0.0
    %399 = vmatprep.subr.mxu0 0.0
    %400 = vmatpush2.msra.mxu0 0.0
    %401 = vmatprep.subr.mxu0 0.0
    %402 = vmatpush2.msra.mxu0 0.0
    %403 = vmatprep.subr.mxu0 0.0
    %404 = vmatpush2.msra.mxu0 0.0
    %405 = vmatprep.subr.mxu0 0.0
    %406 = vmatpush2.msra.mxu0 0.0
    %407 = vmatprep.subr.mxu0 0.0
    %408 = vmatpush2.msra.mxu0 0.0
    %409 = vmatprep.subr.mxu0 0.0
    %410 = vmatpush2.msra.mxu0 0.0
    %411 = vmatprep.subr.mxu0 0.0
    %412 = vmatpush2.msra.mxu0 0.0
    %413 = vmatprep.subr.mxu0 0.0
    %414 = vmatpush2.msra.mxu0 0.0
    %415 = vmatprep.subr.mxu0 0.0
    %416 = vmatpush2.msra.mxu0 0.0
    %417 = vmatprep.subr.mxu0 0.0
    %418 = vmatpush2.msra.mxu0 0.0
    %419 = vmatprep.mubr.f32.mxu0 0.0
    %420 = vmatmul.mubr.f32.gmra.mxu0 %v353
    %v421 = vpop.f32.mrf.mxu0
    %v422 = vadd.f32 0.0, %v421
    %v423 = vpop.f32.mrf.mxu0
    %424 = vdwg.mxu0
    %v425 = vmul.f32 %v422, %v345
    %426 = vst.msk [vmem:[#allocation2] sm:$0xff] %vm248, %v425
    %427 = vrot.lane.b32.xlu0 %v239, 120
    %v428 = vpop.permute.xlu0 %427
    %429 = vrot.lane.b32.xlu0 %v129, 120
    %v430 = vpop.permute.xlu0 %429
    %431 = vrot.lane.b32.xlu0 %v134, 120
    %v432 = vpop.permute.xlu0 %431
    %v433 = vsel %vm248, %v428, 0
    %v435 = vsel %vm248, %v430, 0
    %v437 = vsel %vm248, %v432, 0
    %439 = vmatprep.subr.mxu0 0.0
    %440 = vmatpush1.xpose.msra.mxu0 0.0
    %441 = vmatprep.subr.mxu0 0.0
    %442 = vmatpush1.xpose.msra.mxu0 0.0
    %443 = vmatprep.subr.mxu0 0.0
    %444 = vmatpush1.xpose.msra.mxu0 0.0
    %445 = vmatprep.subr.mxu0 0.0
    %446 = vmatpush1.xpose.msra.mxu0 0.0
    %447 = vmatprep.subr.mxu0 0.0
    %448 = vmatpush1.xpose.msra.mxu0 0.0
    %449 = vmatprep.subr.mxu0 0.0
    %450 = vmatpush1.xpose.msra.mxu0 0.0
    %451 = vmatprep.subr.mxu0 0.0
    %452 = vmatpush1.xpose.msra.mxu0 0.0
    %453 = vmatprep.subr.mxu0 0.0
    %454 = vmatpush1.xpose.msra.mxu0 0.0
    %455 = vmatprep.subr.mxu0 0.0
    %456 = vmatpush1.xpose.msra.mxu0 0.0
    %457 = vmatprep.subr.mxu0 0.0
    %458 = vmatpush1.xpose.msra.mxu0 0.0
    %459 = vmatprep.subr.mxu0 0.0
    %460 = vmatpush1.xpose.msra.mxu0 0.0
    %461 = vmatprep.subr.mxu0 0.0
    %462 = vmatpush1.xpose.msra.mxu0 0.0
    %463 = vmatprep.subr.mxu0 0.0
    %464 = vmatpush1.xpose.msra.mxu0 0.0
    %465 = vmatprep.subr.mxu0 0.0
    %466 = vmatpush1.xpose.msra.mxu0 0.0
    %467 = vmatprep.subr.mxu0 0.0
    %468 = vmatpush1.xpose.msra.mxu0 %v437
    %469 = vmatprep.subr.mxu0 0.0
    %470 = vmatpush1.xpose.msra.mxu0 %v435
    %471 = vmatprep.subr.mxu0 0.0
    %472 = vmatpush2.xpose.msra.mxu0 0.0
    %473 = vmatprep.subr.mxu0 0.0
    %474 = vmatpush2.xpose.msra.mxu0 0.0
    %475 = vmatprep.subr.mxu0 0.0
    %476 = vmatpush2.xpose.msra.mxu0 0.0
    %477 = vmatprep.subr.mxu0 0.0
    %478 = vmatpush2.xpose.msra.mxu0 0.0
    %479 = vmatprep.subr.mxu0 0.0
    %480 = vmatpush2.xpose.msra.mxu0 0.0
    %481 = vmatprep.subr.mxu0 0.0
    %482 = vmatpush2.xpose.msra.mxu0 0.0
    %483 = vmatprep.subr.mxu0 0.0
    %484 = vmatpush2.xpose.msra.mxu0 0.0
    %485 = vmatprep.subr.mxu0 0.0
    %486 = vmatpush2.xpose.msra.mxu0 0.0
    %487 = vmatprep.subr.mxu0 0.0
    %488 = vmatpush2.xpose.msra.mxu0 0.0
    %489 = vmatprep.subr.mxu0 0.0
    %490 = vmatpush2.xpose.msra.mxu0 0.0
    %491 = vmatprep.subr.mxu0 0.0
    %492 = vmatpush2.xpose.msra.mxu0 0.0
    %493 = vmatprep.subr.mxu0 0.0
    %494 = vmatpush2.xpose.msra.mxu0 0.0
    %495 = vmatprep.subr.mxu0 0.0
    %496 = vmatpush2.xpose.msra.mxu0 0.0
    %497 = vmatprep.subr.mxu0 0.0
    %498 = vmatpush2.xpose.msra.mxu0 0.0
    %499 = vmatprep.subr.mxu0 0.0
    %500 = vmatpush2.xpose.msra.mxu0 0.0
    %501 = vmatprep.subr.mxu0 0.0
    %502 = vmatpush2.xpose.msra.mxu0 0.0
    %503 = vmatprep.mubr.f32.mxu0 0.0
    %504 = vmatmul.mubr.f32.gmra.mxu0 %v433
    %v505 = vpop.f32.mrf.mxu0
    %v506 = vadd.f32 0.0, %v505
    %v507 = vpop.f32.mrf.mxu0
    %508 = vdwg.mxu0
    %v509 = vsel %vm333, -10000.0, %v506
    %v510 = vsel %vm335, %v509, -inf
    %511 = vmax.xlane.f32.xlu0 %v510
    %v512 = vpop.xlane.xlu0 %511
    %v513 = vsub.f32 %v509, %v512
    %v514 = vmul.f32 %v513, 1.442695
    %v515 = vpow.pop %v514
    %v516 = vsel %vm335, %v515, 0.0
    %517 = vadd.xlane.f32.xlu0 %v516
    %v518 = vpop.xlane.xlu0 %517
    %v519 = vrcp.pop %v518
    %520 = vrot.lane.b32.xlu0 %v129, 88
    %v521 = vpop.permute.xlu0 %520
    %522 = vrot.lane.b32.xlu0 %v134, 88
    %v523 = vpop.permute.xlu0 %522
    %v527 = vsel %vm335, %v515, 0
    %529 = vmatprep.subr.mxu0 0.0
    %530 = vmatpush1.msra.mxu0 0.0
    %531 = vmatprep.subr.mxu0 0.0
    %532 = vmatpush1.msra.mxu0 0.0
    %533 = vmatprep.subr.mxu0 0.0
    %534 = vmatpush1.msra.mxu0 0.0
    %535 = vmatprep.subr.mxu0 0.0
    %536 = vmatpush1.msra.mxu0 0.0
    %537 = vmatprep.subr.mxu0 0.0
    %538 = vmatpush1.msra.mxu0 0.0
    %539 = vmatprep.subr.mxu0 0.0
    %540 = vmatpush1.msra.mxu0 0.0
    %541 = vmatprep.subr.mxu0 0.0
    %542 = vmatpush1.msra.mxu0 0.0
    %543 = vmatprep.subr.mxu0 0.0
    %544 = vmatpush1.msra.mxu0 0.0
    %545 = vmatprep.subr.mxu0 0.0
    %546 = vmatpush1.msra.mxu0 0.0
    %547 = vmatprep.subr.mxu0 0.0
    %548 = vmatpush1.msra.mxu0 0.0
    %549 = vmatprep.subr.mxu0 0.0
    %550 = vmatpush1.msra.mxu0 0.0
    %551 = vmatprep.subr.mxu0 0.0
    %552 = vmatpush1.msra.mxu0 0.0
    %553 = vmatprep.subr.mxu0 0.0
    %554 = vmatpush1.msra.mxu0 0.0
    %555 = vmatprep.subr.mxu0 0.0
    %556 = vmatpush1.msra.mxu0 0.0
    %557 = vmatprep.subr.mxu0 0.0
    %558 = vmatpush1.msra.mxu0 %v523
    %559 = vmatprep.subr.mxu0 0.0
    %560 = vmatpush1.msra.mxu0 %v521
    %561 = vmatprep.subr.mxu0 0.0
    %562 = vmatpush2.msra.mxu0 0.0
    %563 = vmatprep.subr.mxu0 0.0
    %564 = vmatpush2.msra.mxu0 0.0
    %565 = vmatprep.subr.mxu0 0.0
    %566 = vmatpush2.msra.mxu0 0.0
    %567 = vmatprep.subr.mxu0 0.0
    %568 = vmatpush2.msra.mxu0 0.0
    %569 = vmatprep.subr.mxu0 0.0
    %570 = vmatpush2.msra.mxu0 0.0
    %571 = vmatprep.subr.mxu0 0.0
    %572 = vmatpush2.msra.mxu0 0.0
    %573 = vmatprep.subr.mxu0 0.0
    %574 = vmatpush2.msra.mxu0 0.0
    %575 = vmatprep.subr.mxu0 0.0
    %576 = vmatpush2.msra.mxu0 0.0
    %577 = vmatprep.subr.mxu0 0.0
    %578 = vmatpush2.msra.mxu0 0.0
    %579 = vmatprep.subr.mxu0 0.0
    %580 = vmatpush2.msra.mxu0 0.0
    %581 = vmatprep.subr.mxu0 0.0
    %582 = vmatpush2.msra.mxu0 0.0
    %583 = vmatprep.subr.mxu0 0.0
    %584 = vmatpush2.msra.mxu0 0.0
    %585 = vmatprep.subr.mxu0 0.0
    %586 = vmatpush2.msra.mxu0 0.0
    %587 = vmatprep.subr.mxu0 0.0
    %588 = vmatpush2.msra.mxu0 0.0
    %589 = vmatprep.subr.mxu0 0.0
    %590 = vmatpush2.msra.mxu0 0.0
    %591 = vmatprep.subr.mxu0 0.0
    %592 = vmatpush2.msra.mxu0 0.0
    %593 = vmatprep.mubr.f32.mxu0 0.0
    %594 = vmatmul.mubr.f32.gmra.mxu0 %v527
    %v595 = vpop.f32.mrf.mxu0
    %v596 = vadd.f32 0.0, %v595
    %v597 = vpop.f32.mrf.mxu0
    %598 = vdwg.mxu0
    %v599 = vmul.f32 %v596, %v519
    %601 = vrot.lane.b32.xlu0 %v599, 8
    %v602 = vpop.permute.xlu0 %601
    %vm604 = vcmask 130112
    %605 = vst.msk [vmem:[#allocation2] sm:$0xff] %vm604, %v602
    %606 = vrot.lane.b32.xlu0 %v239, 112
    %v607 = vpop.permute.xlu0 %606
    %608 = vrot.lane.b32.xlu0 %v129, 112
    %v609 = vpop.permute.xlu0 %608
    %610 = vrot.lane.b32.xlu0 %v134, 112
    %v611 = vpop.permute.xlu0 %610
    %v612 = vsel %vm248, %v607, 0
    %v614 = vsel %vm248, %v609, 0
    %v616 = vsel %vm248, %v611, 0
    %618 = vmatprep.subr.mxu0 0.0
    %619 = vmatpush1.xpose.msra.mxu0 0.0
    %620 = vmatprep.subr.mxu0 0.0
    %621 = vmatpush1.xpose.msra.mxu0 0.0
    %622 = vmatprep.subr.mxu0 0.0
    %623 = vmatpush1.xpose.msra.mxu0 0.0
    %624 = vmatprep.subr.mxu0 0.0
    %625 = vmatpush1.xpose.msra.mxu0 0.0
    %626 = vmatprep.subr.mxu0 0.0
    %627 = vmatpush1.xpose.msra.mxu0 0.0
    %628 = vmatprep.subr.mxu0 0.0
    %629 = vmatpush1.xpose.msra.mxu0 0.0
    %630 = vmatprep.subr.mxu0 0.0
    %631 = vmatpush1.xpose.msra.mxu0 0.0
    %632 = vmatprep.subr.mxu0 0.0
    %633 = vmatpush1.xpose.msra.mxu0 0.0
    %634 = vmatprep.subr.mxu0 0.0
    %635 = vmatpush1.xpose.msra.mxu0 0.0
    %636 = vmatprep.subr.mxu0 0.0
    %637 = vmatpush1.xpose.msra.mxu0 0.0
    %638 = vmatprep.subr.mxu0 0.0
    %639 = vmatpush1.xpose.msra.mxu0 0.0
    %640 = vmatprep.subr.mxu0 0.0
    %641 = vmatpush1.xpose.msra.mxu0 0.0
    %642 = vmatprep.subr.mxu0 0.0
    %643 = vmatpush1.xpose.msra.mxu0 0.0
    %644 = vmatprep.subr.mxu0 0.0
    %645 = vmatpush1.xpose.msra.mxu0 0.0
    %646 = vmatprep.subr.mxu0 0.0
    %647 = vmatpush1.xpose.msra.mxu0 %v616
    %648 = vmatprep.subr.mxu0 0.0
    %649 = vmatpush1.xpose.msra.mxu0 %v614
    %650 = vmatprep.subr.mxu0 0.0
    %651 = vmatpush2.xpose.msra.mxu0 0.0
    %652 = vmatprep.subr.mxu0 0.0
    %653 = vmatpush2.xpose.msra.mxu0 0.0
    %654 = vmatprep.subr.mxu0 0.0
    %655 = vmatpush2.xpose.msra.mxu0 0.0
    %656 = vmatprep.subr.mxu0 0.0
    %657 = vmatpush2.xpose.msra.mxu0 0.0
    %658 = vmatprep.subr.mxu0 0.0
    %659 = vmatpush2.xpose.msra.mxu0 0.0
    %660 = vmatprep.subr.mxu0 0.0
    %661 = vmatpush2.xpose.msra.mxu0 0.0
    %662 = vmatprep.subr.mxu0 0.0
    %663 = vmatpush2.xpose.msra.mxu0 0.0
    %664 = vmatprep.subr.mxu0 0.0
    %665 = vmatpush2.xpose.msra.mxu0 0.0
    %666 = vmatprep.subr.mxu0 0.0
    %667 = vmatpush2.xpose.msra.mxu0 0.0
    %668 = vmatprep.subr.mxu0 0.0
    %669 = vmatpush2.xpose.msra.mxu0 0.0
    %670 = vmatprep.subr.mxu0 0.0
    %671 = vmatpush2.xpose.msra.mxu0 0.0
    %672 = vmatprep.subr.mxu0 0.0
    %673 = vmatpush2.xpose.msra.mxu0 0.0
    %674 = vmatprep.subr.mxu0 0.0
    %675 = vmatpush2.xpose.msra.mxu0 0.0
    %676 = vmatprep.subr.mxu0 0.0
    %677 = vmatpush2.xpose.msra.mxu0 0.0
    %678 = vmatprep.subr.mxu0 0.0
    %679 = vmatpush2.xpose.msra.mxu0 0.0
    %680 = vmatprep.subr.mxu0 0.0
    %681 = vmatpush2.xpose.msra.mxu0 0.0
    %682 = vmatprep.mubr.f32.mxu0 0.0
    %683 = vmatmul.mubr.f32.gmra.mxu0 %v612
    %v684 = vpop.f32.mrf.mxu0
    %v685 = vadd.f32 0.0, %v684
    %v686 = vpop.f32.mrf.mxu0
    %687 = vdwg.mxu0
    %v688 = vsel %vm333, -10000.0, %v685
    %v689 = vsel %vm335, %v688, -inf
    %690 = vmax.xlane.f32.xlu0 %v689
    %v691 = vpop.xlane.xlu0 %690
    %v692 = vsub.f32 %v688, %v691
    %v693 = vmul.f32 %v692, 1.442695
    %v694 = vpow.pop %v693
    %v695 = vsel %vm335, %v694, 0.0
    %696 = vadd.xlane.f32.xlu0 %v695
    %v697 = vpop.xlane.xlu0 %696
    %v698 = vrcp.pop %v697
    %699 = vrot.lane.b32.xlu0 %v129, 80
    %v700 = vpop.permute.xlu0 %699
    %701 = vrot.lane.b32.xlu0 %v134, 80
    %v702 = vpop.permute.xlu0 %701
    %v706 = vsel %vm335, %v694, 0
    %708 = vmatprep.subr.mxu0 0.0
    %709 = vmatpush1.msra.mxu0 0.0
    %710 = vmatprep.subr.mxu0 0.0
    %711 = vmatpush1.msra.mxu0 0.0
    %712 = vmatprep.subr.mxu0 0.0
    %713 = vmatpush1.msra.mxu0 0.0
    %714 = vmatprep.subr.mxu0 0.0
    %715 = vmatpush1.msra.mxu0 0.0
    %716 = vmatprep.subr.mxu0 0.0
    %717 = vmatpush1.msra.mxu0 0.0
    %718 = vmatprep.subr.mxu0 0.0
    %719 = vmatpush1.msra.mxu0 0.0
    %720 = vmatprep.subr.mxu0 0.0
    %721 = vmatpush1.msra.mxu0 0.0
    %722 = vmatprep.subr.mxu0 0.0
    %723 = vmatpush1.msra.mxu0 0.0
    %724 = vmatprep.subr.mxu0 0.0
    %725 = vmatpush1.msra.mxu0 0.0
    %726 = vmatprep.subr.mxu0 0.0
    %727 = vmatpush1.msra.mxu0 0.0
    %728 = vmatprep.subr.mxu0 0.0
    %729 = vmatpush1.msra.mxu0 0.0
    %730 = vmatprep.subr.mxu0 0.0
    %731 = vmatpush1.msra.mxu0 0.0
    %732 = vmatprep.subr.mxu0 0.0
    %733 = vmatpush1.msra.mxu0 0.0
    %734 = vmatprep.subr.mxu0 0.0
    %735 = vmatpush1.msra.mxu0 0.0
    %736 = vmatprep.subr.mxu0 0.0
    %737 = vmatpush1.msra.mxu0 %v702
    %738 = vmatprep.subr.mxu0 0.0
    %739 = vmatpush1.msra.mxu0 %v700
    %740 = vmatprep.subr.mxu0 0.0
    %741 = vmatpush2.msra.mxu0 0.0
    %742 = vmatprep.subr.mxu0 0.0
    %743 = vmatpush2.msra.mxu0 0.0
    %744 = vmatprep.subr.mxu0 0.0
    %745 = vmatpush2.msra.mxu0 0.0
    %746 = vmatprep.subr.mxu0 0.0
    %747 = vmatpush2.msra.mxu0 0.0
    %748 = vmatprep.subr.mxu0 0.0
    %749 = vmatpush2.msra.mxu0 0.0
    %750 = vmatprep.subr.mxu0 0.0
    %751 = vmatpush2.msra.mxu0 0.0
    %752 = vmatprep.subr.mxu0 0.0
    %753 = vmatpush2.msra.mxu0 0.0
    %754 = vmatprep.subr.mxu0 0.0
    %755 = vmatpush2.msra.mxu0 0.0
    %756 = vmatprep.subr.mxu0 0.0
    %757 = vmatpush2.msra.mxu0 0.0
    %758 = vmatprep.subr.mxu0 0.0
    %759 = vmatpush2.msra.mxu0 0.0
    %760 = vmatprep.subr.mxu0 0.0
    %761 = vmatpush2.msra.mxu0 0.0
    %762 = vmatprep.subr.mxu0 0.0
    %763 = vmatpush2.msra.mxu0 0.0
    %764 = vmatprep.subr.mxu0 0.0
    %765 = vmatpush2.msra.mxu0 0.0
    %766 = vmatprep.subr.mxu0 0.0
    %767 = vmatpush2.msra.mxu0 0.0
    %768 = vmatprep.subr.mxu0 0.0
    %769 = vmatpush2.msra.mxu0 0.0
    %770 = vmatprep.subr.mxu0 0.0
    %771 = vmatpush2.msra.mxu0 0.0
    %772 = vmatprep.mubr.f32.mxu0 0.0
    %773 = vmatmul.mubr.f32.gmra.mxu0 %v706
    %v774 = vpop.f32.mrf.mxu0
    %v775 = vadd.f32 0.0, %v774
    %v776 = vpop.f32.mrf.mxu0
    %777 = vdwg.mxu0
    %v778 = vmul.f32 %v775, %v698
    %780 = vrot.lane.b32.xlu0 %v778, 16
    %v781 = vpop.permute.xlu0 %780
    %vm783 = vcmask 195712
    %784 = vst.msk [vmem:[#allocation2] sm:$0xff] %vm783, %v781
    %785 = vrot.lane.b32.xlu0 %v239, 104
    %v786 = vpop.permute.xlu0 %785
    %787 = vrot.lane.b32.xlu0 %v129, 104
    %v788 = vpop.permute.xlu0 %787
    %789 = vrot.lane.b32.xlu0 %v134, 104
    %v790 = vpop.permute.xlu0 %789
    %v791 = vsel %vm248, %v786, 0
    %v793 = vsel %vm248, %v788, 0
    %v795 = vsel %vm248, %v790, 0
    %797 = vmatprep.subr.mxu0 0.0
    %798 = vmatpush1.xpose.msra.mxu0 0.0
    %799 = vmatprep.subr.mxu0 0.0
    %800 = vmatpush1.xpose.msra.mxu0 0.0
    %801 = vmatprep.subr.mxu0 0.0
    %802 = vmatpush1.xpose.msra.mxu0 0.0
    %803 = vmatprep.subr.mxu0 0.0
    %804 = vmatpush1.xpose.msra.mxu0 0.0
    %805 = vmatprep.subr.mxu0 0.0
    %806 = vmatpush1.xpose.msra.mxu0 0.0
    %807 = vmatprep.subr.mxu0 0.0
    %808 = vmatpush1.xpose.msra.mxu0 0.0
    %809 = vmatprep.subr.mxu0 0.0
    %810 = vmatpush1.xpose.msra.mxu0 0.0
    %811 = vmatprep.subr.mxu0 0.0
    %812 = vmatpush1.xpose.msra.mxu0 0.0
    %813 = vmatprep.subr.mxu0 0.0
    %814 = vmatpush1.xpose.msra.mxu0 0.0
    %815 = vmatprep.subr.mxu0 0.0
    %816 = vmatpush1.xpose.msra.mxu0 0.0
    %817 = vmatprep.subr.mxu0 0.0
    %818 = vmatpush1.xpose.msra.mxu0 0.0
    %819 = vmatprep.subr.mxu0 0.0
    %820 = vmatpush1.xpose.msra.mxu0 0.0
    %821 = vmatprep.subr.mxu0 0.0
    %822 = vmatpush1.xpose.msra.mxu0 0.0
    %823 = vmatprep.subr.mxu0 0.0
    %824 = vmatpush1.xpose.msra.mxu0 0.0
    %825 = vmatprep.subr.mxu0 0.0
    %826 = vmatpush1.xpose.msra.mxu0 %v795
    %827 = vmatprep.subr.mxu0 0.0
    %828 = vmatpush1.xpose.msra.mxu0 %v793
    %829 = vmatprep.subr.mxu0 0.0
    %830 = vmatpush2.xpose.msra.mxu0 0.0
    %831 = vmatprep.subr.mxu0 0.0
    %832 = vmatpush2.xpose.msra.mxu0 0.0
    %833 = vmatprep.subr.mxu0 0.0
    %834 = vmatpush2.xpose.msra.mxu0 0.0
    %835 = vmatprep.subr.mxu0 0.0
    %836 = vmatpush2.xpose.msra.mxu0 0.0
    %837 = vmatprep.subr.mxu0 0.0
    %838 = vmatpush2.xpose.msra.mxu0 0.0
    %839 = vmatprep.subr.mxu0 0.0
    %840 = vmatpush2.xpose.msra.mxu0 0.0
    %841 = vmatprep.subr.mxu0 0.0
    %842 = vmatpush2.xpose.msra.mxu0 0.0
    %843 = vmatprep.subr.mxu0 0.0
    %844 = vmatpush2.xpose.msra.mxu0 0.0
    %845 = vmatprep.subr.mxu0 0.0
    %846 = vmatpush2.xpose.msra.mxu0 0.0
    %847 = vmatprep.subr.mxu0 0.0
    %848 = vmatpush2.xpose.msra.mxu0 0.0
    %849 = vmatprep.subr.mxu0 0.0
    %850 = vmatpush2.xpose.msra.mxu0 0.0
    %851 = vmatprep.subr.mxu0 0.0
    %852 = vmatpush2.xpose.msra.mxu0 0.0
    %853 = vmatprep.subr.mxu0 0.0
    %854 = vmatpush2.xpose.msra.mxu0 0.0
    %855 = vmatprep.subr.mxu0 0.0
    %856 = vmatpush2.xpose.msra.mxu0 0.0
    %857 = vmatprep.subr.mxu0 0.0
    %858 = vmatpush2.xpose.msra.mxu0 0.0
    %859 = vmatprep.subr.mxu0 0.0
    %860 = vmatpush2.xpose.msra.mxu0 0.0
    %861 = vmatprep.mubr.f32.mxu0 0.0
    %862 = vmatmul.mubr.f32.gmra.mxu0 %v791
    %v863 = vpop.f32.mrf.mxu0
    %v864 = vadd.f32 0.0, %v863
    %v865 = vpop.f32.mrf.mxu0
    %866 = vdwg.mxu0
    %v867 = vsel %vm333, -10000.0, %v864
    %v868 = vsel %vm335, %v867, -inf
    %869 = vmax.xlane.f32.xlu0 %v868
    %v870 = vpop.xlane.xlu0 %869
    %v871 = vsub.f32 %v867, %v870
    %v872 = vmul.f32 %v871, 1.442695
    %v873 = vpow.pop %v872
    %v874 = vsel %vm335, %v873, 0.0
    %875 = vadd.xlane.f32.xlu0 %v874
    %v876 = vpop.xlane.xlu0 %875
    %v877 = vrcp.pop %v876
    %878 = vrot.lane.b32.xlu0 %v129, 72
    %v879 = vpop.permute.xlu0 %878
    %880 = vrot.lane.b32.xlu0 %v134, 72
    %v881 = vpop.permute.xlu0 %880
    %v885 = vsel %vm335, %v873, 0
    %887 = vmatprep.subr.mxu0 0.0
    %888 = vmatpush1.msra.mxu0 0.0
    %889 = vmatprep.subr.mxu0 0.0
    %890 = vmatpush1.msra.mxu0 0.0
    %891 = vmatprep.subr.mxu0 0.0
    %892 = vmatpush1.msra.mxu0 0.0
    %893 = vmatprep.subr.mxu0 0.0
    %894 = vmatpush1.msra.mxu0 0.0
    %895 = vmatprep.subr.mxu0 0.0
    %896 = vmatpush1.msra.mxu0 0.0
    %897 = vmatprep.subr.mxu0 0.0
    %898 = vmatpush1.msra.mxu0 0.0
    %899 = vmatprep.subr.mxu0 0.0
    %900 = vmatpush1.msra.mxu0 0.0
    %901 = vmatprep.subr.mxu0 0.0
    %902 = vmatpush1.msra.mxu0 0.0
    %903 = vmatprep.subr.mxu0 0.0
    %904 = vmatpush1.msra.mxu0 0.0
    %905 = vmatprep.subr.mxu0 0.0
    %906 = vmatpush1.msra.mxu0 0.0
    %907 = vmatprep.subr.mxu0 0.0
    %908 = vmatpush1.msra.mxu0 0.0
    %909 = vmatprep.subr.mxu0 0.0
    %910 = vmatpush1.msra.mxu0 0.0
    %911 = vmatprep.subr.mxu0 0.0
    %912 = vmatpush1.msra.mxu0 0.0
    %913 = vmatprep.subr.mxu0 0.0
    %914 = vmatpush1.msra.mxu0 0.0
    %915 = vmatprep.subr.mxu0 0.0
    %916 = vmatpush1.msra.mxu0 %v881
    %917 = vmatprep.subr.mxu0 0.0
    %918 = vmatpush1.msra.mxu0 %v879
    %919 = vmatprep.subr.mxu0 0.0
    %920 = vmatpush2.msra.mxu0 0.0
    %921 = vmatprep.subr.mxu0 0.0
    %922 = vmatpush2.msra.mxu0 0.0
    %923 = vmatprep.subr.mxu0 0.0
    %924 = vmatpush2.msra.mxu0 0.0
    %925 = vmatprep.subr.mxu0 0.0
    %926 = vmatpush2.msra.mxu0 0.0
    %927 = vmatprep.subr.mxu0 0.0
    %928 = vmatpush2.msra.mxu0 0.0
    %929 = vmatprep.subr.mxu0 0.0
    %930 = vmatpush2.msra.mxu0 0.0
    %931 = vmatprep.subr.mxu0 0.0
    %932 = vmatpush2.msra.mxu0 0.0
    %933 = vmatprep.subr.mxu0 0.0
    %934 = vmatpush2.msra.mxu0 0.0
    %935 = vmatprep.subr.mxu0 0.0
    %936 = vmatpush2.msra.mxu0 0.0
    %937 = vmatprep.subr.mxu0 0.0
    %938 = vmatpush2.msra.mxu0 0.0
    %939 = vmatprep.subr.mxu0 0.0
    %940 = vmatpush2.msra.mxu0 0.0
    %941 = vmatprep.subr.mxu0 0.0
    %942 = vmatpush2.msra.mxu0 0.0
    %943 = vmatprep.subr.mxu0 0.0
    %944 = vmatpush2.msra.mxu0 0.0
    %945 = vmatprep.subr.mxu0 0.0
    %946 = vmatpush2.msra.mxu0 0.0
    %947 = vmatprep.subr.mxu0 0.0
    %948 = vmatpush2.msra.mxu0 0.0
    %949 = vmatprep.subr.mxu0 0.0
    %950 = vmatpush2.msra.mxu0 0.0
    %951 = vmatprep.mubr.f32.mxu0 0.0
    %952 = vmatmul.mubr.f32.gmra.mxu0 %v885
    %v953 = vpop.f32.mrf.mxu0
    %v954 = vadd.f32 0.0, %v953
    %v955 = vpop.f32.mrf.mxu0
    %956 = vdwg.mxu0
    %v957 = vmul.f32 %v954, %v877
    %959 = vrot.lane.b32.xlu0 %v957, 24
    %v960 = vpop.permute.xlu0 %959
    %vm962 = vcmask 261312
    %963 = vst.msk [vmem:[#allocation2] sm:$0xff] %vm962, %v960
    %v965 = vsel %vm248, %v244, 0
    %v968 = vsel %vm248, %v139, 0
    %v971 = vsel %vm248, %v144, 0
    %973 = vmatprep.subr.mxu0 0.0
    %974 = vmatpush1.xpose.msra.mxu0 0.0
    %975 = vmatprep.subr.mxu0 0.0
    %976 = vmatpush1.xpose.msra.mxu0 0.0
    %977 = vmatprep.subr.mxu0 0.0
    %978 = vmatpush1.xpose.msra.mxu0 0.0
    %979 = vmatprep.subr.mxu0 0.0
    %980 = vmatpush1.xpose.msra.mxu0 0.0
    %981 = vmatprep.subr.mxu0 0.0
    %982 = vmatpush1.xpose.msra.mxu0 0.0
    %983 = vmatprep.subr.mxu0 0.0
    %984 = vmatpush1.xpose.msra.mxu0 0.0
    %985 = vmatprep.subr.mxu0 0.0
    %986 = vmatpush1.xpose.msra.mxu0 0.0
    %987 = vmatprep.subr.mxu0 0.0
    %988 = vmatpush1.xpose.msra.mxu0 0.0
    %989 = vmatprep.subr.mxu0 0.0
    %990 = vmatpush1.xpose.msra.mxu0 0.0
    %991 = vmatprep.subr.mxu0 0.0
    %992 = vmatpush1.xpose.msra.mxu0 0.0
    %993 = vmatprep.subr.mxu0 0.0
    %994 = vmatpush1.xpose.msra.mxu0 0.0
    %995 = vmatprep.subr.mxu0 0.0
    %996 = vmatpush1.xpose.msra.mxu0 0.0
    %997 = vmatprep.subr.mxu0 0.0
    %998 = vmatpush1.xpose.msra.mxu0 0.0
    %999 = vmatprep.subr.mxu0 0.0
    %1000 = vmatpush1.xpose.msra.mxu0 0.0
    %1001 = vmatprep.subr.mxu0 0.0
    %1002 = vmatpush1.xpose.msra.mxu0 %v971
    %1003 = vmatprep.subr.mxu0 0.0
    %1004 = vmatpush1.xpose.msra.mxu0 %v968
    %1005 = vmatprep.subr.mxu0 0.0
    %1006 = vmatpush2.xpose.msra.mxu0 0.0
    %1007 = vmatprep.subr.mxu0 0.0
    %1008 = vmatpush2.xpose.msra.mxu0 0.0
    %1009 = vmatprep.subr.mxu0 0.0
    %1010 = vmatpush2.xpose.msra.mxu0 0.0
    %1011 = vmatprep.subr.mxu0 0.0
    %1012 = vmatpush2.xpose.msra.mxu0 0.0
    %1013 = vmatprep.subr.mxu0 0.0
    %1014 = vmatpush2.xpose.msra.mxu0 0.0
    %1015 = vmatprep.subr.mxu0 0.0
    %1016 = vmatpush2.xpose.msra.mxu0 0.0
    %1017 = vmatprep.subr.mxu0 0.0
    %1018 = vmatpush2.xpose.msra.mxu0 0.0
    %1019 = vmatprep.subr.mxu0 0.0
    %1020 = vmatpush2.xpose.msra.mxu0 0.0
    %1021 = vmatprep.subr.mxu0 0.0
    %1022 = vmatpush2.xpose.msra.mxu0 0.0
    %1023 = vmatprep.subr.mxu0 0.0
    %1024 = vmatpush2.xpose.msra.mxu0 0.0
    %1025 = vmatprep.subr.mxu0 0.0
    %1026 = vmatpush2.xpose.msra.mxu0 0.0
    %1027 = vmatprep.subr.mxu0 0.0
    %1028 = vmatpush2.xpose.msra.mxu0 0.0
    %1029 = vmatprep.subr.mxu0 0.0
    %1030 = vmatpush2.xpose.msra.mxu0 0.0
    %1031 = vmatprep.subr.mxu0 0.0
    %1032 = vmatpush2.xpose.msra.mxu0 0.0
    %1033 = vmatprep.subr.mxu0 0.0
    %1034 = vmatpush2.xpose.msra.mxu0 0.0
    %1035 = vmatprep.subr.mxu0 0.0
    %1036 = vmatpush2.xpose.msra.mxu0 0.0
    %1037 = vmatprep.mubr.f32.mxu0 0.0
    %1038 = vmatmul.mubr.f32.gmra.mxu0 %v965
    %v1039 = vpop.f32.mrf.mxu0
    %v1040 = vadd.f32 0.0, %v1039
    %v1041 = vpop.f32.mrf.mxu0
    %1042 = vdwg.mxu0
    %v1043 = vlaneseq
    %v1044 = vshrl.u32 %v1043, 7
    %v1045 = vsub.s32 1, %v1044
    %v1046 = vrot.slane %v328, %v1045
    %vm1047 = vcmp.eq.s32.totalorder %v1046, 1
    %v1048 = vsel %vm1047, -10000.0, %v1040
    %v1049 = vsel %vm335, %v1048, -inf
    %1050 = vmax.xlane.f32.xlu0 %v1049
    %v1051 = vpop.xlane.xlu0 %1050
    %v1052 = vsub.f32 %v1048, %v1051
    %v1053 = vmul.f32 %v1052, 1.442695
    %v1054 = vpow.pop %v1053
    %v1055 = vsel %vm335, %v1054, 0.0
    %1056 = vadd.xlane.f32.xlu0 %v1055
    %v1057 = vpop.xlane.xlu0 %1056
    %v1058 = vrcp.pop %v1057
    %1059 = vrot.lane.b32.xlu0 %v139, 96
    %v1060 = vpop.permute.xlu0 %1059
    %1061 = vrot.lane.b32.xlu0 %v144, 96
    %v1062 = vpop.permute.xlu0 %1061
    %v1066 = vsel %vm335, %v1054, 0
    %1068 = vmatprep.subr.mxu0 0.0
    %1069 = vmatpush1.msra.mxu0 0.0
    %1070 = vmatprep.subr.mxu0 0.0
    %1071 = vmatpush1.msra.mxu0 0.0
    %1072 = vmatprep.subr.mxu0 0.0
    %1073 = vmatpush1.msra.mxu0 0.0
    %1074 = vmatprep.subr.mxu0 0.0
    %1075 = vmatpush1.msra.mxu0 0.0
    %1076 = vmatprep.subr.mxu0 0.0
    %1077 = vmatpush1.msra.mxu0 0.0
    %1078 = vmatprep.subr.mxu0 0.0
    %1079 = vmatpush1.msra.mxu0 0.0
    %1080 = vmatprep.subr.mxu0 0.0
    %1081 = vmatpush1.msra.mxu0 0.0
    %1082 = vmatprep.subr.mxu0 0.0
    %1083 = vmatpush1.msra.mxu0 0.0
    %1084 = vmatprep.subr.mxu0 0.0
    %1085 = vmatpush1.msra.mxu0 0.0
    %1086 = vmatprep.subr.mxu0 0.0
    %1087 = vmatpush1.msra.mxu0 0.0
    %1088 = vmatprep.subr.mxu0 0.0
    %1089 = vmatpush1.msra.mxu0 0.0
    %1090 = vmatprep.subr.mxu0 0.0
    %1091 = vmatpush1.msra.mxu0 0.0
    %1092 = vmatprep.subr.mxu0 0.0
    %1093 = vmatpush1.msra.mxu0 0.0
    %1094 = vmatprep.subr.mxu0 0.0
    %1095 = vmatpush1.msra.mxu0 0.0
    %1096 = vmatprep.subr.mxu0 0.0
    %1097 = vmatpush1.msra.mxu0 %v1062
    %1098 = vmatprep.subr.mxu0 0.0
    %1099 = vmatpush1.msra.mxu0 %v1060
    %1100 = vmatprep.subr.mxu0 0.0
    %1101 = vmatpush2.msra.mxu0 0.0
    %1102 = vmatprep.subr.mxu0 0.0
    %1103 = vmatpush2.msra.mxu0 0.0
    %1104 = vmatprep.subr.mxu0 0.0
    %1105 = vmatpush2.msra.mxu0 0.0
    %1106 = vmatprep.subr.mxu0 0.0
    %1107 = vmatpush2.msra.mxu0 0.0
    %1108 = vmatprep.subr.mxu0 0.0
    %1109 = vmatpush2.msra.mxu0 0.0
    %1110 = vmatprep.subr.mxu0 0.0
    %1111 = vmatpush2.msra.mxu0 0.0
    %1112 = vmatprep.subr.mxu0 0.0
    %1113 = vmatpush2.msra.mxu0 0.0
    %1114 = vmatprep.subr.mxu0 0.0
    %1115 = vmatpush2.msra.mxu0 0.0
    %1116 = vmatprep.subr.mxu0 0.0
    %1117 = vmatpush2.msra.mxu0 0.0
    %1118 = vmatprep.subr.mxu0 0.0
    %1119 = vmatpush2.msra.mxu0 0.0
    %1120 = vmatprep.subr.mxu0 0.0
    %1121 = vmatpush2.msra.mxu0 0.0
    %1122 = vmatprep.subr.mxu0 0.0
    %1123 = vmatpush2.msra.mxu0 0.0
    %1124 = vmatprep.subr.mxu0 0.0
    %1125 = vmatpush2.msra.mxu0 0.0
    %1126 = vmatprep.subr.mxu0 0.0
    %1127 = vmatpush2.msra.mxu0 0.0
    %1128 = vmatprep.subr.mxu0 0.0
    %1129 = vmatpush2.msra.mxu0 0.0
    %1130 = vmatprep.subr.mxu0 0.0
    %1131 = vmatpush2.msra.mxu0 0.0
    %1132 = vmatprep.mubr.f32.mxu0 0.0
    %1133 = vmatmul.mubr.f32.gmra.mxu0 %v1066
    %v1134 = vpop.f32.mrf.mxu0
    %v1135 = vadd.f32 0.0, %v1134
    %v1136 = vpop.f32.mrf.mxu0
    %1137 = vdwg.mxu0
    %v1138 = vmul.f32 %v1135, %v1058
    %1139 = vst.msk [vmem:[#allocation2 + $0x8] sm:$0xff] %vm248, %v1138
    %1140 = vrot.lane.b32.xlu0 %v244, 120
    %v1141 = vpop.permute.xlu0 %1140
    %1142 = vrot.lane.b32.xlu0 %v139, 120
    %v1143 = vpop.permute.xlu0 %1142
    %1144 = vrot.lane.b32.xlu0 %v144, 120
    %v1145 = vpop.permute.xlu0 %1144
    %v1146 = vsel %vm248, %v1141, 0
    %v1148 = vsel %vm248, %v1143, 0
    %v1150 = vsel %vm248, %v1145, 0
    %1152 = vmatprep.subr.mxu0 0.0
    %1153 = vmatpush1.xpose.msra.mxu0 0.0
    %1154 = vmatprep.subr.mxu0 0.0
    %1155 = vmatpush1.xpose.msra.mxu0 0.0
    %1156 = vmatprep.subr.mxu0 0.0
    %1157 = vmatpush1.xpose.msra.mxu0 0.0
    %1158 = vmatprep.subr.mxu0 0.0
    %1159 = vmatpush1.xpose.msra.mxu0 0.0
    %1160 = vmatprep.subr.mxu0 0.0
    %1161 = vmatpush1.xpose.msra.mxu0 0.0
    %1162 = vmatprep.subr.mxu0 0.0
    %1163 = vmatpush1.xpose.msra.mxu0 0.0
    %1164 = vmatprep.subr.mxu0 0.0
    %1165 = vmatpush1.xpose.msra.mxu0 0.0
    %1166 = vmatprep.subr.mxu0 0.0
    %1167 = vmatpush1.xpose.msra.mxu0 0.0
    %1168 = vmatprep.subr.mxu0 0.0
    %1169 = vmatpush1.xpose.msra.mxu0 0.0
    %1170 = vmatprep.subr.mxu0 0.0
    %1171 = vmatpush1.xpose.msra.mxu0 0.0
    %1172 = vmatprep.subr.mxu0 0.0
    %1173 = vmatpush1.xpose.msra.mxu0 0.0
    %1174 = vmatprep.subr.mxu0 0.0
    %1175 = vmatpush1.xpose.msra.mxu0 0.0
    %1176 = vmatprep.subr.mxu0 0.0
    %1177 = vmatpush1.xpose.msra.mxu0 0.0
    %1178 = vmatprep.subr.mxu0 0.0
    %1179 = vmatpush1.xpose.msra.mxu0 0.0
    %1180 = vmatprep.subr.mxu0 0.0
    %1181 = vmatpush1.xpose.msra.mxu0 %v1150
    %1182 = vmatprep.subr.mxu0 0.0
    %1183 = vmatpush1.xpose.msra.mxu0 %v1148
    %1184 = vmatprep.subr.mxu0 0.0
    %1185 = vmatpush2.xpose.msra.mxu0 0.0
    %1186 = vmatprep.subr.mxu0 0.0
    %1187 = vmatpush2.xpose.msra.mxu0 0.0
    %1188 = vmatprep.subr.mxu0 0.0
    %1189 = vmatpush2.xpose.msra.mxu0 0.0
    %1190 = vmatprep.subr.mxu0 0.0
    %1191 = vmatpush2.xpose.msra.mxu0 0.0
    %1192 = vmatprep.subr.mxu0 0.0
    %1193 = vmatpush2.xpose.msra.mxu0 0.0
    %1194 = vmatprep.subr.mxu0 0.0
    %1195 = vmatpush2.xpose.msra.mxu0 0.0
    %1196 = vmatprep.subr.mxu0 0.0
    %1197 = vmatpush2.xpose.msra.mxu0 0.0
    %1198 = vmatprep.subr.mxu0 0.0
    %1199 = vmatpush2.xpose.msra.mxu0 0.0
    %1200 = vmatprep.subr.mxu0 0.0
    %1201 = vmatpush2.xpose.msra.mxu0 0.0
    %1202 = vmatprep.subr.mxu0 0.0
    %1203 = vmatpush2.xpose.msra.mxu0 0.0
    %1204 = vmatprep.subr.mxu0 0.0
    %1205 = vmatpush2.xpose.msra.mxu0 0.0
    %1206 = vmatprep.subr.mxu0 0.0
    %1207 = vmatpush2.xpose.msra.mxu0 0.0
    %1208 = vmatprep.subr.mxu0 0.0
    %1209 = vmatpush2.xpose.msra.mxu0 0.0
    %1210 = vmatprep.subr.mxu0 0.0
    %1211 = vmatpush2.xpose.msra.mxu0 0.0
    %1212 = vmatprep.subr.mxu0 0.0
    %1213 = vmatpush2.xpose.msra.mxu0 0.0
    %1214 = vmatprep.subr.mxu0 0.0
    %1215 = vmatpush2.xpose.msra.mxu0 0.0
    %1216 = vmatprep.mubr.f32.mxu0 0.0
    %1217 = vmatmul.mubr.f32.gmra.mxu0 %v1146
    %v1218 = vpop.f32.mrf.mxu0
    %v1219 = vadd.f32 0.0, %v1218
    %v1220 = vpop.f32.mrf.mxu0
    %1221 = vdwg.mxu0
    %v1222 = vsel %vm1047, -10000.0, %v1219
    %v1223 = vsel %vm335, %v1222, -inf
    %1224 = vmax.xlane.f32.xlu0 %v1223
    %v1225 = vpop.xlane.xlu0 %1224
    %v1226 = vsub.f32 %v1222, %v1225
    %v1227 = vmul.f32 %v1226, 1.442695
    %v1228 = vpow.pop %v1227
    %v1229 = vsel %vm335, %v1228, 0.0
    %1230 = vadd.xlane.f32.xlu0 %v1229
    %v1231 = vpop.xlane.xlu0 %1230
    %v1232 = vrcp.pop %v1231
    %1233 = vrot.lane.b32.xlu0 %v139, 88
    %v1234 = vpop.permute.xlu0 %1233
    %1235 = vrot.lane.b32.xlu0 %v144, 88
    %v1236 = vpop.permute.xlu0 %1235
    %v1240 = vsel %vm335, %v1228, 0
    %1242 = vmatprep.subr.mxu0 0.0
    %1243 = vmatpush1.msra.mxu0 0.0
    %1244 = vmatprep.subr.mxu0 0.0
    %1245 = vmatpush1.msra.mxu0 0.0
    %1246 = vmatprep.subr.mxu0 0.0
    %1247 = vmatpush1.msra.mxu0 0.0
    %1248 = vmatprep.subr.mxu0 0.0
    %1249 = vmatpush1.msra.mxu0 0.0
    %1250 = vmatprep.subr.mxu0 0.0
    %1251 = vmatpush1.msra.mxu0 0.0
    %1252 = vmatprep.subr.mxu0 0.0
    %1253 = vmatpush1.msra.mxu0 0.0
    %1254 = vmatprep.subr.mxu0 0.0
    %1255 = vmatpush1.msra.mxu0 0.0
    %1256 = vmatprep.subr.mxu0 0.0
    %1257 = vmatpush1.msra.mxu0 0.0
    %1258 = vmatprep.subr.mxu0 0.0
    %1259 = vmatpush1.msra.mxu0 0.0
    %1260 = vmatprep.subr.mxu0 0.0
    %1261 = vmatpush1.msra.mxu0 0.0
    %1262 = vmatprep.subr.mxu0 0.0
    %1263 = vmatpush1.msra.mxu0 0.0
    %1264 = vmatprep.subr.mxu0 0.0
    %1265 = vmatpush1.msra.mxu0 0.0
    %1266 = vmatprep.subr.mxu0 0.0
    %1267 = vmatpush1.msra.mxu0 0.0
    %1268 = vmatprep.subr.mxu0 0.0
    %1269 = vmatpush1.msra.mxu0 0.0
    %1270 = vmatprep.subr.mxu0 0.0
    %1271 = vmatpush1.msra.mxu0 %v1236
    %1272 = vmatprep.subr.mxu0 0.0
    %1273 = vmatpush1.msra.mxu0 %v1234
    %1274 = vmatprep.subr.mxu0 0.0
    %1275 = vmatpush2.msra.mxu0 0.0
    %1276 = vmatprep.subr.mxu0 0.0
    %1277 = vmatpush2.msra.mxu0 0.0
    %1278 = vmatprep.subr.mxu0 0.0
    %1279 = vmatpush2.msra.mxu0 0.0
    %1280 = vmatprep.subr.mxu0 0.0
    %1281 = vmatpush2.msra.mxu0 0.0
    %1282 = vmatprep.subr.mxu0 0.0
    %1283 = vmatpush2.msra.mxu0 0.0
    %1284 = vmatprep.subr.mxu0 0.0
    %1285 = vmatpush2.msra.mxu0 0.0
    %1286 = vmatprep.subr.mxu0 0.0
    %1287 = vmatpush2.msra.mxu0 0.0
    %1288 = vmatprep.subr.mxu0 0.0
    %1289 = vmatpush2.msra.mxu0 0.0
    %1290 = vmatprep.subr.mxu0 0.0
    %1291 = vmatpush2.msra.mxu0 0.0
    %1292 = vmatprep.subr.mxu0 0.0
    %1293 = vmatpush2.msra.mxu0 0.0
    %1294 = vmatprep.subr.mxu0 0.0
    %1295 = vmatpush2.msra.mxu0 0.0
    %1296 = vmatprep.subr.mxu0 0.0
    %1297 = vmatpush2.msra.mxu0 0.0
    %1298 = vmatprep.subr.mxu0 0.0
    %1299 = vmatpush2.msra.mxu0 0.0
    %1300 = vmatprep.subr.mxu0 0.0
    %1301 = vmatpush2.msra.mxu0 0.0
    %1302 = vmatprep.subr.mxu0 0.0
    %1303 = vmatpush2.msra.mxu0 0.0
    %1304 = vmatprep.subr.mxu0 0.0
    %1305 = vmatpush2.msra.mxu0 0.0
    %1306 = vmatprep.mubr.f32.mxu0 0.0
    %1307 = vmatmul.mubr.f32.gmra.mxu0 %v1240
    %v1308 = vpop.f32.mrf.mxu0
    %v1309 = vadd.f32 0.0, %v1308
    %v1310 = vpop.f32.mrf.mxu0
    %1311 = vdwg.mxu0
    %v1312 = vmul.f32 %v1309, %v1232
    %1314 = vrot.lane.b32.xlu0 %v1312, 8
    %v1315 = vpop.permute.xlu0 %1314
    %1317 = vst.msk [vmem:[#allocation2 + $0x8] sm:$0xff] %vm604, %v1315
    %1318 = vrot.lane.b32.xlu0 %v244, 112
    %v1319 = vpop.permute.xlu0 %1318
    %1320 = vrot.lane.b32.xlu0 %v139, 112
    %v1321 = vpop.permute.xlu0 %1320
    %1322 = vrot.lane.b32.xlu0 %v144, 112
    %v1323 = vpop.permute.xlu0 %1322
    %v1324 = vsel %vm248, %v1319, 0
    %v1326 = vsel %vm248, %v1321, 0
    %v1328 = vsel %vm248, %v1323, 0
    %1330 = vmatprep.subr.mxu0 0.0
    %1331 = vmatpush1.xpose.msra.mxu0 0.0
    %1332 = vmatprep.subr.mxu0 0.0
    %1333 = vmatpush1.xpose.msra.mxu0 0.0
    %1334 = vmatprep.subr.mxu0 0.0
    %1335 = vmatpush1.xpose.msra.mxu0 0.0
    %1336 = vmatprep.subr.mxu0 0.0
    %1337 = vmatpush1.xpose.msra.mxu0 0.0
    %1338 = vmatprep.subr.mxu0 0.0
    %1339 = vmatpush1.xpose.msra.mxu0 0.0
    %1340 = vmatprep.subr.mxu0 0.0
    %1341 = vmatpush1.xpose.msra.mxu0 0.0
    %1342 = vmatprep.subr.mxu0 0.0
    %1343 = vmatpush1.xpose.msra.mxu0 0.0
    %1344 = vmatprep.subr.mxu0 0.0
    %1345 = vmatpush1.xpose.msra.mxu0 0.0
    %1346 = vmatprep.subr.mxu0 0.0
    %1347 = vmatpush1.xpose.msra.mxu0 0.0
    %1348 = vmatprep.subr.mxu0 0.0
    %1349 = vmatpush1.xpose.msra.mxu0 0.0
    %1350 = vmatprep.subr.mxu0 0.0
    %1351 = vmatpush1.xpose.msra.mxu0 0.0
    %1352 = vmatprep.subr.mxu0 0.0
    %1353 = vmatpush1.xpose.msra.mxu0 0.0
    %1354 = vmatprep.subr.mxu0 0.0
    %1355 = vmatpush1.xpose.msra.mxu0 0.0
    %1356 = vmatprep.subr.mxu0 0.0
    %1357 = vmatpush1.xpose.msra.mxu0 0.0
    %1358 = vmatprep.subr.mxu0 0.0
    %1359 = vmatpush1.xpose.msra.mxu0 %v1328
    %1360 = vmatprep.subr.mxu0 0.0
    %1361 = vmatpush1.xpose.msra.mxu0 %v1326
    %1362 = vmatprep.subr.mxu0 0.0
    %1363 = vmatpush2.xpose.msra.mxu0 0.0
    %1364 = vmatprep.subr.mxu0 0.0
    %1365 = vmatpush2.xpose.msra.mxu0 0.0
    %1366 = vmatprep.subr.mxu0 0.0
    %1367 = vmatpush2.xpose.msra.mxu0 0.0
    %1368 = vmatprep.subr.mxu0 0.0
    %1369 = vmatpush2.xpose.msra.mxu0 0.0
    %1370 = vmatprep.subr.mxu0 0.0
    %1371 = vmatpush2.xpose.msra.mxu0 0.0
    %1372 = vmatprep.subr.mxu0 0.0
    %1373 = vmatpush2.xpose.msra.mxu0 0.0
    %1374 = vmatprep.subr.mxu0 0.0
    %1375 = vmatpush2.xpose.msra.mxu0 0.0
    %1376 = vmatprep.subr.mxu0 0.0
    %1377 = vmatpush2.xpose.msra.mxu0 0.0
    %1378 = vmatprep.subr.mxu0 0.0
    %1379 = vmatpush2.xpose.msra.mxu0 0.0
    %1380 = vmatprep.subr.mxu0 0.0
    %1381 = vmatpush2.xpose.msra.mxu0 0.0
    %1382 = vmatprep.subr.mxu0 0.0
    %1383 = vmatpush2.xpose.msra.mxu0 0.0
    %1384 = vmatprep.subr.mxu0 0.0
    %1385 = vmatpush2.xpose.msra.mxu0 0.0
    %1386 = vmatprep.subr.mxu0 0.0
    %1387 = vmatpush2.xpose.msra.mxu0 0.0
    %1388 = vmatprep.subr.mxu0 0.0
    %1389 = vmatpush2.xpose.msra.mxu0 0.0
    %1390 = vmatprep.subr.mxu0 0.0
    %1391 = vmatpush2.xpose.msra.mxu0 0.0
    %1392 = vmatprep.subr.mxu0 0.0
    %1393 = vmatpush2.xpose.msra.mxu0 0.0
    %1394 = vmatprep.mubr.f32.mxu0 0.0
    %1395 = vmatmul.mubr.f32.gmra.mxu0 %v1324
    %v1396 = vpop.f32.mrf.mxu0
    %v1397 = vadd.f32 0.0, %v1396
    %v1398 = vpop.f32.mrf.mxu0
    %1399 = vdwg.mxu0
    %v1400 = vsel %vm1047, -10000.0, %v1397
    %v1401 = vsel %vm335, %v1400, -inf
    %1402 = vmax.xlane.f32.xlu0 %v1401
    %v1403 = vpop.xlane.xlu0 %1402
    %v1404 = vsub.f32 %v1400, %v1403
    %v1405 = vmul.f32 %v1404, 1.442695
    %v1406 = vpow.pop %v1405
    %v1407 = vsel %vm335, %v1406, 0.0
    %1408 = vadd.xlane.f32.xlu0 %v1407
    %v1409 = vpop.xlane.xlu0 %1408
    %v1410 = vrcp.pop %v1409
    %1411 = vrot.lane.b32.xlu0 %v139, 80
    %v1412 = vpop.permute.xlu0 %1411
    %1413 = vrot.lane.b32.xlu0 %v144, 80
    %v1414 = vpop.permute.xlu0 %1413
    %v1418 = vsel %vm335, %v1406, 0
    %1420 = vmatprep.subr.mxu0 0.0
    %1421 = vmatpush1.msra.mxu0 0.0
    %1422 = vmatprep.subr.mxu0 0.0
    %1423 = vmatpush1.msra.mxu0 0.0
    %1424 = vmatprep.subr.mxu0 0.0
    %1425 = vmatpush1.msra.mxu0 0.0
    %1426 = vmatprep.subr.mxu0 0.0
    %1427 = vmatpush1.msra.mxu0 0.0
    %1428 = vmatprep.subr.mxu0 0.0
    %1429 = vmatpush1.msra.mxu0 0.0
    %1430 = vmatprep.subr.mxu0 0.0
    %1431 = vmatpush1.msra.mxu0 0.0
    %1432 = vmatprep.subr.mxu0 0.0
    %1433 = vmatpush1.msra.mxu0 0.0
    %1434 = vmatprep.subr.mxu0 0.0
    %1435 = vmatpush1.msra.mxu0 0.0
    %1436 = vmatprep.subr.mxu0 0.0
    %1437 = vmatpush1.msra.mxu0 0.0
    %1438 = vmatprep.subr.mxu0 0.0
    %1439 = vmatpush1.msra.mxu0 0.0
    %1440 = vmatprep.subr.mxu0 0.0
    %1441 = vmatpush1.msra.mxu0 0.0
    %1442 = vmatprep.subr.mxu0 0.0
    %1443 = vmatpush1.msra.mxu0 0.0
    %1444 = vmatprep.subr.mxu0 0.0
    %1445 = vmatpush1.msra.mxu0 0.0
    %1446 = vmatprep.subr.mxu0 0.0
    %1447 = vmatpush1.msra.mxu0 0.0
    %1448 = vmatprep.subr.mxu0 0.0
    %1449 = vmatpush1.msra.mxu0 %v1414
    %1450 = vmatprep.subr.mxu0 0.0
    %1451 = vmatpush1.msra.mxu0 %v1412
    %1452 = vmatprep.subr.mxu0 0.0
    %1453 = vmatpush2.msra.mxu0 0.0
    %1454 = vmatprep.subr.mxu0 0.0
    %1455 = vmatpush2.msra.mxu0 0.0
    %1456 = vmatprep.subr.mxu0 0.0
    %1457 = vmatpush2.msra.mxu0 0.0
    %1458 = vmatprep.subr.mxu0 0.0
    %1459 = vmatpush2.msra.mxu0 0.0
    %1460 = vmatprep.subr.mxu0 0.0
    %1461 = vmatpush2.msra.mxu0 0.0
    %1462 = vmatprep.subr.mxu0 0.0
    %1463 = vmatpush2.msra.mxu0 0.0
    %1464 = vmatprep.subr.mxu0 0.0
    %1465 = vmatpush2.msra.mxu0 0.0
    %1466 = vmatprep.subr.mxu0 0.0
    %1467 = vmatpush2.msra.mxu0 0.0
    %1468 = vmatprep.subr.mxu0 0.0
    %1469 = vmatpush2.msra.mxu0 0.0
    %1470 = vmatprep.subr.mxu0 0.0
    %1471 = vmatpush2.msra.mxu0 0.0
    %1472 = vmatprep.subr.mxu0 0.0
    %1473 = vmatpush2.msra.mxu0 0.0
    %1474 = vmatprep.subr.mxu0 0.0
    %1475 = vmatpush2.msra.mxu0 0.0
    %1476 = vmatprep.subr.mxu0 0.0
    %1477 = vmatpush2.msra.mxu0 0.0
    %1478 = vmatprep.subr.mxu0 0.0
    %1479 = vmatpush2.msra.mxu0 0.0
    %1480 = vmatprep.subr.mxu0 0.0
    %1481 = vmatpush2.msra.mxu0 0.0
    %1482 = vmatprep.subr.mxu0 0.0
    %1483 = vmatpush2.msra.mxu0 0.0
    %1484 = vmatprep.mubr.f32.mxu0 0.0
    %1485 = vmatmul.mubr.f32.gmra.mxu0 %v1418
    %v1486 = vpop.f32.mrf.mxu0
    %v1487 = vadd.f32 0.0, %v1486
    %v1488 = vpop.f32.mrf.mxu0
    %1489 = vdwg.mxu0
    %v1490 = vmul.f32 %v1487, %v1410
    %1492 = vrot.lane.b32.xlu0 %v1490, 16
    %v1493 = vpop.permute.xlu0 %1492
    %1495 = vst.msk [vmem:[#allocation2 + $0x8] sm:$0xff] %vm783, %v1493
    %1496 = vrot.lane.b32.xlu0 %v244, 104
    %v1497 = vpop.permute.xlu0 %1496
    %1498 = vrot.lane.b32.xlu0 %v139, 104
    %v1499 = vpop.permute.xlu0 %1498
    %1500 = vrot.lane.b32.xlu0 %v144, 104
    %v1501 = vpop.permute.xlu0 %1500
    %v1502 = vsel %vm248, %v1497, 0
    %v1504 = vsel %vm248, %v1499, 0
    %v1506 = vsel %vm248, %v1501, 0
    %1508 = vmatprep.subr.mxu0 0.0
    %1509 = vmatpush1.xpose.msra.mxu0 0.0
    %1510 = vmatprep.subr.mxu0 0.0
    %1511 = vmatpush1.xpose.msra.mxu0 0.0
    %1512 = vmatprep.subr.mxu0 0.0
    %1513 = vmatpush1.xpose.msra.mxu0 0.0
    %1514 = vmatprep.subr.mxu0 0.0
    %1515 = vmatpush1.xpose.msra.mxu0 0.0
    %1516 = vmatprep.subr.mxu0 0.0
    %1517 = vmatpush1.xpose.msra.mxu0 0.0
    %1518 = vmatprep.subr.mxu0 0.0
    %1519 = vmatpush1.xpose.msra.mxu0 0.0
    %1520 = vmatprep.subr.mxu0 0.0
    %1521 = vmatpush1.xpose.msra.mxu0 0.0
    %1522 = vmatprep.subr.mxu0 0.0
    %1523 = vmatpush1.xpose.msra.mxu0 0.0
    %1524 = vmatprep.subr.mxu0 0.0
    %1525 = vmatpush1.xpose.msra.mxu0 0.0
    %1526 = vmatprep.subr.mxu0 0.0
    %1527 = vmatpush1.xpose.msra.mxu0 0.0
    %1528 = vmatprep.subr.mxu0 0.0
    %1529 = vmatpush1.xpose.msra.mxu0 0.0
    %1530 = vmatprep.subr.mxu0 0.0
    %1531 = vmatpush1.xpose.msra.mxu0 0.0
    %1532 = vmatprep.subr.mxu0 0.0
    %1533 = vmatpush1.xpose.msra.mxu0 0.0
    %1534 = vmatprep.subr.mxu0 0.0
    %1535 = vmatpush1.xpose.msra.mxu0 0.0
    %1536 = vmatprep.subr.mxu0 0.0
    %1537 = vmatpush1.xpose.msra.mxu0 %v1506
    %1538 = vmatprep.subr.mxu0 0.0
    %1539 = vmatpush1.xpose.msra.mxu0 %v1504
    %1540 = vmatprep.subr.mxu0 0.0
    %1541 = vmatpush2.xpose.msra.mxu0 0.0
    %1542 = vmatprep.subr.mxu0 0.0
    %1543 = vmatpush2.xpose.msra.mxu0 0.0
    %1544 = vmatprep.subr.mxu0 0.0
    %1545 = vmatpush2.xpose.msra.mxu0 0.0
    %1546 = vmatprep.subr.mxu0 0.0
    %1547 = vmatpush2.xpose.msra.mxu0 0.0
    %1548 = vmatprep.subr.mxu0 0.0
    %1549 = vmatpush2.xpose.msra.mxu0 0.0
    %1550 = vmatprep.subr.mxu0 0.0
    %1551 = vmatpush2.xpose.msra.mxu0 0.0
    %1552 = vmatprep.subr.mxu0 0.0
    %1553 = vmatpush2.xpose.msra.mxu0 0.0
    %1554 = vmatprep.subr.mxu0 0.0
    %1555 = vmatpush2.xpose.msra.mxu0 0.0
    %1556 = vmatprep.subr.mxu0 0.0
    %1557 = vmatpush2.xpose.msra.mxu0 0.0
    %1558 = vmatprep.subr.mxu0 0.0
    %1559 = vmatpush2.xpose.msra.mxu0 0.0
    %1560 = vmatprep.subr.mxu0 0.0
    %1561 = vmatpush2.xpose.msra.mxu0 0.0
    %1562 = vmatprep.subr.mxu0 0.0
    %1563 = vmatpush2.xpose.msra.mxu0 0.0
    %1564 = vmatprep.subr.mxu0 0.0
    %1565 = vmatpush2.xpose.msra.mxu0 0.0
    %1566 = vmatprep.subr.mxu0 0.0
    %1567 = vmatpush2.xpose.msra.mxu0 0.0
    %1568 = vmatprep.subr.mxu0 0.0
    %1569 = vmatpush2.xpose.msra.mxu0 0.0
    %1570 = vmatprep.subr.mxu0 0.0
    %1571 = vmatpush2.xpose.msra.mxu0 0.0
    %1572 = vmatprep.mubr.f32.mxu0 0.0
    %1573 = vmatmul.mubr.f32.gmra.mxu0 %v1502
    %v1574 = vpop.f32.mrf.mxu0
    %v1575 = vadd.f32 0.0, %v1574
    %v1576 = vpop.f32.mrf.mxu0
    %1577 = vdwg.mxu0
    %v1578 = vsel %vm1047, -10000.0, %v1575
    %v1579 = vsel %vm335, %v1578, -inf
    %1580 = vmax.xlane.f32.xlu0 %v1579
    %v1581 = vpop.xlane.xlu0 %1580
    %v1582 = vsub.f32 %v1578, %v1581
    %v1583 = vmul.f32 %v1582, 1.442695
    %v1584 = vpow.pop %v1583
    %v1585 = vsel %vm335, %v1584, 0.0
    %1586 = vadd.xlane.f32.xlu0 %v1585
    %v1587 = vpop.xlane.xlu0 %1586
    %v1588 = vrcp.pop %v1587
    %1589 = vrot.lane.b32.xlu0 %v139, 72
    %v1590 = vpop.permute.xlu0 %1589
    %1591 = vrot.lane.b32.xlu0 %v144, 72
    %v1592 = vpop.permute.xlu0 %1591
    %v1596 = vsel %vm335, %v1584, 0
    %1598 = vmatprep.subr.mxu0 0.0
    %1599 = vmatpush1.msra.mxu0 0.0
    %1600 = vmatprep.subr.mxu0 0.0
    %1601 = vmatpush1.msra.mxu0 0.0
    %1602 = vmatprep.subr.mxu0 0.0
    %1603 = vmatpush1.msra.mxu0 0.0
    %1604 = vmatprep.subr.mxu0 0.0
    %1605 = vmatpush1.msra.mxu0 0.0
    %1606 = vmatprep.subr.mxu0 0.0
    %1607 = vmatpush1.msra.mxu0 0.0
    %1608 = vmatprep.subr.mxu0 0.0
    %1609 = vmatpush1.msra.mxu0 0.0
    %1610 = vmatprep.subr.mxu0 0.0
    %1611 = vmatpush1.msra.mxu0 0.0
    %1612 = vmatprep.subr.mxu0 0.0
    %1613 = vmatpush1.msra.mxu0 0.0
    %1614 = vmatprep.subr.mxu0 0.0
    %1615 = vmatpush1.msra.mxu0 0.0
    %1616 = vmatprep.subr.mxu0 0.0
    %1617 = vmatpush1.msra.mxu0 0.0
    %1618 = vmatprep.subr.mxu0 0.0
    %1619 = vmatpush1.msra.mxu0 0.0
    %1620 = vmatprep.subr.mxu0 0.0
    %1621 = vmatpush1.msra.mxu0 0.0
    %1622 = vmatprep.subr.mxu0 0.0
    %1623 = vmatpush1.msra.mxu0 0.0
    %1624 = vmatprep.subr.mxu0 0.0
    %1625 = vmatpush1.msra.mxu0 0.0
    %1626 = vmatprep.subr.mxu0 0.0
    %1627 = vmatpush1.msra.mxu0 %v1592
    %1628 = vmatprep.subr.mxu0 0.0
    %1629 = vmatpush1.msra.mxu0 %v1590
    %1630 = vmatprep.subr.mxu0 0.0
    %1631 = vmatpush2.msra.mxu0 0.0
    %1632 = vmatprep.subr.mxu0 0.0
    %1633 = vmatpush2.msra.mxu0 0.0
    %1634 = vmatprep.subr.mxu0 0.0
    %1635 = vmatpush2.msra.mxu0 0.0
    %1636 = vmatprep.subr.mxu0 0.0
    %1637 = vmatpush2.msra.mxu0 0.0
    %1638 = vmatprep.subr.mxu0 0.0
    %1639 = vmatpush2.msra.mxu0 0.0
    %1640 = vmatprep.subr.mxu0 0.0
    %1641 = vmatpush2.msra.mxu0 0.0
    %1642 = vmatprep.subr.mxu0 0.0
    %1643 = vmatpush2.msra.mxu0 0.0
    %1644 = vmatprep.subr.mxu0 0.0
    %1645 = vmatpush2.msra.mxu0 0.0
    %1646 = vmatprep.subr.mxu0 0.0
    %1647 = vmatpush2.msra.mxu0 0.0
    %1648 = vmatprep.subr.mxu0 0.0
    %1649 = vmatpush2.msra.mxu0 0.0
    %1650 = vmatprep.subr.mxu0 0.0
    %1651 = vmatpush2.msra.mxu0 0.0
    %1652 = vmatprep.subr.mxu0 0.0
    %1653 = vmatpush2.msra.mxu0 0.0
    %1654 = vmatprep.subr.mxu0 0.0
    %1655 = vmatpush2.msra.mxu0 0.0
    %1656 = vmatprep.subr.mxu0 0.0
    %1657 = vmatpush2.msra.mxu0 0.0
    %1658 = vmatprep.subr.mxu0 0.0
    %1659 = vmatpush2.msra.mxu0 0.0
    %1660 = vmatprep.subr.mxu0 0.0
    %1661 = vmatpush2.msra.mxu0 0.0
    %1662 = vmatprep.mubr.f32.mxu0 0.0
    %1663 = vmatmul.mubr.f32.gmra.mxu0 %v1596
    %v1664 = vpop.f32.mrf.mxu0
    %v1665 = vadd.f32 0.0, %v1664
    %v1666 = vpop.f32.mrf.mxu0
    %1667 = vdwg.mxu0
    %v1668 = vmul.f32 %v1665, %v1588
    %1670 = vrot.lane.b32.xlu0 %v1668, 24
    %v1671 = vpop.permute.xlu0 %1670
    %1673 = vst.msk [vmem:[#allocation2 + $0x8] sm:$0xff] %vm962, %v1671
    %v1674 = vld [vmem:[#allocation2] sm:$0xff]
    %v1675 = vld [vmem:[#allocation2 + $0x8] sm:$0xff]
    %v1676 = vld [vmem:[%s4 + $0x8] sm:$0xff]
    %v1677 = vld [vmem:[%s4 + $0x20] sm:$0xff]
    %v1678 = vld [vmem:[%s4 + $0x38] sm:$0xff]
    %v1679 = vld [vmem:[%s4 + $0x50] sm:$0xff]
    %v1680 = vld [vmem:[%s5 + $0x1] sm:$0x1]
    %v1682 = vlaneseq
    %v1683 = vshrl.u32 %v1682, 7
    %v1684 = vsub.s32 0, %v1683
    %v1685 = vrot.slane %v1680, %v1684
    %v1688 = vsel %vm49, %v1674, 0
    %v1691 = vsel %vm49, %v1675, 0
    %1693 = vmatprep.subr.mxu0 0.0
    %1694 = vmatpush1.msra.mxu0 0.0
    %1695 = vmatprep.subr.mxu0 0.0
    %1696 = vmatpush1.msra.mxu0 0.0
    %1697 = vmatprep.subr.mxu0 0.0
    %1698 = vmatpush1.msra.mxu0 0.0
    %1699 = vmatprep.subr.mxu0 0.0
    %1700 = vmatpush1.msra.mxu0 0.0
    %1701 = vmatprep.subr.mxu0 0.0
    %1702 = vmatpush1.msra.mxu0 0.0
    %1703 = vmatprep.subr.mxu0 0.0
    %1704 = vmatpush1.msra.mxu0 0.0
    %1705 = vmatprep.subr.mxu0 0.0
    %1706 = vmatpush1.msra.mxu0 0.0
    %1707 = vmatprep.subr.mxu0 0.0
    %1708 = vmatpush1.msra.mxu0 0.0
    %1709 = vmatprep.subr.mxu0 0.0
    %1710 = vmatpush1.msra.mxu0 0.0
    %1711 = vmatprep.subr.mxu0 0.0
    %1712 = vmatpush1.msra.mxu0 0.0
    %1713 = vmatprep.subr.mxu0 0.0
    %1714 = vmatpush1.msra.mxu0 0.0
    %1715 = vmatprep.subr.mxu0 0.0
    %1716 = vmatpush1.msra.mxu0 0.0
    %1717 = vmatprep.subr.mxu0 0.0
    %1718 = vmatpush1.msra.mxu0 %v1679
    %1719 = vmatprep.subr.mxu0 0.0
    %1720 = vmatpush1.msra.mxu0 %v1678
    %1721 = vmatprep.subr.mxu0 0.0
    %1722 = vmatpush1.msra.mxu0 %v1677
    %1723 = vmatprep.subr.mxu0 0.0
    %1724 = vmatpush1.msra.mxu0 %v1676
    %1725 = vmatprep.subr.mxu0 0.0
    %1726 = vmatpush2.msra.mxu0 0.0
    %1727 = vmatprep.subr.mxu0 0.0
    %1728 = vmatpush2.msra.mxu0 0.0
    %1729 = vmatprep.subr.mxu0 0.0
    %1730 = vmatpush2.msra.mxu0 0.0
    %1731 = vmatprep.subr.mxu0 0.0
    %1732 = vmatpush2.msra.mxu0 0.0
    %1733 = vmatprep.subr.mxu0 0.0
    %1734 = vmatpush2.msra.mxu0 0.0
    %1735 = vmatprep.subr.mxu0 0.0
    %1736 = vmatpush2.msra.mxu0 0.0
    %1737 = vmatprep.subr.mxu0 0.0
    %1738 = vmatpush2.msra.mxu0 0.0
    %1739 = vmatprep.subr.mxu0 0.0
    %1740 = vmatpush2.msra.mxu0 0.0
    %1741 = vmatprep.subr.mxu0 0.0
    %1742 = vmatpush2.msra.mxu0 0.0
    %1743 = vmatprep.subr.mxu0 0.0
    %1744 = vmatpush2.msra.mxu0 0.0
    %1745 = vmatprep.subr.mxu0 0.0
    %1746 = vmatpush2.msra.mxu0 0.0
    %1747 = vmatprep.subr.mxu0 0.0
    %1748 = vmatpush2.msra.mxu0 0.0
    %1749 = vmatprep.subr.mxu0 0.0
    %1750 = vmatpush2.msra.mxu0 0.0
    %1751 = vmatprep.subr.mxu0 0.0
    %1752 = vmatpush2.msra.mxu0 0.0
    %1753 = vmatprep.subr.mxu0 0.0
    %1754 = vmatpush2.msra.mxu0 0.0
    %1755 = vmatprep.subr.mxu0 0.0
    %1756 = vmatpush2.msra.mxu0 0.0
    %1757 = vmatprep.mubr.f32.mxu0 0.0
    %1758 = vmatmul.mubr.f32.gmra.mxu0 %v1688
    %v1759 = vpop.f32.mrf.mxu0
    %v1760 = vadd.f32 %v1685, %v1759
    %v1761 = vpop.f32.mrf.mxu0
    %1762 = vmatprep.mubr.f32.mxu0 0.0
    %1763 = vmatmul.mubr.f32.gmra.mxu0 %v1691
    %v1764 = vpop.f32.mrf.mxu0
    %v1765 = vadd.f32 %v1685, %v1764
    %v1766 = vpop.f32.mrf.mxu0
    %1767 = vdwg.mxu0
    %vm1768 = vcmp.gt.f32.partialorder %v37, 0.5
    %1769 = vrot.lane.b32.xlu0 %v129, 64
    %v1770 = vpop.permute.xlu0 %1769
    %1771 = vrot.lane.b32.xlu0 %v134, 64
    %v1772 = vpop.permute.xlu0 %1771
    %v1773 = vsel %vm248, %v1770, 0
    %v1775 = vsel %vm248, %v1772, 0
    %v1778 = vsel %vm248, %v1760, 0
    %1780 = vmatprep.subr.mxu0 0.0
    %1781 = vmatpush1.xpose.msra.mxu0 0.0
    %1782 = vmatprep.subr.mxu0 0.0
    %1783 = vmatpush1.xpose.msra.mxu0 0.0
    %1784 = vmatprep.subr.mxu0 0.0
    %1785 = vmatpush1.xpose.msra.mxu0 0.0
    %1786 = vmatprep.subr.mxu0 0.0
    %1787 = vmatpush1.xpose.msra.mxu0 0.0
    %1788 = vmatprep.subr.mxu0 0.0
    %1789 = vmatpush1.xpose.msra.mxu0 0.0
    %1790 = vmatprep.subr.mxu0 0.0
    %1791 = vmatpush1.xpose.msra.mxu0 0.0
    %1792 = vmatprep.subr.mxu0 0.0
    %1793 = vmatpush1.xpose.msra.mxu0 0.0
    %1794 = vmatprep.subr.mxu0 0.0
    %1795 = vmatpush1.xpose.msra.mxu0 0.0
    %1796 = vmatprep.subr.mxu0 0.0
    %1797 = vmatpush1.xpose.msra.mxu0 0.0
    %1798 = vmatprep.subr.mxu0 0.0
    %1799 = vmatpush1.xpose.msra.mxu0 0.0
    %1800 = vmatprep.subr.mxu0 0.0
    %1801 = vmatpush1.xpose.msra.mxu0 0.0
    %1802 = vmatprep.subr.mxu0 0.0
    %1803 = vmatpush1.xpose.msra.mxu0 0.0
    %1804 = vmatprep.subr.mxu0 0.0
    %1805 = vmatpush1.xpose.msra.mxu0 0.0
    %1806 = vmatprep.subr.mxu0 0.0
    %1807 = vmatpush1.xpose.msra.mxu0 0.0
    %1808 = vmatprep.subr.mxu0 0.0
    %1809 = vmatpush1.xpose.msra.mxu0 0.0
    %1810 = vmatprep.subr.mxu0 0.0
    %1811 = vmatpush1.xpose.msra.mxu0 %v1778
    %1812 = vmatprep.subr.mxu0 0.0
    %1813 = vmatpush2.xpose.msra.mxu0 0.0
    %1814 = vmatprep.subr.mxu0 0.0
    %1815 = vmatpush2.xpose.msra.mxu0 0.0
    %1816 = vmatprep.subr.mxu0 0.0
    %1817 = vmatpush2.xpose.msra.mxu0 0.0
    %1818 = vmatprep.subr.mxu0 0.0
    %1819 = vmatpush2.xpose.msra.mxu0 0.0
    %1820 = vmatprep.subr.mxu0 0.0
    %1821 = vmatpush2.xpose.msra.mxu0 0.0
    %1822 = vmatprep.subr.mxu0 0.0
    %1823 = vmatpush2.xpose.msra.mxu0 0.0
    %1824 = vmatprep.subr.mxu0 0.0
    %1825 = vmatpush2.xpose.msra.mxu0 0.0
    %1826 = vmatprep.subr.mxu0 0.0
    %1827 = vmatpush2.xpose.msra.mxu0 0.0
    %1828 = vmatprep.subr.mxu0 0.0
    %1829 = vmatpush2.xpose.msra.mxu0 0.0
    %1830 = vmatprep.subr.mxu0 0.0
    %1831 = vmatpush2.xpose.msra.mxu0 0.0
    %1832 = vmatprep.subr.mxu0 0.0
    %1833 = vmatpush2.xpose.msra.mxu0 0.0
    %1834 = vmatprep.subr.mxu0 0.0
    %1835 = vmatpush2.xpose.msra.mxu0 0.0
    %1836 = vmatprep.subr.mxu0 0.0
    %1837 = vmatpush2.xpose.msra.mxu0 0.0
    %1838 = vmatprep.subr.mxu0 0.0
    %1839 = vmatpush2.xpose.msra.mxu0 0.0
    %1840 = vmatprep.subr.mxu0 0.0
    %1841 = vmatpush2.xpose.msra.mxu0 0.0
    %1842 = vmatprep.subr.mxu0 0.0
    %1843 = vmatpush2.xpose.msra.mxu0 0.0
    %1844 = vmatprep.mubr.f32.mxu0 0.0
    %1845 = vmatmul.mubr.f32.gmra.mxu0 %v1773
    %v1846 = vpop.f32.mrf.mxu0
    %v1847 = vadd.f32 0.0, %v1846
    %v1848 = vpop.f32.mrf.mxu0
    %1849 = vmatprep.mubr.f32.mxu0 0.0
    %1850 = vmatmul.mubr.f32.gmra.mxu0 %v1775
    %v1851 = vpop.f32.mrf.mxu0
    %v1852 = vadd.f32 0.0, %v1851
    %v1853 = vpop.f32.mrf.mxu0
    %1854 = vdwg.mxu0
    %v1855 = vsel %vm1768, 1, 0
    %v1856 = vlaneseq
    %v1857 = vshrl.u32 %v1856, 7
    %v1858 = vsub.s32 0, %v1857
    %v1859 = vrot.slane %v1855, %v1858
    %vm1860 = vcmp.eq.s32.totalorder %v1859, 1
    %v1861 = vsel %vm1860, -10000.0, %v1847
    %v1862 = vsel %vm1860, -10000.0, %v1852
    %v1863 = vsel %vm248, %v1861, -inf
    %1864 = vmax.xlane.f32.xlu0 %v1863
    %v1865 = vpop.xlane.xlu0 %1864
    %v1866 = vsel %vm248, %v1862, -inf
    %1867 = vmax.xlane.f32.xlu0 %v1866
    %v1868 = vpop.xlane.xlu0 %1867
    %v1869 = vsub.f32 %v1861, %v1865
    %v1870 = vsub.f32 %v1862, %v1868
    %v1871 = vmul.f32 %v1869, 1.442695
    %v1872 = vpow.pop %v1871
    %v1873 = vmul.f32 %v1870, 1.442695
    %v1874 = vpow.pop %v1873
    %v1875 = vsel %vm248, %v1872, 0.0
    %1876 = vadd.xlane.f32.xlu0 %v1875
    %v1877 = vpop.xlane.xlu0 %1876
    %v1878 = vsel %vm248, %v1874, 0.0
    %1879 = vadd.xlane.f32.xlu0 %v1878
    %v1880 = vpop.xlane.xlu0 %1879
    %v1881 = vrcp.pop %v1877
    %v1882 = vrcp.pop %v1880
    %1883 = vrot.lane.b32.xlu0 %v1760, 96
    %v1884 = vpop.permute.xlu0 %1883
    %v1887 = vsel %vm248, %v1872, 0
    %v1890 = vsel %vm248, %v1874, 0
    %1892 = vmatprep.subr.mxu0 0.0
    %1893 = vmatpush1.msra.mxu0 0.0
    %1894 = vmatprep.subr.mxu0 0.0
    %1895 = vmatpush1.msra.mxu0 0.0
    %1896 = vmatprep.subr.mxu0 0.0
    %1897 = vmatpush1.msra.mxu0 0.0
    %1898 = vmatprep.subr.mxu0 0.0
    %1899 = vmatpush1.msra.mxu0 0.0
    %1900 = vmatprep.subr.mxu0 0.0
    %1901 = vmatpush1.msra.mxu0 0.0
    %1902 = vmatprep.subr.mxu0 0.0
    %1903 = vmatpush1.msra.mxu0 0.0
    %1904 = vmatprep.subr.mxu0 0.0
    %1905 = vmatpush1.msra.mxu0 0.0
    %1906 = vmatprep.subr.mxu0 0.0
    %1907 = vmatpush1.msra.mxu0 0.0
    %1908 = vmatprep.subr.mxu0 0.0
    %1909 = vmatpush1.msra.mxu0 0.0
    %1910 = vmatprep.subr.mxu0 0.0
    %1911 = vmatpush1.msra.mxu0 0.0
    %1912 = vmatprep.subr.mxu0 0.0
    %1913 = vmatpush1.msra.mxu0 0.0
    %1914 = vmatprep.subr.mxu0 0.0
    %1915 = vmatpush1.msra.mxu0 0.0
    %1916 = vmatprep.subr.mxu0 0.0
    %1917 = vmatpush1.msra.mxu0 0.0
    %1918 = vmatprep.subr.mxu0 0.0
    %1919 = vmatpush1.msra.mxu0 0.0
    %1920 = vmatprep.subr.mxu0 0.0
    %1921 = vmatpush1.msra.mxu0 0.0
    %1922 = vmatprep.subr.mxu0 0.0
    %1923 = vmatpush1.msra.mxu0 %v1884
    %1924 = vmatprep.subr.mxu0 0.0
    %1925 = vmatpush2.msra.mxu0 0.0
    %1926 = vmatprep.subr.mxu0 0.0
    %1927 = vmatpush2.msra.mxu0 0.0
    %1928 = vmatprep.subr.mxu0 0.0
    %1929 = vmatpush2.msra.mxu0 0.0
    %1930 = vmatprep.subr.mxu0 0.0
    %1931 = vmatpush2.msra.mxu0 0.0
    %1932 = vmatprep.subr.mxu0 0.0
    %1933 = vmatpush2.msra.mxu0 0.0
    %1934 = vmatprep.subr.mxu0 0.0
    %1935 = vmatpush2.msra.mxu0 0.0
    %1936 = vmatprep.subr.mxu0 0.0
    %1937 = vmatpush2.msra.mxu0 0.0
    %1938 = vmatprep.subr.mxu0 0.0
    %1939 = vmatpush2.msra.mxu0 0.0
    %1940 = vmatprep.subr.mxu0 0.0
    %1941 = vmatpush2.msra.mxu0 0.0
    %1942 = vmatprep.subr.mxu0 0.0
    %1943 = vmatpush2.msra.mxu0 0.0
    %1944 = vmatprep.subr.mxu0 0.0
    %1945 = vmatpush2.msra.mxu0 0.0
    %1946 = vmatprep.subr.mxu0 0.0
    %1947 = vmatpush2.msra.mxu0 0.0
    %1948 = vmatprep.subr.mxu0 0.0
    %1949 = vmatpush2.msra.mxu0 0.0
    %1950 = vmatprep.subr.mxu0 0.0
    %1951 = vmatpush2.msra.mxu0 0.0
    %1952 = vmatprep.subr.mxu0 0.0
    %1953 = vmatpush2.msra.mxu0 0.0
    %1954 = vmatprep.subr.mxu0 0.0
    %1955 = vmatpush2.msra.mxu0 0.0
    %1956 = vmatprep.mubr.f32.mxu0 0.0
    %1957 = vmatmul.mubr.f32.gmra.mxu0 %v1887
    %v1958 = vpop.f32.mrf.mxu0
    %v1959 = vadd.f32 0.0, %v1958
    %v1960 = vpop.f32.mrf.mxu0
    %1961 = vmatprep.mubr.f32.mxu0 0.0
    %1962 = vmatmul.mubr.f32.gmra.mxu0 %v1890
    %v1963 = vpop.f32.mrf.mxu0
    %v1964 = vadd.f32 0.0, %v1963
    %v1965 = vpop.f32.mrf.mxu0
    %1966 = vdwg.mxu0
    %v1967 = vmul.f32 %v1959, %v1881
    %v1968 = vmul.f32 %v1964, %v1882
    %1969 = vst.msk [vmem:[#allocation3] sm:$0xff] %vm248, %v1967
    %1970 = vst.msk [vmem:[#allocation3 + $0x8] sm:$0xff] %vm248, %v1968
    %1971 = vrot.lane.b32.xlu0 %v129, 56
    %v1972 = vpop.permute.xlu0 %1971
    %1973 = vrot.lane.b32.xlu0 %v134, 56
    %v1974 = vpop.permute.xlu0 %1973
    %1975 = vrot.lane.b32.xlu0 %v1760, 120
    %v1976 = vpop.permute.xlu0 %1975
    %v1977 = vsel %vm248, %v1972, 0
    %v1979 = vsel %vm248, %v1974, 0
    %v1981 = vsel %vm248, %v1976, 0
    %1983 = vmatprep.subr.mxu0 0.0
    %1984 = vmatpush1.xpose.msra.mxu0 0.0
    %1985 = vmatprep.subr.mxu0 0.0
    %1986 = vmatpush1.xpose.msra.mxu0 0.0
    %1987 = vmatprep.subr.mxu0 0.0
    %1988 = vmatpush1.xpose.msra.mxu0 0.0
    %1989 = vmatprep.subr.mxu0 0.0
    %1990 = vmatpush1.xpose.msra.mxu0 0.0
    %1991 = vmatprep.subr.mxu0 0.0
    %1992 = vmatpush1.xpose.msra.mxu0 0.0
    %1993 = vmatprep.subr.mxu0 0.0
    %1994 = vmatpush1.xpose.msra.mxu0 0.0
    %1995 = vmatprep.subr.mxu0 0.0
    %1996 = vmatpush1.xpose.msra.mxu0 0.0
    %1997 = vmatprep.subr.mxu0 0.0
    %1998 = vmatpush1.xpose.msra.mxu0 0.0
    %1999 = vmatprep.subr.mxu0 0.0
    %2000 = vmatpush1.xpose.msra.mxu0 0.0
    %2001 = vmatprep.subr.mxu0 0.0
    %2002 = vmatpush1.xpose.msra.mxu0 0.0
    %2003 = vmatprep.subr.mxu0 0.0
    %2004 = vmatpush1.xpose.msra.mxu0 0.0
    %2005 = vmatprep.subr.mxu0 0.0
    %2006 = vmatpush1.xpose.msra.mxu0 0.0
    %2007 = vmatprep.subr.mxu0 0.0
    %2008 = vmatpush1.xpose.msra.mxu0 0.0
    %2009 = vmatprep.subr.mxu0 0.0
    %2010 = vmatpush1.xpose.msra.mxu0 0.0
    %2011 = vmatprep.subr.mxu0 0.0
    %2012 = vmatpush1.xpose.msra.mxu0 0.0
    %2013 = vmatprep.subr.mxu0 0.0
    %2014 = vmatpush1.xpose.msra.mxu0 %v1981
    %2015 = vmatprep.subr.mxu0 0.0
    %2016 = vmatpush2.xpose.msra.mxu0 0.0
    %2017 = vmatprep.subr.mxu0 0.0
    %2018 = vmatpush2.xpose.msra.mxu0 0.0
    %2019 = vmatprep.subr.mxu0 0.0
    %2020 = vmatpush2.xpose.msra.mxu0 0.0
    %2021 = vmatprep.subr.mxu0 0.0
    %2022 = vmatpush2.xpose.msra.mxu0 0.0
    %2023 = vmatprep.subr.mxu0 0.0
    %2024 = vmatpush2.xpose.msra.mxu0 0.0
    %2025 = vmatprep.subr.mxu0 0.0
    %2026 = vmatpush2.xpose.msra.mxu0 0.0
    %2027 = vmatprep.subr.mxu0 0.0
    %2028 = vmatpush2.xpose.msra.mxu0 0.0
    %2029 = vmatprep.subr.mxu0 0.0
    %2030 = vmatpush2.xpose.msra.mxu0 0.0
    %2031 = vmatprep.subr.mxu0 0.0
    %2032 = vmatpush2.xpose.msra.mxu0 0.0
    %2033 = vmatprep.subr.mxu0 0.0
    %2034 = vmatpush2.xpose.msra.mxu0 0.0
    %2035 = vmatprep.subr.mxu0 0.0
    %2036 = vmatpush2.xpose.msra.mxu0 0.0
    %2037 = vmatprep.subr.mxu0 0.0
    %2038 = vmatpush2.xpose.msra.mxu0 0.0
    %2039 = vmatprep.subr.mxu0 0.0
    %2040 = vmatpush2.xpose.msra.mxu0 0.0
    %2041 = vmatprep.subr.mxu0 0.0
    %2042 = vmatpush2.xpose.msra.mxu0 0.0
    %2043 = vmatprep.subr.mxu0 0.0
    %2044 = vmatpush2.xpose.msra.mxu0 0.0
    %2045 = vmatprep.subr.mxu0 0.0
    %2046 = vmatpush2.xpose.msra.mxu0 0.0
    %2047 = vmatprep.mubr.f32.mxu0 0.0
    %2048 = vmatmul.mubr.f32.gmra.mxu0 %v1977
    %v2049 = vpop.f32.mrf.mxu0
    %v2050 = vadd.f32 0.0, %v2049
    %v2051 = vpop.f32.mrf.mxu0
    %2052 = vmatprep.mubr.f32.mxu0 0.0
    %2053 = vmatmul.mubr.f32.gmra.mxu0 %v1979
    %v2054 = vpop.f32.mrf.mxu0
    %v2055 = vadd.f32 0.0, %v2054
    %v2056 = vpop.f32.mrf.mxu0
    %2057 = vdwg.mxu0
    %v2058 = vsel %vm1860, -10000.0, %v2050
    %v2059 = vsel %vm1860, -10000.0, %v2055
    %v2060 = vsel %vm248, %v2058, -inf
    %2061 = vmax.xlane.f32.xlu0 %v2060
    %v2062 = vpop.xlane.xlu0 %2061
    %v2063 = vsel %vm248, %v2059, -inf
    %2064 = vmax.xlane.f32.xlu0 %v2063
    %v2065 = vpop.xlane.xlu0 %2064
    %v2066 = vsub.f32 %v2058, %v2062
    %v2067 = vsub.f32 %v2059, %v2065
    %v2068 = vmul.f32 %v2066, 1.442695
    %v2069 = vpow.pop %v2068
    %v2070 = vmul.f32 %v2067, 1.442695
    %v2071 = vpow.pop %v2070
    %v2072 = vsel %vm248, %v2069, 0.0
    %2073 = vadd.xlane.f32.xlu0 %v2072
    %v2074 = vpop.xlane.xlu0 %2073
    %v2075 = vsel %vm248, %v2071, 0.0
    %2076 = vadd.xlane.f32.xlu0 %v2075
    %v2077 = vpop.xlane.xlu0 %2076
    %v2078 = vrcp.pop %v2074
    %v2079 = vrcp.pop %v2077
    %2080 = vrot.lane.b32.xlu0 %v1760, 88
    %v2081 = vpop.permute.xlu0 %2080
    %v2084 = vsel %vm248, %v2069, 0
    %v2087 = vsel %vm248, %v2071, 0
    %2089 = vmatprep.subr.mxu0 0.0
    %2090 = vmatpush1.msra.mxu0 0.0
    %2091 = vmatprep.subr.mxu0 0.0
    %2092 = vmatpush1.msra.mxu0 0.0
    %2093 = vmatprep.subr.mxu0 0.0
    %2094 = vmatpush1.msra.mxu0 0.0
    %2095 = vmatprep.subr.mxu0 0.0
    %2096 = vmatpush1.msra.mxu0 0.0
    %2097 = vmatprep.subr.mxu0 0.0
    %2098 = vmatpush1.msra.mxu0 0.0
    %2099 = vmatprep.subr.mxu0 0.0
    %2100 = vmatpush1.msra.mxu0 0.0
    %2101 = vmatprep.subr.mxu0 0.0
    %2102 = vmatpush1.msra.mxu0 0.0
    %2103 = vmatprep.subr.mxu0 0.0
    %2104 = vmatpush1.msra.mxu0 0.0
    %2105 = vmatprep.subr.mxu0 0.0
    %2106 = vmatpush1.msra.mxu0 0.0
    %2107 = vmatprep.subr.mxu0 0.0
    %2108 = vmatpush1.msra.mxu0 0.0
    %2109 = vmatprep.subr.mxu0 0.0
    %2110 = vmatpush1.msra.mxu0 0.0
    %2111 = vmatprep.subr.mxu0 0.0
    %2112 = vmatpush1.msra.mxu0 0.0
    %2113 = vmatprep.subr.mxu0 0.0
    %2114 = vmatpush1.msra.mxu0 0.0
    %2115 = vmatprep.subr.mxu0 0.0
    %2116 = vmatpush1.msra.mxu0 0.0
    %2117 = vmatprep.subr.mxu0 0.0
    %2118 = vmatpush1.msra.mxu0 0.0
    %2119 = vmatprep.subr.mxu0 0.0
    %2120 = vmatpush1.msra.mxu0 %v2081
    %2121 = vmatprep.subr.mxu0 0.0
    %2122 = vmatpush2.msra.mxu0 0.0
    %2123 = vmatprep.subr.mxu0 0.0
    %2124 = vmatpush2.msra.mxu0 0.0
    %2125 = vmatprep.subr.mxu0 0.0
    %2126 = vmatpush2.msra.mxu0 0.0
    %2127 = vmatprep.subr.mxu0 0.0
    %2128 = vmatpush2.msra.mxu0 0.0
    %2129 = vmatprep.subr.mxu0 0.0
    %2130 = vmatpush2.msra.mxu0 0.0
    %2131 = vmatprep.subr.mxu0 0.0
    %2132 = vmatpush2.msra.mxu0 0.0
    %2133 = vmatprep.subr.mxu0 0.0
    %2134 = vmatpush2.msra.mxu0 0.0
    %2135 = vmatprep.subr.mxu0 0.0
    %2136 = vmatpush2.msra.mxu0 0.0
    %2137 = vmatprep.subr.mxu0 0.0
    %2138 = vmatpush2.msra.mxu0 0.0
    %2139 = vmatprep.subr.mxu0 0.0
    %2140 = vmatpush2.msra.mxu0 0.0
    %2141 = vmatprep.subr.mxu0 0.0
    %2142 = vmatpush2.msra.mxu0 0.0
    %2143 = vmatprep.subr.mxu0 0.0
    %2144 = vmatpush2.msra.mxu0 0.0
    %2145 = vmatprep.subr.mxu0 0.0
    %2146 = vmatpush2.msra.mxu0 0.0
    %2147 = vmatprep.subr.mxu0 0.0
    %2148 = vmatpush2.msra.mxu0 0.0
    %2149 = vmatprep.subr.mxu0 0.0
    %2150 = vmatpush2.msra.mxu0 0.0
    %2151 = vmatprep.subr.mxu0 0.0
    %2152 = vmatpush2.msra.mxu0 0.0
    %2153 = vmatprep.mubr.f32.mxu0 0.0
    %2154 = vmatmul.mubr.f32.gmra.mxu0 %v2084
    %v2155 = vpop.f32.mrf.mxu0
    %v2156 = vadd.f32 0.0, %v2155
    %v2157 = vpop.f32.mrf.mxu0
    %2158 = vmatprep.mubr.f32.mxu0 0.0
    %2159 = vmatmul.mubr.f32.gmra.mxu0 %v2087
    %v2160 = vpop.f32.mrf.mxu0
    %v2161 = vadd.f32 0.0, %v2160
    %v2162 = vpop.f32.mrf.mxu0
    %2163 = vdwg.mxu0
    %v2164 = vmul.f32 %v2156, %v2078
    %v2165 = vmul.f32 %v2161, %v2079
    %2168 = vrot.lane.b32.xlu0 %v2164, 8
    %v2169 = vpop.permute.xlu0 %2168
    %2170 = vrot.lane.b32.xlu0 %v2165, 8
    %v2171 = vpop.permute.xlu0 %2170
    %2174 = vst.msk [vmem:[#allocation3] sm:$0xff] %vm604, %v2169
    %2175 = vst.msk [vmem:[#allocation3 + $0x8] sm:$0xff] %vm604, %v2171
    %2176 = vrot.lane.b32.xlu0 %v129, 48
    %v2177 = vpop.permute.xlu0 %2176
    %2178 = vrot.lane.b32.xlu0 %v134, 48
    %v2179 = vpop.permute.xlu0 %2178
    %2180 = vrot.lane.b32.xlu0 %v1760, 112
    %v2181 = vpop.permute.xlu0 %2180
    %v2182 = vsel %vm248, %v2177, 0
    %v2184 = vsel %vm248, %v2179, 0
    %v2186 = vsel %vm248, %v2181, 0
    %2188 = vmatprep.subr.mxu0 0.0
    %2189 = vmatpush1.xpose.msra.mxu0 0.0
    %2190 = vmatprep.subr.mxu0 0.0
    %2191 = vmatpush1.xpose.msra.mxu0 0.0
    %2192 = vmatprep.subr.mxu0 0.0
    %2193 = vmatpush1.xpose.msra.mxu0 0.0
    %2194 = vmatprep.subr.mxu0 0.0
    %2195 = vmatpush1.xpose.msra.mxu0 0.0
    %2196 = vmatprep.subr.mxu0 0.0
    %2197 = vmatpush1.xpose.msra.mxu0 0.0
    %2198 = vmatprep.subr.mxu0 0.0
    %2199 = vmatpush1.xpose.msra.mxu0 0.0
    %2200 = vmatprep.subr.mxu0 0.0
    %2201 = vmatpush1.xpose.msra.mxu0 0.0
    %2202 = vmatprep.subr.mxu0 0.0
    %2203 = vmatpush1.xpose.msra.mxu0 0.0
    %2204 = vmatprep.subr.mxu0 0.0
    %2205 = vmatpush1.xpose.msra.mxu0 0.0
    %2206 = vmatprep.subr.mxu0 0.0
    %2207 = vmatpush1.xpose.msra.mxu0 0.0
    %2208 = vmatprep.subr.mxu0 0.0
    %2209 = vmatpush1.xpose.msra.mxu0 0.0
    %2210 = vmatprep.subr.mxu0 0.0
    %2211 = vmatpush1.xpose.msra.mxu0 0.0
    %2212 = vmatprep.subr.mxu0 0.0
    %2213 = vmatpush1.xpose.msra.mxu0 0.0
    %2214 = vmatprep.subr.mxu0 0.0
    %2215 = vmatpush1.xpose.msra.mxu0 0.0
    %2216 = vmatprep.subr.mxu0 0.0
    %2217 = vmatpush1.xpose.msra.mxu0 0.0
    %2218 = vmatprep.subr.mxu0 0.0
    %2219 = vmatpush1.xpose.msra.mxu0 %v2186
    %2220 = vmatprep.subr.mxu0 0.0
    %2221 = vmatpush2.xpose.msra.mxu0 0.0
    %2222 = vmatprep.subr.mxu0 0.0
    %2223 = vmatpush2.xpose.msra.mxu0 0.0
    %2224 = vmatprep.subr.mxu0 0.0
    %2225 = vmatpush2.xpose.msra.mxu0 0.0
    %2226 = vmatprep.subr.mxu0 0.0
    %2227 = vmatpush2.xpose.msra.mxu0 0.0
    %2228 = vmatprep.subr.mxu0 0.0
    %2229 = vmatpush2.xpose.msra.mxu0 0.0
    %2230 = vmatprep.subr.mxu0 0.0
    %2231 = vmatpush2.xpose.msra.mxu0 0.0
    %2232 = vmatprep.subr.mxu0 0.0
    %2233 = vmatpush2.xpose.msra.mxu0 0.0
    %2234 = vmatprep.subr.mxu0 0.0
    %2235 = vmatpush2.xpose.msra.mxu0 0.0
    %2236 = vmatprep.subr.mxu0 0.0
    %2237 = vmatpush2.xpose.msra.mxu0 0.0
    %2238 = vmatprep.subr.mxu0 0.0
    %2239 = vmatpush2.xpose.msra.mxu0 0.0
    %2240 = vmatprep.subr.mxu0 0.0
    %2241 = vmatpush2.xpose.msra.mxu0 0.0
    %2242 = vmatprep.subr.mxu0 0.0
    %2243 = vmatpush2.xpose.msra.mxu0 0.0
    %2244 = vmatprep.subr.mxu0 0.0
    %2245 = vmatpush2.xpose.msra.mxu0 0.0
    %2246 = vmatprep.subr.mxu0 0.0
    %2247 = vmatpush2.xpose.msra.mxu0 0.0
    %2248 = vmatprep.subr.mxu0 0.0
    %2249 = vmatpush2.xpose.msra.mxu0 0.0
    %2250 = vmatprep.subr.mxu0 0.0
    %2251 = vmatpush2.xpose.msra.mxu0 0.0
    %2252 = vmatprep.mubr.f32.mxu0 0.0
    %2253 = vmatmul.mubr.f32.gmra.mxu0 %v2182
    %v2254 = vpop.f32.mrf.mxu0
    %v2255 = vadd.f32 0.0, %v2254
    %v2256 = vpop.f32.mrf.mxu0
    %2257 = vmatprep.mubr.f32.mxu0 0.0
    %2258 = vmatmul.mubr.f32.gmra.mxu0 %v2184
    %v2259 = vpop.f32.mrf.mxu0
    %v2260 = vadd.f32 0.0, %v2259
    %v2261 = vpop.f32.mrf.mxu0
    %2262 = vdwg.mxu0
    %v2263 = vsel %vm1860, -10000.0, %v2255
    %v2264 = vsel %vm1860, -10000.0, %v2260
    %v2265 = vsel %vm248, %v2263, -inf
    %2266 = vmax.xlane.f32.xlu0 %v2265
    %v2267 = vpop.xlane.xlu0 %2266
    %v2268 = vsel %vm248, %v2264, -inf
    %2269 = vmax.xlane.f32.xlu0 %v2268
    %v2270 = vpop.xlane.xlu0 %2269
    %v2271 = vsub.f32 %v2263, %v2267
    %v2272 = vsub.f32 %v2264, %v2270
    %v2273 = vmul.f32 %v2271, 1.442695
    %v2274 = vpow.pop %v2273
    %v2275 = vmul.f32 %v2272, 1.442695
    %v2276 = vpow.pop %v2275
    %v2277 = vsel %vm248, %v2274, 0.0
    %2278 = vadd.xlane.f32.xlu0 %v2277
    %v2279 = vpop.xlane.xlu0 %2278
    %v2280 = vsel %vm248, %v2276, 0.0
    %2281 = vadd.xlane.f32.xlu0 %v2280
    %v2282 = vpop.xlane.xlu0 %2281
    %v2283 = vrcp.pop %v2279
    %v2284 = vrcp.pop %v2282
    %2285 = vrot.lane.b32.xlu0 %v1760, 80
    %v2286 = vpop.permute.xlu0 %2285
    %v2289 = vsel %vm248, %v2274, 0
    %v2292 = vsel %vm248, %v2276, 0
    %2294 = vmatprep.subr.mxu0 0.0
    %2295 = vmatpush1.msra.mxu0 0.0
    %2296 = vmatprep.subr.mxu0 0.0
    %2297 = vmatpush1.msra.mxu0 0.0
    %2298 = vmatprep.subr.mxu0 0.0
    %2299 = vmatpush1.msra.mxu0 0.0
    %2300 = vmatprep.subr.mxu0 0.0
    %2301 = vmatpush1.msra.mxu0 0.0
    %2302 = vmatprep.subr.mxu0 0.0
    %2303 = vmatpush1.msra.mxu0 0.0
    %2304 = vmatprep.subr.mxu0 0.0
    %2305 = vmatpush1.msra.mxu0 0.0
    %2306 = vmatprep.subr.mxu0 0.0
    %2307 = vmatpush1.msra.mxu0 0.0
    %2308 = vmatprep.subr.mxu0 0.0
    %2309 = vmatpush1.msra.mxu0 0.0
    %2310 = vmatprep.subr.mxu0 0.0
    %2311 = vmatpush1.msra.mxu0 0.0
    %2312 = vmatprep.subr.mxu0 0.0
    %2313 = vmatpush1.msra.mxu0 0.0
    %2314 = vmatprep.subr.mxu0 0.0
    %2315 = vmatpush1.msra.mxu0 0.0
    %2316 = vmatprep.subr.mxu0 0.0
    %2317 = vmatpush1.msra.mxu0 0.0
    %2318 = vmatprep.subr.mxu0 0.0
    %2319 = vmatpush1.msra.mxu0 0.0
    %2320 = vmatprep.subr.mxu0 0.0
    %2321 = vmatpush1.msra.mxu0 0.0
    %2322 = vmatprep.subr.mxu0 0.0
    %2323 = vmatpush1.msra.mxu0 0.0
    %2324 = vmatprep.subr.mxu0 0.0
    %2325 = vmatpush1.msra.mxu0 %v2286
    %2326 = vmatprep.subr.mxu0 0.0
    %2327 = vmatpush2.msra.mxu0 0.0
    %2328 = vmatprep.subr.mxu0 0.0
    %2329 = vmatpush2.msra.mxu0 0.0
    %2330 = vmatprep.subr.mxu0 0.0
    %2331 = vmatpush2.msra.mxu0 0.0
    %2332 = vmatprep.subr.mxu0 0.0
    %2333 = vmatpush2.msra.mxu0 0.0
    %2334 = vmatprep.subr.mxu0 0.0
    %2335 = vmatpush2.msra.mxu0 0.0
    %2336 = vmatprep.subr.mxu0 0.0
    %2337 = vmatpush2.msra.mxu0 0.0
    %2338 = vmatprep.subr.mxu0 0.0
    %2339 = vmatpush2.msra.mxu0 0.0
    %2340 = vmatprep.subr.mxu0 0.0
    %2341 = vmatpush2.msra.mxu0 0.0
    %2342 = vmatprep.subr.mxu0 0.0
    %2343 = vmatpush2.msra.mxu0 0.0
    %2344 = vmatprep.subr.mxu0 0.0
    %2345 = vmatpush2.msra.mxu0 0.0
    %2346 = vmatprep.subr.mxu0 0.0
    %2347 = vmatpush2.msra.mxu0 0.0
    %2348 = vmatprep.subr.mxu0 0.0
    %2349 = vmatpush2.msra.mxu0 0.0
    %2350 = vmatprep.subr.mxu0 0.0
    %2351 = vmatpush2.msra.mxu0 0.0
    %2352 = vmatprep.subr.mxu0 0.0
    %2353 = vmatpush2.msra.mxu0 0.0
    %2354 = vmatprep.subr.mxu0 0.0
    %2355 = vmatpush2.msra.mxu0 0.0
    %2356 = vmatprep.subr.mxu0 0.0
    %2357 = vmatpush2.msra.mxu0 0.0
    %2358 = vmatprep.mubr.f32.mxu0 0.0
    %2359 = vmatmul.mubr.f32.gmra.mxu0 %v2289
    %v2360 = vpop.f32.mrf.mxu0
    %v2361 = vadd.f32 0.0, %v2360
    %v2362 = vpop.f32.mrf.mxu0
    %2363 = vmatprep.mubr.f32.mxu0 0.0
    %2364 = vmatmul.mubr.f32.gmra.mxu0 %v2292
    %v2365 = vpop.f32.mrf.mxu0
    %v2366 = vadd.f32 0.0, %v2365
    %v2367 = vpop.f32.mrf.mxu0
    %2368 = vdwg.mxu0
    %v2369 = vmul.f32 %v2361, %v2283
    %v2370 = vmul.f32 %v2366, %v2284
    %2373 = vrot.lane.b32.xlu0 %v2369, 16
    %v2374 = vpop.permute.xlu0 %2373
    %2375 = vrot.lane.b32.xlu0 %v2370, 16
    %v2376 = vpop.permute.xlu0 %2375
    %2379 = vst.msk [vmem:[#allocation3] sm:$0xff] %vm783, %v2374
    %2380 = vst.msk [vmem:[#allocation3 + $0x8] sm:$0xff] %vm783, %v2376
    %2381 = vrot.lane.b32.xlu0 %v129, 40
    %v2382 = vpop.permute.xlu0 %2381
    %2383 = vrot.lane.b32.xlu0 %v134, 40
    %v2384 = vpop.permute.xlu0 %2383
    %2385 = vrot.lane.b32.xlu0 %v1760, 104
    %v2386 = vpop.permute.xlu0 %2385
    %v2387 = vsel %vm248, %v2382, 0
    %v2389 = vsel %vm248, %v2384, 0
    %v2391 = vsel %vm248, %v2386, 0
    %2393 = vmatprep.subr.mxu0 0.0
    %2394 = vmatpush1.xpose.msra.mxu0 0.0
    %2395 = vmatprep.subr.mxu0 0.0
    %2396 = vmatpush1.xpose.msra.mxu0 0.0
    %2397 = vmatprep.subr.mxu0 0.0
    %2398 = vmatpush1.xpose.msra.mxu0 0.0
    %2399 = vmatprep.subr.mxu0 0.0
    %2400 = vmatpush1.xpose.msra.mxu0 0.0
    %2401 = vmatprep.subr.mxu0 0.0
    %2402 = vmatpush1.xpose.msra.mxu0 0.0
    %2403 = vmatprep.subr.mxu0 0.0
    %2404 = vmatpush1.xpose.msra.mxu0 0.0
    %2405 = vmatprep.subr.mxu0 0.0
    %2406 = vmatpush1.xpose.msra.mxu0 0.0
    %2407 = vmatprep.subr.mxu0 0.0
    %2408 = vmatpush1.xpose.msra.mxu0 0.0
    %2409 = vmatprep.subr.mxu0 0.0
    %2410 = vmatpush1.xpose.msra.mxu0 0.0
    %2411 = vmatprep.subr.mxu0 0.0
    %2412 = vmatpush1.xpose.msra.mxu0 0.0
    %2413 = vmatprep.subr.mxu0 0.0
    %2414 = vmatpush1.xpose.msra.mxu0 0.0
    %2415 = vmatprep.subr.mxu0 0.0
    %2416 = vmatpush1.xpose.msra.mxu0 0.0
    %2417 = vmatprep.subr.mxu0 0.0
    %2418 = vmatpush1.xpose.msra.mxu0 0.0
    %2419 = vmatprep.subr.mxu0 0.0
    %2420 = vmatpush1.xpose.msra.mxu0 0.0
    %2421 = vmatprep.subr.mxu0 0.0
    %2422 = vmatpush1.xpose.msra.mxu0 0.0
    %2423 = vmatprep.subr.mxu0 0.0
    %2424 = vmatpush1.xpose.msra.mxu0 %v2391
    %2425 = vmatprep.subr.mxu0 0.0
    %2426 = vmatpush2.xpose.msra.mxu0 0.0
    %2427 = vmatprep.subr.mxu0 0.0
    %2428 = vmatpush2.xpose.msra.mxu0 0.0
    %2429 = vmatprep.subr.mxu0 0.0
    %2430 = vmatpush2.xpose.msra.mxu0 0.0
    %2431 = vmatprep.subr.mxu0 0.0
    %2432 = vmatpush2.xpose.msra.mxu0 0.0
    %2433 = vmatprep.subr.mxu0 0.0
    %2434 = vmatpush2.xpose.msra.mxu0 0.0
    %2435 = vmatprep.subr.mxu0 0.0
    %2436 = vmatpush2.xpose.msra.mxu0 0.0
    %2437 = vmatprep.subr.mxu0 0.0
    %2438 = vmatpush2.xpose.msra.mxu0 0.0
    %2439 = vmatprep.subr.mxu0 0.0
    %2440 = vmatpush2.xpose.msra.mxu0 0.0
    %2441 = vmatprep.subr.mxu0 0.0
    %2442 = vmatpush2.xpose.msra.mxu0 0.0
    %2443 = vmatprep.subr.mxu0 0.0
    %2444 = vmatpush2.xpose.msra.mxu0 0.0
    %2445 = vmatprep.subr.mxu0 0.0
    %2446 = vmatpush2.xpose.msra.mxu0 0.0
    %2447 = vmatprep.subr.mxu0 0.0
    %2448 = vmatpush2.xpose.msra.mxu0 0.0
    %2449 = vmatprep.subr.mxu0 0.0
    %2450 = vmatpush2.xpose.msra.mxu0 0.0
    %2451 = vmatprep.subr.mxu0 0.0
    %2452 = vmatpush2.xpose.msra.mxu0 0.0
    %2453 = vmatprep.subr.mxu0 0.0
    %2454 = vmatpush2.xpose.msra.mxu0 0.0
    %2455 = vmatprep.subr.mxu0 0.0
    %2456 = vmatpush2.xpose.msra.mxu0 0.0
    %2457 = vmatprep.mubr.f32.mxu0 0.0
    %2458 = vmatmul.mubr.f32.gmra.mxu0 %v2387
    %v2459 = vpop.f32.mrf.mxu0
    %v2460 = vadd.f32 0.0, %v2459
    %v2461 = vpop.f32.mrf.mxu0
    %2462 = vmatprep.mubr.f32.mxu0 0.0
    %2463 = vmatmul.mubr.f32.gmra.mxu0 %v2389
    %v2464 = vpop.f32.mrf.mxu0
    %v2465 = vadd.f32 0.0, %v2464
    %v2466 = vpop.f32.mrf.mxu0
    %2467 = vdwg.mxu0
    %v2468 = vsel %vm1860, -10000.0, %v2460
    %v2469 = vsel %vm1860, -10000.0, %v2465
    %v2470 = vsel %vm248, %v2468, -inf
    %2471 = vmax.xlane.f32.xlu0 %v2470
    %v2472 = vpop.xlane.xlu0 %2471
    %v2473 = vsel %vm248, %v2469, -inf
    %2474 = vmax.xlane.f32.xlu0 %v2473
    %v2475 = vpop.xlane.xlu0 %2474
    %v2476 = vsub.f32 %v2468, %v2472
    %v2477 = vsub.f32 %v2469, %v2475
    %v2478 = vmul.f32 %v2476, 1.442695
    %v2479 = vpow.pop %v2478
    %v2480 = vmul.f32 %v2477, 1.442695
    %v2481 = vpow.pop %v2480
    %v2482 = vsel %vm248, %v2479, 0.0
    %2483 = vadd.xlane.f32.xlu0 %v2482
    %v2484 = vpop.xlane.xlu0 %2483
    %v2485 = vsel %vm248, %v2481, 0.0
    %2486 = vadd.xlane.f32.xlu0 %v2485
    %v2487 = vpop.xlane.xlu0 %2486
    %v2488 = vrcp.pop %v2484
    %v2489 = vrcp.pop %v2487
    %2490 = vrot.lane.b32.xlu0 %v1760, 72
    %v2491 = vpop.permute.xlu0 %2490
    %v2494 = vsel %vm248, %v2479, 0
    %v2497 = vsel %vm248, %v2481, 0
    %2499 = vmatprep.subr.mxu0 0.0
    %2500 = vmatpush1.msra.mxu0 0.0
    %2501 = vmatprep.subr.mxu0 0.0
    %2502 = vmatpush1.msra.mxu0 0.0
    %2503 = vmatprep.subr.mxu0 0.0
    %2504 = vmatpush1.msra.mxu0 0.0
    %2505 = vmatprep.subr.mxu0 0.0
    %2506 = vmatpush1.msra.mxu0 0.0
    %2507 = vmatprep.subr.mxu0 0.0
    %2508 = vmatpush1.msra.mxu0 0.0
    %2509 = vmatprep.subr.mxu0 0.0
    %2510 = vmatpush1.msra.mxu0 0.0
    %2511 = vmatprep.subr.mxu0 0.0
    %2512 = vmatpush1.msra.mxu0 0.0
    %2513 = vmatprep.subr.mxu0 0.0
    %2514 = vmatpush1.msra.mxu0 0.0
    %2515 = vmatprep.subr.mxu0 0.0
    %2516 = vmatpush1.msra.mxu0 0.0
    %2517 = vmatprep.subr.mxu0 0.0
    %2518 = vmatpush1.msra.mxu0 0.0
    %2519 = vmatprep.subr.mxu0 0.0
    %2520 = vmatpush1.msra.mxu0 0.0
    %2521 = vmatprep.subr.mxu0 0.0
    %2522 = vmatpush1.msra.mxu0 0.0
    %2523 = vmatprep.subr.mxu0 0.0
    %2524 = vmatpush1.msra.mxu0 0.0
    %2525 = vmatprep.subr.mxu0 0.0
    %2526 = vmatpush1.msra.mxu0 0.0
    %2527 = vmatprep.subr.mxu0 0.0
    %2528 = vmatpush1.msra.mxu0 0.0
    %2529 = vmatprep.subr.mxu0 0.0
    %2530 = vmatpush1.msra.mxu0 %v2491
    %2531 = vmatprep.subr.mxu0 0.0
    %2532 = vmatpush2.msra.mxu0 0.0
    %2533 = vmatprep.subr.mxu0 0.0
    %2534 = vmatpush2.msra.mxu0 0.0
    %2535 = vmatprep.subr.mxu0 0.0
    %2536 = vmatpush2.msra.mxu0 0.0
    %2537 = vmatprep.subr.mxu0 0.0
    %2538 = vmatpush2.msra.mxu0 0.0
    %2539 = vmatprep.subr.mxu0 0.0
    %2540 = vmatpush2.msra.mxu0 0.0
    %2541 = vmatprep.subr.mxu0 0.0
    %2542 = vmatpush2.msra.mxu0 0.0
    %2543 = vmatprep.subr.mxu0 0.0
    %2544 = vmatpush2.msra.mxu0 0.0
    %2545 = vmatprep.subr.mxu0 0.0
    %2546 = vmatpush2.msra.mxu0 0.0
    %2547 = vmatprep.subr.mxu0 0.0
    %2548 = vmatpush2.msra.mxu0 0.0
    %2549 = vmatprep.subr.mxu0 0.0
    %2550 = vmatpush2.msra.mxu0 0.0
    %2551 = vmatprep.subr.mxu0 0.0
    %2552 = vmatpush2.msra.mxu0 0.0
    %2553 = vmatprep.subr.mxu0 0.0
    %2554 = vmatpush2.msra.mxu0 0.0
    %2555 = vmatprep.subr.mxu0 0.0
    %2556 = vmatpush2.msra.mxu0 0.0
    %2557 = vmatprep.subr.mxu0 0.0
    %2558 = vmatpush2.msra.mxu0 0.0
    %2559 = vmatprep.subr.mxu0 0.0
    %2560 = vmatpush2.msra.mxu0 0.0
    %2561 = vmatprep.subr.mxu0 0.0
    %2562 = vmatpush2.msra.mxu0 0.0
    %2563 = vmatprep.mubr.f32.mxu0 0.0
    %2564 = vmatmul.mubr.f32.gmra.mxu0 %v2494
    %v2565 = vpop.f32.mrf.mxu0
    %v2566 = vadd.f32 0.0, %v2565
    %v2567 = vpop.f32.mrf.mxu0
    %2568 = vmatprep.mubr.f32.mxu0 0.0
    %2569 = vmatmul.mubr.f32.gmra.mxu0 %v2497
    %v2570 = vpop.f32.mrf.mxu0
    %v2571 = vadd.f32 0.0, %v2570
    %v2572 = vpop.f32.mrf.mxu0
    %2573 = vdwg.mxu0
    %v2574 = vmul.f32 %v2566, %v2488
    %v2575 = vmul.f32 %v2571, %v2489
    %2578 = vrot.lane.b32.xlu0 %v2574, 24
    %v2579 = vpop.permute.xlu0 %2578
    %2580 = vrot.lane.b32.xlu0 %v2575, 24
    %v2581 = vpop.permute.xlu0 %2580
    %2584 = vst.msk [vmem:[#allocation3] sm:$0xff] %vm962, %v2579
    %2585 = vst.msk [vmem:[#allocation3 + $0x8] sm:$0xff] %vm962, %v2581
    %2586 = vrot.lane.b32.xlu0 %v139, 64
    %v2587 = vpop.permute.xlu0 %2586
    %2588 = vrot.lane.b32.xlu0 %v144, 64
    %v2589 = vpop.permute.xlu0 %2588
    %v2590 = vsel %vm248, %v2587, 0
    %v2592 = vsel %vm248, %v2589, 0
    %v2595 = vsel %vm248, %v1765, 0
    %2597 = vmatprep.subr.mxu0 0.0
    %2598 = vmatpush1.xpose.msra.mxu0 0.0
    %2599 = vmatprep.subr.mxu0 0.0
    %2600 = vmatpush1.xpose.msra.mxu0 0.0
    %2601 = vmatprep.subr.mxu0 0.0
    %2602 = vmatpush1.xpose.msra.mxu0 0.0
    %2603 = vmatprep.subr.mxu0 0.0
    %2604 = vmatpush1.xpose.msra.mxu0 0.0
    %2605 = vmatprep.subr.mxu0 0.0
    %2606 = vmatpush1.xpose.msra.mxu0 0.0
    %2607 = vmatprep.subr.mxu0 0.0
    %2608 = vmatpush1.xpose.msra.mxu0 0.0
    %2609 = vmatprep.subr.mxu0 0.0
    %2610 = vmatpush1.xpose.msra.mxu0 0.0
    %2611 = vmatprep.subr.mxu0 0.0
    %2612 = vmatpush1.xpose.msra.mxu0 0.0
    %2613 = vmatprep.subr.mxu0 0.0
    %2614 = vmatpush1.xpose.msra.mxu0 0.0
    %2615 = vmatprep.subr.mxu0 0.0
    %2616 = vmatpush1.xpose.msra.mxu0 0.0
    %2617 = vmatprep.subr.mxu0 0.0
    %2618 = vmatpush1.xpose.msra.mxu0 0.0
    %2619 = vmatprep.subr.mxu0 0.0
    %2620 = vmatpush1.xpose.msra.mxu0 0.0
    %2621 = vmatprep.subr.mxu0 0.0
    %2622 = vmatpush1.xpose.msra.mxu0 0.0
    %2623 = vmatprep.subr.mxu0 0.0
    %2624 = vmatpush1.xpose.msra.mxu0 0.0
    %2625 = vmatprep.subr.mxu0 0.0
    %2626 = vmatpush1.xpose.msra.mxu0 0.0
    %2627 = vmatprep.subr.mxu0 0.0
    %2628 = vmatpush1.xpose.msra.mxu0 %v2595
    %2629 = vmatprep.subr.mxu0 0.0
    %2630 = vmatpush2.xpose.msra.mxu0 0.0
    %2631 = vmatprep.subr.mxu0 0.0
    %2632 = vmatpush2.xpose.msra.mxu0 0.0
    %2633 = vmatprep.subr.mxu0 0.0
    %2634 = vmatpush2.xpose.msra.mxu0 0.0
    %2635 = vmatprep.subr.mxu0 0.0
    %2636 = vmatpush2.xpose.msra.mxu0 0.0
    %2637 = vmatprep.subr.mxu0 0.0
    %2638 = vmatpush2.xpose.msra.mxu0 0.0
    %2639 = vmatprep.subr.mxu0 0.0
    %2640 = vmatpush2.xpose.msra.mxu0 0.0
    %2641 = vmatprep.subr.mxu0 0.0
    %2642 = vmatpush2.xpose.msra.mxu0 0.0
    %2643 = vmatprep.subr.mxu0 0.0
    %2644 = vmatpush2.xpose.msra.mxu0 0.0
    %2645 = vmatprep.subr.mxu0 0.0
    %2646 = vmatpush2.xpose.msra.mxu0 0.0
    %2647 = vmatprep.subr.mxu0 0.0
    %2648 = vmatpush2.xpose.msra.mxu0 0.0
    %2649 = vmatprep.subr.mxu0 0.0
    %2650 = vmatpush2.xpose.msra.mxu0 0.0
    %2651 = vmatprep.subr.mxu0 0.0
    %2652 = vmatpush2.xpose.msra.mxu0 0.0
    %2653 = vmatprep.subr.mxu0 0.0
    %2654 = vmatpush2.xpose.msra.mxu0 0.0
    %2655 = vmatprep.subr.mxu0 0.0
    %2656 = vmatpush2.xpose.msra.mxu0 0.0
    %2657 = vmatprep.subr.mxu0 0.0
    %2658 = vmatpush2.xpose.msra.mxu0 0.0
    %2659 = vmatprep.subr.mxu0 0.0
    %2660 = vmatpush2.xpose.msra.mxu0 0.0
    %2661 = vmatprep.mubr.f32.mxu0 0.0
    %2662 = vmatmul.mubr.f32.gmra.mxu0 %v2590
    %v2663 = vpop.f32.mrf.mxu0
    %v2664 = vadd.f32 0.0, %v2663
    %v2665 = vpop.f32.mrf.mxu0
    %2666 = vmatprep.mubr.f32.mxu0 0.0
    %2667 = vmatmul.mubr.f32.gmra.mxu0 %v2592
    %v2668 = vpop.f32.mrf.mxu0
    %v2669 = vadd.f32 0.0, %v2668
    %v2670 = vpop.f32.mrf.mxu0
    %2671 = vdwg.mxu0
    %v2672 = vlaneseq
    %v2673 = vshrl.u32 %v2672, 7
    %v2674 = vsub.s32 1, %v2673
    %v2675 = vrot.slane %v1855, %v2674
    %vm2676 = vcmp.eq.s32.totalorder %v2675, 1
    %v2677 = vsel %vm2676, -10000.0, %v2664
    %v2678 = vsel %vm2676, -10000.0, %v2669
    %v2679 = vsel %vm248, %v2677, -inf
    %2680 = vmax.xlane.f32.xlu0 %v2679
    %v2681 = vpop.xlane.xlu0 %2680
    %v2682 = vsel %vm248, %v2678, -inf
    %2683 = vmax.xlane.f32.xlu0 %v2682
    %v2684 = vpop.xlane.xlu0 %2683
    %v2685 = vsub.f32 %v2677, %v2681
    %v2686 = vsub.f32 %v2678, %v2684
    %v2687 = vmul.f32 %v2685, 1.442695
    %v2688 = vpow.pop %v2687
    %v2689 = vmul.f32 %v2686, 1.442695
    %v2690 = vpow.pop %v2689
    %v2691 = vsel %vm248, %v2688, 0.0
    %2692 = vadd.xlane.f32.xlu0 %v2691
    %v2693 = vpop.xlane.xlu0 %2692
    %v2694 = vsel %vm248, %v2690, 0.0
    %2695 = vadd.xlane.f32.xlu0 %v2694
    %v2696 = vpop.xlane.xlu0 %2695
    %v2697 = vrcp.pop %v2693
    %v2698 = vrcp.pop %v2696
    %2699 = vrot.lane.b32.xlu0 %v1765, 96
    %v2700 = vpop.permute.xlu0 %2699
    %v2703 = vsel %vm248, %v2688, 0
    %v2706 = vsel %vm248, %v2690, 0
    %2708 = vmatprep.subr.mxu0 0.0
    %2709 = vmatpush1.msra.mxu0 0.0
    %2710 = vmatprep.subr.mxu0 0.0
    %2711 = vmatpush1.msra.mxu0 0.0
    %2712 = vmatprep.subr.mxu0 0.0
    %2713 = vmatpush1.msra.mxu0 0.0
    %2714 = vmatprep.subr.mxu0 0.0
    %2715 = vmatpush1.msra.mxu0 0.0
    %2716 = vmatprep.subr.mxu0 0.0
    %2717 = vmatpush1.msra.mxu0 0.0
    %2718 = vmatprep.subr.mxu0 0.0
    %2719 = vmatpush1.msra.mxu0 0.0
    %2720 = vmatprep.subr.mxu0 0.0
    %2721 = vmatpush1.msra.mxu0 0.0
    %2722 = vmatprep.subr.mxu0 0.0
    %2723 = vmatpush1.msra.mxu0 0.0
    %2724 = vmatprep.subr.mxu0 0.0
    %2725 = vmatpush1.msra.mxu0 0.0
    %2726 = vmatprep.subr.mxu0 0.0
    %2727 = vmatpush1.msra.mxu0 0.0
    %2728 = vmatprep.subr.mxu0 0.0
    %2729 = vmatpush1.msra.mxu0 0.0
    %2730 = vmatprep.subr.mxu0 0.0
    %2731 = vmatpush1.msra.mxu0 0.0
    %2732 = vmatprep.subr.mxu0 0.0
    %2733 = vmatpush1.msra.mxu0 0.0
    %2734 = vmatprep.subr.mxu0 0.0
    %2735 = vmatpush1.msra.mxu0 0.0
    %2736 = vmatprep.subr.mxu0 0.0
    %2737 = vmatpush1.msra.mxu0 0.0
    %2738 = vmatprep.subr.mxu0 0.0
    %2739 = vmatpush1.msra.mxu0 %v2700
    %2740 = vmatprep.subr.mxu0 0.0
    %2741 = vmatpush2.msra.mxu0 0.0
    %2742 = vmatprep.subr.mxu0 0.0
    %2743 = vmatpush2.msra.mxu0 0.0
    %2744 = vmatprep.subr.mxu0 0.0
    %2745 = vmatpush2.msra.mxu0 0.0
    %2746 = vmatprep.subr.mxu0 0.0
    %2747 = vmatpush2.msra.mxu0 0.0
    %2748 = vmatprep.subr.mxu0 0.0
    %2749 = vmatpush2.msra.mxu0 0.0
    %2750 = vmatprep.subr.mxu0 0.0
    %2751 = vmatpush2.msra.mxu0 0.0
    %2752 = vmatprep.subr.mxu0 0.0
    %2753 = vmatpush2.msra.mxu0 0.0
    %2754 = vmatprep.subr.mxu0 0.0
    %2755 = vmatpush2.msra.mxu0 0.0
    %2756 = vmatprep.subr.mxu0 0.0
    %2757 = vmatpush2.msra.mxu0 0.0
    %2758 = vmatprep.subr.mxu0 0.0
    %2759 = vmatpush2.msra.mxu0 0.0
    %2760 = vmatprep.subr.mxu0 0.0
    %2761 = vmatpush2.msra.mxu0 0.0
    %2762 = vmatprep.subr.mxu0 0.0
    %2763 = vmatpush2.msra.mxu0 0.0
    %2764 = vmatprep.subr.mxu0 0.0
    %2765 = vmatpush2.msra.mxu0 0.0
    %2766 = vmatprep.subr.mxu0 0.0
    %2767 = vmatpush2.msra.mxu0 0.0
    %2768 = vmatprep.subr.mxu0 0.0
    %2769 = vmatpush2.msra.mxu0 0.0
    %2770 = vmatprep.subr.mxu0 0.0
    %2771 = vmatpush2.msra.mxu0 0.0
    %2772 = vmatprep.mubr.f32.mxu0 0.0
    %2773 = vmatmul.mubr.f32.gmra.mxu0 %v2703
    %v2774 = vpop.f32.mrf.mxu0
    %v2775 = vadd.f32 0.0, %v2774
    %v2776 = vpop.f32.mrf.mxu0
    %2777 = vmatprep.mubr.f32.mxu0 0.0
    %2778 = vmatmul.mubr.f32.gmra.mxu0 %v2706
    %v2779 = vpop.f32.mrf.mxu0
    %v2780 = vadd.f32 0.0, %v2779
    %v2781 = vpop.f32.mrf.mxu0
    %2782 = vdwg.mxu0
    %v2783 = vmul.f32 %v2775, %v2697
    %v2784 = vmul.f32 %v2780, %v2698
    %2785 = vst.msk [vmem:[#allocation3 + $0x10] sm:$0xff] %vm248, %v2783
    %2786 = vst.msk [vmem:[#allocation3 + $0x18] sm:$0xff] %vm248, %v2784
    %2787 = vrot.lane.b32.xlu0 %v139, 56
    %v2788 = vpop.permute.xlu0 %2787
    %2789 = vrot.lane.b32.xlu0 %v144, 56
    %v2790 = vpop.permute.xlu0 %2789
    %2791 = vrot.lane.b32.xlu0 %v1765, 120
    %v2792 = vpop.permute.xlu0 %2791
    %v2793 = vsel %vm248, %v2788, 0
    %v2795 = vsel %vm248, %v2790, 0
    %v2797 = vsel %vm248, %v2792, 0
    %2799 = vmatprep.subr.mxu0 0.0
    %2800 = vmatpush1.xpose.msra.mxu0 0.0
    %2801 = vmatprep.subr.mxu0 0.0
    %2802 = vmatpush1.xpose.msra.mxu0 0.0
    %2803 = vmatprep.subr.mxu0 0.0
    %2804 = vmatpush1.xpose.msra.mxu0 0.0
    %2805 = vmatprep.subr.mxu0 0.0
    %2806 = vmatpush1.xpose.msra.mxu0 0.0
    %2807 = vmatprep.subr.mxu0 0.0
    %2808 = vmatpush1.xpose.msra.mxu0 0.0
    %2809 = vmatprep.subr.mxu0 0.0
    %2810 = vmatpush1.xpose.msra.mxu0 0.0
    %2811 = vmatprep.subr.mxu0 0.0
    %2812 = vmatpush1.xpose.msra.mxu0 0.0
    %2813 = vmatprep.subr.mxu0 0.0
    %2814 = vmatpush1.xpose.msra.mxu0 0.0
    %2815 = vmatprep.subr.mxu0 0.0
    %2816 = vmatpush1.xpose.msra.mxu0 0.0
    %2817 = vmatprep.subr.mxu0 0.0
    %2818 = vmatpush1.xpose.msra.mxu0 0.0
    %2819 = vmatprep.subr.mxu0 0.0
    %2820 = vmatpush1.xpose.msra.mxu0 0.0
    %2821 = vmatprep.subr.mxu0 0.0
    %2822 = vmatpush1.xpose.msra.mxu0 0.0
    %2823 = vmatprep.subr.mxu0 0.0
    %2824 = vmatpush1.xpose.msra.mxu0 0.0
    %2825 = vmatprep.subr.mxu0 0.0
    %2826 = vmatpush1.xpose.msra.mxu0 0.0
    %2827 = vmatprep.subr.mxu0 0.0
    %2828 = vmatpush1.xpose.msra.mxu0 0.0
    %2829 = vmatprep.subr.mxu0 0.0
    %2830 = vmatpush1.xpose.msra.mxu0 %v2797
    %2831 = vmatprep.subr.mxu0 0.0
    %2832 = vmatpush2.xpose.msra.mxu0 0.0
    %2833 = vmatprep.subr.mxu0 0.0
    %2834 = vmatpush2.xpose.msra.mxu0 0.0
    %2835 = vmatprep.subr.mxu0 0.0
    %2836 = vmatpush2.xpose.msra.mxu0 0.0
    %2837 = vmatprep.subr.mxu0 0.0
    %2838 = vmatpush2.xpose.msra.mxu0 0.0
    %2839 = vmatprep.subr.mxu0 0.0
    %2840 = vmatpush2.xpose.msra.mxu0 0.0
    %2841 = vmatprep.subr.mxu0 0.0
    %2842 = vmatpush2.xpose.msra.mxu0 0.0
    %2843 = vmatprep.subr.mxu0 0.0
    %2844 = vmatpush2.xpose.msra.mxu0 0.0
    %2845 = vmatprep.subr.mxu0 0.0
    %2846 = vmatpush2.xpose.msra.mxu0 0.0
    %2847 = vmatprep.subr.mxu0 0.0
    %2848 = vmatpush2.xpose.msra.mxu0 0.0
    %2849 = vmatprep.subr.mxu0 0.0
    %2850 = vmatpush2.xpose.msra.mxu0 0.0
    %2851 = vmatprep.subr.mxu0 0.0
    %2852 = vmatpush2.xpose.msra.mxu0 0.0
    %2853 = vmatprep.subr.mxu0 0.0
    %2854 = vmatpush2.xpose.msra.mxu0 0.0
    %2855 = vmatprep.subr.mxu0 0.0
    %2856 = vmatpush2.xpose.msra.mxu0 0.0
    %2857 = vmatprep.subr.mxu0 0.0
    %2858 = vmatpush2.xpose.msra.mxu0 0.0
    %2859 = vmatprep.subr.mxu0 0.0
    %2860 = vmatpush2.xpose.msra.mxu0 0.0
    %2861 = vmatprep.subr.mxu0 0.0
    %2862 = vmatpush2.xpose.msra.mxu0 0.0
    %2863 = vmatprep.mubr.f32.mxu0 0.0
    %2864 = vmatmul.mubr.f32.gmra.mxu0 %v2793
    %v2865 = vpop.f32.mrf.mxu0
    %v2866 = vadd.f32 0.0, %v2865
    %v2867 = vpop.f32.mrf.mxu0
    %2868 = vmatprep.mubr.f32.mxu0 0.0
    %2869 = vmatmul.mubr.f32.gmra.mxu0 %v2795
    %v2870 = vpop.f32.mrf.mxu0
    %v2871 = vadd.f32 0.0, %v2870
    %v2872 = vpop.f32.mrf.mxu0
    %2873 = vdwg.mxu0
    %v2874 = vsel %vm2676, -10000.0, %v2866
    %v2875 = vsel %vm2676, -10000.0, %v2871
    %v2876 = vsel %vm248, %v2874, -inf
    %2877 = vmax.xlane.f32.xlu0 %v2876
    %v2878 = vpop.xlane.xlu0 %2877
    %v2879 = vsel %vm248, %v2875, -inf
    %2880 = vmax.xlane.f32.xlu0 %v2879
    %v2881 = vpop.xlane.xlu0 %2880
    %v2882 = vsub.f32 %v2874, %v2878
    %v2883 = vsub.f32 %v2875, %v2881
    %v2884 = vmul.f32 %v2882, 1.442695
    %v2885 = vpow.pop %v2884
    %v2886 = vmul.f32 %v2883, 1.442695
    %v2887 = vpow.pop %v2886
    %v2888 = vsel %vm248, %v2885, 0.0
    %2889 = vadd.xlane.f32.xlu0 %v2888
    %v2890 = vpop.xlane.xlu0 %2889
    %v2891 = vsel %vm248, %v2887, 0.0
    %2892 = vadd.xlane.f32.xlu0 %v2891
    %v2893 = vpop.xlane.xlu0 %2892
    %v2894 = vrcp.pop %v2890
    %v2895 = vrcp.pop %v2893
    %2896 = vrot.lane.b32.xlu0 %v1765, 88
    %v2897 = vpop.permute.xlu0 %2896
    %v2900 = vsel %vm248, %v2885, 0
    %v2903 = vsel %vm248, %v2887, 0
    %2905 = vmatprep.subr.mxu0 0.0
    %2906 = vmatpush1.msra.mxu0 0.0
    %2907 = vmatprep.subr.mxu0 0.0
    %2908 = vmatpush1.msra.mxu0 0.0
    %2909 = vmatprep.subr.mxu0 0.0
    %2910 = vmatpush1.msra.mxu0 0.0
    %2911 = vmatprep.subr.mxu0 0.0
    %2912 = vmatpush1.msra.mxu0 0.0
    %2913 = vmatprep.subr.mxu0 0.0
    %2914 = vmatpush1.msra.mxu0 0.0
    %2915 = vmatprep.subr.mxu0 0.0
    %2916 = vmatpush1.msra.mxu0 0.0
    %2917 = vmatprep.subr.mxu0 0.0
    %2918 = vmatpush1.msra.mxu0 0.0
    %2919 = vmatprep.subr.mxu0 0.0
    %2920 = vmatpush1.msra.mxu0 0.0
    %2921 = vmatprep.subr.mxu0 0.0
    %2922 = vmatpush1.msra.mxu0 0.0
    %2923 = vmatprep.subr.mxu0 0.0
    %2924 = vmatpush1.msra.mxu0 0.0
    %2925 = vmatprep.subr.mxu0 0.0
    %2926 = vmatpush1.msra.mxu0 0.0
    %2927 = vmatprep.subr.mxu0 0.0
    %2928 = vmatpush1.msra.mxu0 0.0
    %2929 = vmatprep.subr.mxu0 0.0
    %2930 = vmatpush1.msra.mxu0 0.0
    %2931 = vmatprep.subr.mxu0 0.0
    %2932 = vmatpush1.msra.mxu0 0.0
    %2933 = vmatprep.subr.mxu0 0.0
    %2934 = vmatpush1.msra.mxu0 0.0
    %2935 = vmatprep.subr.mxu0 0.0
    %2936 = vmatpush1.msra.mxu0 %v2897
    %2937 = vmatprep.subr.mxu0 0.0
    %2938 = vmatpush2.msra.mxu0 0.0
    %2939 = vmatprep.subr.mxu0 0.0
    %2940 = vmatpush2.msra.mxu0 0.0
    %2941 = vmatprep.subr.mxu0 0.0
    %2942 = vmatpush2.msra.mxu0 0.0
    %2943 = vmatprep.subr.mxu0 0.0
    %2944 = vmatpush2.msra.mxu0 0.0
    %2945 = vmatprep.subr.mxu0 0.0
    %2946 = vmatpush2.msra.mxu0 0.0
    %2947 = vmatprep.subr.mxu0 0.0
    %2948 = vmatpush2.msra.mxu0 0.0
    %2949 = vmatprep.subr.mxu0 0.0
    %2950 = vmatpush2.msra.mxu0 0.0
    %2951 = vmatprep.subr.mxu0 0.0
    %2952 = vmatpush2.msra.mxu0 0.0
    %2953 = vmatprep.subr.mxu0 0.0
    %2954 = vmatpush2.msra.mxu0 0.0
    %2955 = vmatprep.subr.mxu0 0.0
    %2956 = vmatpush2.msra.mxu0 0.0
    %2957 = vmatprep.subr.mxu0 0.0
    %2958 = vmatpush2.msra.mxu0 0.0
    %2959 = vmatprep.subr.mxu0 0.0
    %2960 = vmatpush2.msra.mxu0 0.0
    %2961 = vmatprep.subr.mxu0 0.0
    %2962 = vmatpush2.msra.mxu0 0.0
    %2963 = vmatprep.subr.mxu0 0.0
    %2964 = vmatpush2.msra.mxu0 0.0
    %2965 = vmatprep.subr.mxu0 0.0
    %2966 = vmatpush2.msra.mxu0 0.0
    %2967 = vmatprep.subr.mxu0 0.0
    %2968 = vmatpush2.msra.mxu0 0.0
    %2969 = vmatprep.mubr.f32.mxu0 0.0
    %2970 = vmatmul.mubr.f32.gmra.mxu0 %v2900
    %v2971 = vpop.f32.mrf.mxu0
    %v2972 = vadd.f32 0.0, %v2971
    %v2973 = vpop.f32.mrf.mxu0
    %2974 = vmatprep.mubr.f32.mxu0 0.0
    %2975 = vmatmul.mubr.f32.gmra.mxu0 %v2903
    %v2976 = vpop.f32.mrf.mxu0
    %v2977 = vadd.f32 0.0, %v2976
    %v2978 = vpop.f32.mrf.mxu0
    %2979 = vdwg.mxu0
    %v2980 = vmul.f32 %v2972, %v2894
    %v2981 = vmul.f32 %v2977, %v2895
    %2984 = vrot.lane.b32.xlu0 %v2980, 8
    %v2985 = vpop.permute.xlu0 %2984
    %2986 = vrot.lane.b32.xlu0 %v2981, 8
    %v2987 = vpop.permute.xlu0 %2986
    %2990 = vst.msk [vmem:[#allocation3 + $0x10] sm:$0xff] %vm604, %v2985
    %2991 = vst.msk [vmem:[#allocation3 + $0x18] sm:$0xff] %vm604, %v2987
    %2992 = vrot.lane.b32.xlu0 %v139, 48
    %v2993 = vpop.permute.xlu0 %2992
    %2994 = vrot.lane.b32.xlu0 %v144, 48
    %v2995 = vpop.permute.xlu0 %2994
    %2996 = vrot.lane.b32.xlu0 %v1765, 112
    %v2997 = vpop.permute.xlu0 %2996
    %v2998 = vsel %vm248, %v2993, 0
    %v3000 = vsel %vm248, %v2995, 0
    %v3002 = vsel %vm248, %v2997, 0
    %3004 = vmatprep.subr.mxu0 0.0
    %3005 = vmatpush1.xpose.msra.mxu0 0.0
    %3006 = vmatprep.subr.mxu0 0.0
    %3007 = vmatpush1.xpose.msra.mxu0 0.0
    %3008 = vmatprep.subr.mxu0 0.0
    %3009 = vmatpush1.xpose.msra.mxu0 0.0
    %3010 = vmatprep.subr.mxu0 0.0
    %3011 = vmatpush1.xpose.msra.mxu0 0.0
    %3012 = vmatprep.subr.mxu0 0.0
    %3013 = vmatpush1.xpose.msra.mxu0 0.0
    %3014 = vmatprep.subr.mxu0 0.0
    %3015 = vmatpush1.xpose.msra.mxu0 0.0
    %3016 = vmatprep.subr.mxu0 0.0
    %3017 = vmatpush1.xpose.msra.mxu0 0.0
    %3018 = vmatprep.subr.mxu0 0.0
    %3019 = vmatpush1.xpose.msra.mxu0 0.0
    %3020 = vmatprep.subr.mxu0 0.0
    %3021 = vmatpush1.xpose.msra.mxu0 0.0
    %3022 = vmatprep.subr.mxu0 0.0
    %3023 = vmatpush1.xpose.msra.mxu0 0.0
    %3024 = vmatprep.subr.mxu0 0.0
    %3025 = vmatpush1.xpose.msra.mxu0 0.0
    %3026 = vmatprep.subr.mxu0 0.0
    %3027 = vmatpush1.xpose.msra.mxu0 0.0
    %3028 = vmatprep.subr.mxu0 0.0
    %3029 = vmatpush1.xpose.msra.mxu0 0.0
    %3030 = vmatprep.subr.mxu0 0.0
    %3031 = vmatpush1.xpose.msra.mxu0 0.0
    %3032 = vmatprep.subr.mxu0 0.0
    %3033 = vmatpush1.xpose.msra.mxu0 0.0
    %3034 = vmatprep.subr.mxu0 0.0
    %3035 = vmatpush1.xpose.msra.mxu0 %v3002
    %3036 = vmatprep.subr.mxu0 0.0
    %3037 = vmatpush2.xpose.msra.mxu0 0.0
    %3038 = vmatprep.subr.mxu0 0.0
    %3039 = vmatpush2.xpose.msra.mxu0 0.0
    %3040 = vmatprep.subr.mxu0 0.0
    %3041 = vmatpush2.xpose.msra.mxu0 0.0
    %3042 = vmatprep.subr.mxu0 0.0
    %3043 = vmatpush2.xpose.msra.mxu0 0.0
    %3044 = vmatprep.subr.mxu0 0.0
    %3045 = vmatpush2.xpose.msra.mxu0 0.0
    %3046 = vmatprep.subr.mxu0 0.0
    %3047 = vmatpush2.xpose.msra.mxu0 0.0
    %3048 = vmatprep.subr.mxu0 0.0
    %3049 = vmatpush2.xpose.msra.mxu0 0.0
    %3050 = vmatprep.subr.mxu0 0.0
    %3051 = vmatpush2.xpose.msra.mxu0 0.0
    %3052 = vmatprep.subr.mxu0 0.0
    %3053 = vmatpush2.xpose.msra.mxu0 0.0
    %3054 = vmatprep.subr.mxu0 0.0
    %3055 = vmatpush2.xpose.msra.mxu0 0.0
    %3056 = vmatprep.subr.mxu0 0.0
    %3057 = vmatpush2.xpose.msra.mxu0 0.0
    %3058 = vmatprep.subr.mxu0 0.0
    %3059 = vmatpush2.xpose.msra.mxu0 0.0
    %3060 = vmatprep.subr.mxu0 0.0
    %3061 = vmatpush2.xpose.msra.mxu0 0.0
    %3062 = vmatprep.subr.mxu0 0.0
    %3063 = vmatpush2.xpose.msra.mxu0 0.0
    %3064 = vmatprep.subr.mxu0 0.0
    %3065 = vmatpush2.xpose.msra.mxu0 0.0
    %3066 = vmatprep.subr.mxu0 0.0
    %3067 = vmatpush2.xpose.msra.mxu0 0.0
    %3068 = vmatprep.mubr.f32.mxu0 0.0
    %3069 = vmatmul.mubr.f32.gmra.mxu0 %v2998
    %v3070 = vpop.f32.mrf.mxu0
    %v3071 = vadd.f32 0.0, %v3070
    %v3072 = vpop.f32.mrf.mxu0
    %3073 = vmatprep.mubr.f32.mxu0 0.0
    %3074 = vmatmul.mubr.f32.gmra.mxu0 %v3000
    %v3075 = vpop.f32.mrf.mxu0
    %v3076 = vadd.f32 0.0, %v3075
    %v3077 = vpop.f32.mrf.mxu0
    %3078 = vdwg.mxu0
    %v3079 = vsel %vm2676, -10000.0, %v3071
    %v3080 = vsel %vm2676, -10000.0, %v3076
    %v3081 = vsel %vm248, %v3079, -inf
    %3082 = vmax.xlane.f32.xlu0 %v3081
    %v3083 = vpop.xlane.xlu0 %3082
    %v3084 = vsel %vm248, %v3080, -inf
    %3085 = vmax.xlane.f32.xlu0 %v3084
    %v3086 = vpop.xlane.xlu0 %3085
    %v3087 = vsub.f32 %v3079, %v3083
    %v3088 = vsub.f32 %v3080, %v3086
    %v3089 = vmul.f32 %v3087, 1.442695
    %v3090 = vpow.pop %v3089
    %v3091 = vmul.f32 %v3088, 1.442695
    %v3092 = vpow.pop %v3091
    %v3093 = vsel %vm248, %v3090, 0.0
    %3094 = vadd.xlane.f32.xlu0 %v3093
    %v3095 = vpop.xlane.xlu0 %3094
    %v3096 = vsel %vm248, %v3092, 0.0
    %3097 = vadd.xlane.f32.xlu0 %v3096
    %v3098 = vpop.xlane.xlu0 %3097
    %v3099 = vrcp.pop %v3095
    %v3100 = vrcp.pop %v3098
    %3101 = vrot.lane.b32.xlu0 %v1765, 80
    %v3102 = vpop.permute.xlu0 %3101
    %v3105 = vsel %vm248, %v3090, 0
    %v3108 = vsel %vm248, %v3092, 0
    %3110 = vmatprep.subr.mxu0 0.0
    %3111 = vmatpush1.msra.mxu0 0.0
    %3112 = vmatprep.subr.mxu0 0.0
    %3113 = vmatpush1.msra.mxu0 0.0
    %3114 = vmatprep.subr.mxu0 0.0
    %3115 = vmatpush1.msra.mxu0 0.0
    %3116 = vmatprep.subr.mxu0 0.0
    %3117 = vmatpush1.msra.mxu0 0.0
    %3118 = vmatprep.subr.mxu0 0.0
    %3119 = vmatpush1.msra.mxu0 0.0
    %3120 = vmatprep.subr.mxu0 0.0
    %3121 = vmatpush1.msra.mxu0 0.0
    %3122 = vmatprep.subr.mxu0 0.0
    %3123 = vmatpush1.msra.mxu0 0.0
    %3124 = vmatprep.subr.mxu0 0.0
    %3125 = vmatpush1.msra.mxu0 0.0
    %3126 = vmatprep.subr.mxu0 0.0
    %3127 = vmatpush1.msra.mxu0 0.0
    %3128 = vmatprep.subr.mxu0 0.0
    %3129 = vmatpush1.msra.mxu0 0.0
    %3130 = vmatprep.subr.mxu0 0.0
    %3131 = vmatpush1.msra.mxu0 0.0
    %3132 = vmatprep.subr.mxu0 0.0
    %3133 = vmatpush1.msra.mxu0 0.0
    %3134 = vmatprep.subr.mxu0 0.0
    %3135 = vmatpush1.msra.mxu0 0.0
    %3136 = vmatprep.subr.mxu0 0.0
    %3137 = vmatpush1.msra.mxu0 0.0
    %3138 = vmatprep.subr.mxu0 0.0
    %3139 = vmatpush1.msra.mxu0 0.0
    %3140 = vmatprep.subr.mxu0 0.0
    %3141 = vmatpush1.msra.mxu0 %v3102
    %3142 = vmatprep.subr.mxu0 0.0
    %3143 = vmatpush2.msra.mxu0 0.0
    %3144 = vmatprep.subr.mxu0 0.0
    %3145 = vmatpush2.msra.mxu0 0.0
    %3146 = vmatprep.subr.mxu0 0.0
    %3147 = vmatpush2.msra.mxu0 0.0
    %3148 = vmatprep.subr.mxu0 0.0
    %3149 = vmatpush2.msra.mxu0 0.0
    %3150 = vmatprep.subr.mxu0 0.0
    %3151 = vmatpush2.msra.mxu0 0.0
    %3152 = vmatprep.subr.mxu0 0.0
    %3153 = vmatpush2.msra.mxu0 0.0
    %3154 = vmatprep.subr.mxu0 0.0
    %3155 = vmatpush2.msra.mxu0 0.0
    %3156 = vmatprep.subr.mxu0 0.0
    %3157 = vmatpush2.msra.mxu0 0.0
    %3158 = vmatprep.subr.mxu0 0.0
    %3159 = vmatpush2.msra.mxu0 0.0
    %3160 = vmatprep.subr.mxu0 0.0
    %3161 = vmatpush2.msra.mxu0 0.0
    %3162 = vmatprep.subr.mxu0 0.0
    %3163 = vmatpush2.msra.mxu0 0.0
    %3164 = vmatprep.subr.mxu0 0.0
    %3165 = vmatpush2.msra.mxu0 0.0
    %3166 = vmatprep.subr.mxu0 0.0
    %3167 = vmatpush2.msra.mxu0 0.0
    %3168 = vmatprep.subr.mxu0 0.0
    %3169 = vmatpush2.msra.mxu0 0.0
    %3170 = vmatprep.subr.mxu0 0.0
    %3171 = vmatpush2.msra.mxu0 0.0
    %3172 = vmatprep.subr.mxu0 0.0
    %3173 = vmatpush2.msra.mxu0 0.0
    %3174 = vmatprep.mubr.f32.mxu0 0.0
    %3175 = vmatmul.mubr.f32.gmra.mxu0 %v3105
    %v3176 = vpop.f32.mrf.mxu0
    %v3177 = vadd.f32 0.0, %v3176
    %v3178 = vpop.f32.mrf.mxu0
    %3179 = vmatprep.mubr.f32.mxu0 0.0
    %3180 = vmatmul.mubr.f32.gmra.mxu0 %v3108
    %v3181 = vpop.f32.mrf.mxu0
    %v3182 = vadd.f32 0.0, %v3181
    %v3183 = vpop.f32.mrf.mxu0
    %3184 = vdwg.mxu0
    %v3185 = vmul.f32 %v3177, %v3099
    %v3186 = vmul.f32 %v3182, %v3100
    %3189 = vrot.lane.b32.xlu0 %v3185, 16
    %v3190 = vpop.permute.xlu0 %3189
    %3191 = vrot.lane.b32.xlu0 %v3186, 16
    %v3192 = vpop.permute.xlu0 %3191
    %3195 = vst.msk [vmem:[#allocation3 + $0x10] sm:$0xff] %vm783, %v3190
    %3196 = vst.msk [vmem:[#allocation3 + $0x18] sm:$0xff] %vm783, %v3192
    %3197 = vrot.lane.b32.xlu0 %v139, 40
    %v3198 = vpop.permute.xlu0 %3197
    %3199 = vrot.lane.b32.xlu0 %v144, 40
    %v3200 = vpop.permute.xlu0 %3199
    %3201 = vrot.lane.b32.xlu0 %v1765, 104
    %v3202 = vpop.permute.xlu0 %3201
    %v3203 = vsel %vm248, %v3198, 0
    %v3205 = vsel %vm248, %v3200, 0
    %v3207 = vsel %vm248, %v3202, 0
    %3209 = vmatprep.subr.mxu0 0.0
    %3210 = vmatpush1.xpose.msra.mxu0 0.0
    %3211 = vmatprep.subr.mxu0 0.0
    %3212 = vmatpush1.xpose.msra.mxu0 0.0
    %3213 = vmatprep.subr.mxu0 0.0
    %3214 = vmatpush1.xpose.msra.mxu0 0.0
    %3215 = vmatprep.subr.mxu0 0.0
    %3216 = vmatpush1.xpose.msra.mxu0 0.0
    %3217 = vmatprep.subr.mxu0 0.0
    %3218 = vmatpush1.xpose.msra.mxu0 0.0
    %3219 = vmatprep.subr.mxu0 0.0
    %3220 = vmatpush1.xpose.msra.mxu0 0.0
    %3221 = vmatprep.subr.mxu0 0.0
    %3222 = vmatpush1.xpose.msra.mxu0 0.0
    %3223 = vmatprep.subr.mxu0 0.0
    %3224 = vmatpush1.xpose.msra.mxu0 0.0
    %3225 = vmatprep.subr.mxu0 0.0
    %3226 = vmatpush1.xpose.msra.mxu0 0.0
    %3227 = vmatprep.subr.mxu0 0.0
    %3228 = vmatpush1.xpose.msra.mxu0 0.0
    %3229 = vmatprep.subr.mxu0 0.0
    %3230 = vmatpush1.xpose.msra.mxu0 0.0
    %3231 = vmatprep.subr.mxu0 0.0
    %3232 = vmatpush1.xpose.msra.mxu0 0.0
    %3233 = vmatprep.subr.mxu0 0.0
    %3234 = vmatpush1.xpose.msra.mxu0 0.0
    %3235 = vmatprep.subr.mxu0 0.0
    %3236 = vmatpush1.xpose.msra.mxu0 0.0
    %3237 = vmatprep.subr.mxu0 0.0
    %3238 = vmatpush1.xpose.msra.mxu0 0.0
    %3239 = vmatprep.subr.mxu0 0.0
    %3240 = vmatpush1.xpose.msra.mxu0 %v3207
    %3241 = vmatprep.subr.mxu0 0.0
    %3242 = vmatpush2.xpose.msra.mxu0 0.0
    %3243 = vmatprep.subr.mxu0 0.0
    %3244 = vmatpush2.xpose.msra.mxu0 0.0
    %3245 = vmatprep.subr.mxu0 0.0
    %3246 = vmatpush2.xpose.msra.mxu0 0.0
    %3247 = vmatprep.subr.mxu0 0.0
    %3248 = vmatpush2.xpose.msra.mxu0 0.0
    %3249 = vmatprep.subr.mxu0 0.0
    %3250 = vmatpush2.xpose.msra.mxu0 0.0
    %3251 = vmatprep.subr.mxu0 0.0
    %3252 = vmatpush2.xpose.msra.mxu0 0.0
    %3253 = vmatprep.subr.mxu0 0.0
    %3254 = vmatpush2.xpose.msra.mxu0 0.0
    %3255 = vmatprep.subr.mxu0 0.0
    %3256 = vmatpush2.xpose.msra.mxu0 0.0
    %3257 = vmatprep.subr.mxu0 0.0
    %3258 = vmatpush2.xpose.msra.mxu0 0.0
    %3259 = vmatprep.subr.mxu0 0.0
    %3260 = vmatpush2.xpose.msra.mxu0 0.0
    %3261 = vmatprep.subr.mxu0 0.0
    %3262 = vmatpush2.xpose.msra.mxu0 0.0
    %3263 = vmatprep.subr.mxu0 0.0
    %3264 = vmatpush2.xpose.msra.mxu0 0.0
    %3265 = vmatprep.subr.mxu0 0.0
    %3266 = vmatpush2.xpose.msra.mxu0 0.0
    %3267 = vmatprep.subr.mxu0 0.0
    %3268 = vmatpush2.xpose.msra.mxu0 0.0
    %3269 = vmatprep.subr.mxu0 0.0
    %3270 = vmatpush2.xpose.msra.mxu0 0.0
    %3271 = vmatprep.subr.mxu0 0.0
    %3272 = vmatpush2.xpose.msra.mxu0 0.0
    %3273 = vmatprep.mubr.f32.mxu0 0.0
    %3274 = vmatmul.mubr.f32.gmra.mxu0 %v3203
    %v3275 = vpop.f32.mrf.mxu0
    %v3276 = vadd.f32 0.0, %v3275
    %v3277 = vpop.f32.mrf.mxu0
    %3278 = vmatprep.mubr.f32.mxu0 0.0
    %3279 = vmatmul.mubr.f32.gmra.mxu0 %v3205
    %v3280 = vpop.f32.mrf.mxu0
    %v3281 = vadd.f32 0.0, %v3280
    %v3282 = vpop.f32.mrf.mxu0
    %3283 = vdwg.mxu0
    %v3284 = vsel %vm2676, -10000.0, %v3276
    %v3285 = vsel %vm2676, -10000.0, %v3281
    %v3286 = vsel %vm248, %v3284, -inf
    %3287 = vmax.xlane.f32.xlu0 %v3286
    %v3288 = vpop.xlane.xlu0 %3287
    %v3289 = vsel %vm248, %v3285, -inf
    %3290 = vmax.xlane.f32.xlu0 %v3289
    %v3291 = vpop.xlane.xlu0 %3290
    %v3292 = vsub.f32 %v3284, %v3288
    %v3293 = vsub.f32 %v3285, %v3291
    %v3294 = vmul.f32 %v3292, 1.442695
    %v3295 = vpow.pop %v3294
    %v3296 = vmul.f32 %v3293, 1.442695
    %v3297 = vpow.pop %v3296
    %v3298 = vsel %vm248, %v3295, 0.0
    %3299 = vadd.xlane.f32.xlu0 %v3298
    %v3300 = vpop.xlane.xlu0 %3299
    %v3301 = vsel %vm248, %v3297, 0.0
    %3302 = vadd.xlane.f32.xlu0 %v3301
    %v3303 = vpop.xlane.xlu0 %3302
    %v3304 = vrcp.pop %v3300
    %v3305 = vrcp.pop %v3303
    %3306 = vrot.lane.b32.xlu0 %v1765, 72
    %v3307 = vpop.permute.xlu0 %3306
    %v3310 = vsel %vm248, %v3295, 0
    %v3313 = vsel %vm248, %v3297, 0
    %3315 = vmatprep.subr.mxu0 0.0
    %3316 = vmatpush1.msra.mxu0 0.0
    %3317 = vmatprep.subr.mxu0 0.0
    %3318 = vmatpush1.msra.mxu0 0.0
    %3319 = vmatprep.subr.mxu0 0.0
    %3320 = vmatpush1.msra.mxu0 0.0
    %3321 = vmatprep.subr.mxu0 0.0
    %3322 = vmatpush1.msra.mxu0 0.0
    %3323 = vmatprep.subr.mxu0 0.0
    %3324 = vmatpush1.msra.mxu0 0.0
    %3325 = vmatprep.subr.mxu0 0.0
    %3326 = vmatpush1.msra.mxu0 0.0
    %3327 = vmatprep.subr.mxu0 0.0
    %3328 = vmatpush1.msra.mxu0 0.0
    %3329 = vmatprep.subr.mxu0 0.0
    %3330 = vmatpush1.msra.mxu0 0.0
    %3331 = vmatprep.subr.mxu0 0.0
    %3332 = vmatpush1.msra.mxu0 0.0
    %3333 = vmatprep.subr.mxu0 0.0
    %3334 = vmatpush1.msra.mxu0 0.0
    %3335 = vmatprep.subr.mxu0 0.0
    %3336 = vmatpush1.msra.mxu0 0.0
    %3337 = vmatprep.subr.mxu0 0.0
    %3338 = vmatpush1.msra.mxu0 0.0
    %3339 = vmatprep.subr.mxu0 0.0
    %3340 = vmatpush1.msra.mxu0 0.0
    %3341 = vmatprep.subr.mxu0 0.0
    %3342 = vmatpush1.msra.mxu0 0.0
    %3343 = vmatprep.subr.mxu0 0.0
    %3344 = vmatpush1.msra.mxu0 0.0
    %3345 = vmatprep.subr.mxu0 0.0
    %3346 = vmatpush1.msra.mxu0 %v3307
    %3347 = vmatprep.subr.mxu0 0.0
    %3348 = vmatpush2.msra.mxu0 0.0
    %3349 = vmatprep.subr.mxu0 0.0
    %3350 = vmatpush2.msra.mxu0 0.0
    %3351 = vmatprep.subr.mxu0 0.0
    %3352 = vmatpush2.msra.mxu0 0.0
    %3353 = vmatprep.subr.mxu0 0.0
    %3354 = vmatpush2.msra.mxu0 0.0
    %3355 = vmatprep.subr.mxu0 0.0
    %3356 = vmatpush2.msra.mxu0 0.0
    %3357 = vmatprep.subr.mxu0 0.0
    %3358 = vmatpush2.msra.mxu0 0.0
    %3359 = vmatprep.subr.mxu0 0.0
    %3360 = vmatpush2.msra.mxu0 0.0
    %3361 = vmatprep.subr.mxu0 0.0
    %3362 = vmatpush2.msra.mxu0 0.0
    %3363 = vmatprep.subr.mxu0 0.0
    %3364 = vmatpush2.msra.mxu0 0.0
    %3365 = vmatprep.subr.mxu0 0.0
    %3366 = vmatpush2.msra.mxu0 0.0
    %3367 = vmatprep.subr.mxu0 0.0
    %3368 = vmatpush2.msra.mxu0 0.0
    %3369 = vmatprep.subr.mxu0 0.0
    %3370 = vmatpush2.msra.mxu0 0.0
    %3371 = vmatprep.subr.mxu0 0.0
    %3372 = vmatpush2.msra.mxu0 0.0
    %3373 = vmatprep.subr.mxu0 0.0
    %3374 = vmatpush2.msra.mxu0 0.0
    %3375 = vmatprep.subr.mxu0 0.0
    %3376 = vmatpush2.msra.mxu0 0.0
    %3377 = vmatprep.subr.mxu0 0.0
    %3378 = vmatpush2.msra.mxu0 0.0
    %3379 = vmatprep.mubr.f32.mxu0 0.0
    %3380 = vmatmul.mubr.f32.gmra.mxu0 %v3310
    %v3381 = vpop.f32.mrf.mxu0
    %v3382 = vadd.f32 0.0, %v3381
    %v3383 = vpop.f32.mrf.mxu0
    %3384 = vmatprep.mubr.f32.mxu0 0.0
    %3385 = vmatmul.mubr.f32.gmra.mxu0 %v3313
    %v3386 = vpop.f32.mrf.mxu0
    %v3387 = vadd.f32 0.0, %v3386
    %v3388 = vpop.f32.mrf.mxu0
    %3389 = vdwg.mxu0
    %v3390 = vmul.f32 %v3382, %v3304
    %v3391 = vmul.f32 %v3387, %v3305
    %3394 = vrot.lane.b32.xlu0 %v3390, 24
    %v3395 = vpop.permute.xlu0 %3394
    %3396 = vrot.lane.b32.xlu0 %v3391, 24
    %v3397 = vpop.permute.xlu0 %3396
    %3400 = vst.msk [vmem:[#allocation3 + $0x10] sm:$0xff] %vm962, %v3395
    %3401 = vst.msk [vmem:[#allocation3 + $0x18] sm:$0xff] %vm962, %v3397
    %v3402 = vld [vmem:[#allocation3] sm:$0xff]
    %v3403 = vld [vmem:[#allocation3 + $0x8] sm:$0xff]
    %v3404 = vld [vmem:[#allocation3 + $0x10] sm:$0xff]
    %v3405 = vld [vmem:[#allocation3 + $0x18] sm:$0xff]
    %v3406 = vld [vmem:[%s4 + $0x8] sm:$0xff]
    %v3407 = vld [vmem:[%s4 + $0x20] sm:$0xff]
    %v3408 = vld [vmem:[%s4 + $0x38] sm:$0xff]
    %v3409 = vld [vmem:[%s4 + $0x50] sm:$0xff]
    %v3410 = vld [vmem:[%s5 + $0x1] sm:$0x1]
    %v3412 = vlaneseq
    %v3413 = vshrl.u32 %v3412, 7
    %v3414 = vsub.s32 0, %v3413
    %v3415 = vrot.slane %v3410, %v3414
    %3420 = vrot.lane.b32.xlu0 %v3406, 64
    %v3421 = vpop.permute.xlu0 %3420
    %3422 = vrot.lane.b32.xlu0 %v3407, 64
    %v3423 = vpop.permute.xlu0 %3422
    %3424 = vrot.lane.b32.xlu0 %v3408, 64
    %v3425 = vpop.permute.xlu0 %3424
    %3426 = vrot.lane.b32.xlu0 %v3409, 64
    %v3427 = vpop.permute.xlu0 %3426
    %3432 = vrot.lane.b32.xlu0 %v3415, 64
    %v3433 = vpop.permute.xlu0 %3432
    %v3436 = vsel %vm49, %v3402, 0
    %v3439 = vsel %vm49, %v3403, 0
    %v3442 = vsel %vm49, %v3404, 0
    %v3445 = vsel %vm49, %v3405, 0
    %3447 = vmatprep.subr.mxu0 0.0
    %3448 = vmatpush1.msra.mxu0 0.0
    %3449 = vmatprep.subr.mxu0 0.0
    %3450 = vmatpush1.msra.mxu0 0.0
    %3451 = vmatprep.subr.mxu0 0.0
    %3452 = vmatpush1.msra.mxu0 0.0
    %3453 = vmatprep.subr.mxu0 0.0
    %3454 = vmatpush1.msra.mxu0 0.0
    %3455 = vmatprep.subr.mxu0 0.0
    %3456 = vmatpush1.msra.mxu0 0.0
    %3457 = vmatprep.subr.mxu0 0.0
    %3458 = vmatpush1.msra.mxu0 0.0
    %3459 = vmatprep.subr.mxu0 0.0
    %3460 = vmatpush1.msra.mxu0 0.0
    %3461 = vmatprep.subr.mxu0 0.0
    %3462 = vmatpush1.msra.mxu0 0.0
    %3463 = vmatprep.subr.mxu0 0.0
    %3464 = vmatpush1.msra.mxu0 0.0
    %3465 = vmatprep.subr.mxu0 0.0
    %3466 = vmatpush1.msra.mxu0 0.0
    %3467 = vmatprep.subr.mxu0 0.0
    %3468 = vmatpush1.msra.mxu0 0.0
    %3469 = vmatprep.subr.mxu0 0.0
    %3470 = vmatpush1.msra.mxu0 0.0
    %3471 = vmatprep.subr.mxu0 0.0
    %3472 = vmatpush1.msra.mxu0 %v3427
    %3473 = vmatprep.subr.mxu0 0.0
    %3474 = vmatpush1.msra.mxu0 %v3425
    %3475 = vmatprep.subr.mxu0 0.0
    %3476 = vmatpush1.msra.mxu0 %v3423
    %3477 = vmatprep.subr.mxu0 0.0
    %3478 = vmatpush1.msra.mxu0 %v3421
    %3479 = vmatprep.subr.mxu0 0.0
    %3480 = vmatpush2.msra.mxu0 0.0
    %3481 = vmatprep.subr.mxu0 0.0
    %3482 = vmatpush2.msra.mxu0 0.0
    %3483 = vmatprep.subr.mxu0 0.0
    %3484 = vmatpush2.msra.mxu0 0.0
    %3485 = vmatprep.subr.mxu0 0.0
    %3486 = vmatpush2.msra.mxu0 0.0
    %3487 = vmatprep.subr.mxu0 0.0
    %3488 = vmatpush2.msra.mxu0 0.0
    %3489 = vmatprep.subr.mxu0 0.0
    %3490 = vmatpush2.msra.mxu0 0.0
    %3491 = vmatprep.subr.mxu0 0.0
    %3492 = vmatpush2.msra.mxu0 0.0
    %3493 = vmatprep.subr.mxu0 0.0
    %3494 = vmatpush2.msra.mxu0 0.0
    %3495 = vmatprep.subr.mxu0 0.0
    %3496 = vmatpush2.msra.mxu0 0.0
    %3497 = vmatprep.subr.mxu0 0.0
    %3498 = vmatpush2.msra.mxu0 0.0
    %3499 = vmatprep.subr.mxu0 0.0
    %3500 = vmatpush2.msra.mxu0 0.0
    %3501 = vmatprep.subr.mxu0 0.0
    %3502 = vmatpush2.msra.mxu0 0.0
    %3503 = vmatprep.subr.mxu0 0.0
    %3504 = vmatpush2.msra.mxu0 0.0
    %3505 = vmatprep.subr.mxu0 0.0
    %3506 = vmatpush2.msra.mxu0 0.0
    %3507 = vmatprep.subr.mxu0 0.0
    %3508 = vmatpush2.msra.mxu0 0.0
    %3509 = vmatprep.subr.mxu0 0.0
    %3510 = vmatpush2.msra.mxu0 0.0
    %3511 = vmatprep.mubr.f32.mxu0 0.0
    %3512 = vmatmul.mubr.f32.gmra.mxu0 %v3436
    %v3513 = vpop.f32.mrf.mxu0
    %v3514 = vadd.f32 %v3433, %v3513
    %v3515 = vpop.f32.mrf.mxu0
    %3516 = vmatprep.mubr.f32.mxu0 0.0
    %3517 = vmatmul.mubr.f32.gmra.mxu0 %v3439
    %v3518 = vpop.f32.mrf.mxu0
    %v3519 = vadd.f32 %v3433, %v3518
    %v3520 = vpop.f32.mrf.mxu0
    %3521 = vmatprep.mubr.f32.mxu0 0.0
    %3522 = vmatmul.mubr.f32.gmra.mxu0 %v3442
    %v3523 = vpop.f32.mrf.mxu0
    %v3524 = vadd.f32 %v3433, %v3523
    %v3525 = vpop.f32.mrf.mxu0
    %3526 = vmatprep.mubr.f32.mxu0 0.0
    %3527 = vmatmul.mubr.f32.gmra.mxu0 %v3445
    %v3528 = vpop.f32.mrf.mxu0
    %v3529 = vadd.f32 %v3433, %v3528
    %v3530 = vpop.f32.mrf.mxu0
    %3531 = vdwg.mxu0
    %v3532 = vadd.f32 %v1674, %v34
    %v3533 = vadd.f32 %v1675, %v35
    %v3534 = vld [vmem:[%s5 + $0x2] sm:$0x1]
    %v3535 = vsel %vm49, %v3532, 0.0
    %3536 = vadd.xlane.f32.xlu0 %v3535
    %v3537 = vpop.xlane.xlu0 %3536
    %v3538 = vsel %vm49, %v3533, 0.0
    %3539 = vadd.xlane.f32.xlu0 %v3538
    %v3540 = vpop.xlane.xlu0 %3539
    %v3541 = vrcp.pop 32.0
    %v3542 = vmul.f32 %v3537, %v3541
    %v3543 = vmul.f32 %v3540, %v3541
    %v3544 = vsub.f32 %v3532, %v3542
    %v3545 = vsub.f32 %v3533, %v3543
    %v3546 = vmul.f32 %v3544, %v3544
    %v3547 = vmul.f32 %v3545, %v3545
    %v3548 = vsel %vm49, %v3546, 0.0
    %3549 = vadd.xlane.f32.xlu0 %v3548
    %v3550 = vpop.xlane.xlu0 %3549
    %v3551 = vsel %vm49, %v3547, 0.0
    %3552 = vadd.xlane.f32.xlu0 %v3551
    %v3553 = vpop.xlane.xlu0 %3552
    %v3554 = vmul.f32 %v3550, %v3541
    %v3555 = vmul.f32 %v3553, %v3541
    %v3556 = vadd.f32 %v3554, 1e-05
    %v3557 = vadd.f32 %v3555, 1e-05
    %v3558 = vrsqrt.pop %v3556
    %v3559 = vrsqrt.pop %v3557
    %v3560 = vmul.f32 %v3544, %v3558
    %v3561 = vmul.f32 %v3545, %v3559
    %v3563 = vlaneseq
    %v3564 = vshrl.u32 %v3563, 7
    %v3565 = vsub.s32 0, %v3564
    %v3566 = vrot.slane %v3534, %v3565
    %3567 = vrot.lane.b32.xlu0 %v3566, 64
    %v3568 = vpop.permute.xlu0 %3567
    %v3570 = vmul.f32 %v3560, %v3568
    %v3571 = vmul.f32 %v3561, %v3568
    %3572 = vrot.lane.b32.xlu0 %v3566, 32
    %v3573 = vpop.permute.xlu0 %3572
    %v3575 = vadd.f32 %v3570, %v3573
    %v3576 = vadd.f32 %v3571, %v3573
    %v3577 = vadd.f32 %v3514, %v30
    %v3578 = vadd.f32 %v3519, %v31
    %v3579 = vadd.f32 %v3524, %v32
    %v3580 = vadd.f32 %v3529, %v33
    %v3581 = vld [vmem:[%s5 + $0x3] sm:$0x1]
    %v3582 = vsel %vm49, %v3577, 0.0
    %3583 = vadd.xlane.f32.xlu0 %v3582
    %v3584 = vpop.xlane.xlu0 %3583
    %v3585 = vsel %vm49, %v3578, 0.0
    %3586 = vadd.xlane.f32.xlu0 %v3585
    %v3587 = vpop.xlane.xlu0 %3586
    %v3588 = vsel %vm49, %v3579, 0.0
    %3589 = vadd.xlane.f32.xlu0 %v3588
    %v3590 = vpop.xlane.xlu0 %3589
    %v3591 = vsel %vm49, %v3580, 0.0
    %3592 = vadd.xlane.f32.xlu0 %v3591
    %v3593 = vpop.xlane.xlu0 %3592
    %v3594 = vmul.f32 %v3584, %v3541
    %v3595 = vmul.f32 %v3587, %v3541
    %v3596 = vmul.f32 %v3590, %v3541
    %v3597 = vmul.f32 %v3593, %v3541
    %v3598 = vsub.f32 %v3577, %v3594
    %v3599 = vsub.f32 %v3578, %v3595
    %v3600 = vsub.f32 %v3579, %v3596
    %v3601 = vsub.f32 %v3580, %v3597
    %v3602 = vmul.f32 %v3598, %v3598
    %v3603 = vmul.f32 %v3599, %v3599
    %v3604 = vmul.f32 %v3600, %v3600
    %v3605 = vmul.f32 %v3601, %v3601
    %v3606 = vsel %vm49, %v3602, 0.0
    %3607 = vadd.xlane.f32.xlu0 %v3606
    %v3608 = vpop.xlane.xlu0 %3607
    %v3609 = vsel %vm49, %v3603, 0.0
    %3610 = vadd.xlane.f32.xlu0 %v3609
    %v3611 = vpop.xlane.xlu0 %3610
    %v3612 = vsel %vm49, %v3604, 0.0
    %3613 = vadd.xlane.f32.xlu0 %v3612
    %v3614 = vpop.xlane.xlu0 %3613
    %v3615 = vsel %vm49, %v3605, 0.0
    %3616 = vadd.xlane.f32.xlu0 %v3615
    %v3617 = vpop.xlane.xlu0 %3616
    %v3618 = vmul.f32 %v3608, %v3541
    %v3619 = vmul.f32 %v3611, %v3541
    %v3620 = vmul.f32 %v3614, %v3541
    %v3621 = vmul.f32 %v3617, %v3541
    %v3622 = vadd.f32 %v3618, 1e-05
    %v3623 = vadd.f32 %v3619, 1e-05
    %v3624 = vadd.f32 %v3620, 1e-05
    %v3625 = vadd.f32 %v3621, 1e-05
    %v3626 = vrsqrt.pop %v3622
    %v3627 = vrsqrt.pop %v3623
    %v3628 = vrsqrt.pop %v3624
    %v3629 = vrsqrt.pop %v3625
    %v3630 = vmul.f32 %v3598, %v3626
    %v3631 = vmul.f32 %v3599, %v3627
    %v3632 = vmul.f32 %v3600, %v3628
    %v3633 = vmul.f32 %v3601, %v3629
    %v3635 = vlaneseq
    %v3636 = vshrl.u32 %v3635, 7
    %v3637 = vsub.s32 0, %v3636
    %v3638 = vrot.slane %v3581, %v3637
    %v3640 = vmul.f32 %v3630, %v3638
    %v3641 = vmul.f32 %v3631, %v3638
    %v3642 = vmul.f32 %v3632, %v3638
    %v3643 = vmul.f32 %v3633, %v3638
    %3644 = vrot.lane.b32.xlu0 %v3638, 96
    %v3645 = vpop.permute.xlu0 %3644
    %v3647 = vadd.f32 %v3640, %v3645
    %v3648 = vadd.f32 %v3641, %v3645
    %v3649 = vadd.f32 %v3642, %v3645
    %v3650 = vadd.f32 %v3643, %v3645
    %v3651 = vld [vmem:[%s4 + $0x8] sm:$0xff]
    %v3652 = vld [vmem:[%s4 + $0x10] sm:$0xff]
    %v3653 = vld [vmem:[%s4 + $0x20] sm:$0xff]
    %v3654 = vld [vmem:[%s4 + $0x28] sm:$0xff]
    %v3655 = vld [vmem:[%s4 + $0x38] sm:$0xff]
    %v3656 = vld [vmem:[%s4 + $0x40] sm:$0xff]
    %v3657 = vld [vmem:[%s4 + $0x50] sm:$0xff]
    %v3658 = vld [vmem:[%s4 + $0x58] sm:$0xff]
    %v3659 = vld [vmem:[%s5 + $0x1] sm:$0x3]
    %v3661 = vlaneseq
    %v3662 = vshrl.u32 %v3661, 7
    %v3663 = vsub.s32 0, %v3662
    %v3664 = vrot.slane %v3659, %v3663
    %v3665 = vlaneseq
    %v3666 = vshrl.u32 %v3665, 7
    %v3667 = vsub.s32 1, %v3666
    %v3668 = vrot.slane %v3659, %v3667
    %3677 = vrot.lane.b32.xlu0 %v3651, 32
    %v3678 = vpop.permute.xlu0 %3677
    %3679 = vrot.lane.b32.xlu0 %v3652, 32
    %v3680 = vpop.permute.xlu0 %3679
    %3681 = vrot.lane.b32.xlu0 %v3653, 32
    %v3682 = vpop.permute.xlu0 %3681
    %3683 = vrot.lane.b32.xlu0 %v3654, 32
    %v3684 = vpop.permute.xlu0 %3683
    %3685 = vrot.lane.b32.xlu0 %v3655, 32
    %v3686 = vpop.permute.xlu0 %3685
    %3687 = vrot.lane.b32.xlu0 %v3656, 32
    %v3688 = vpop.permute.xlu0 %3687
    %3689 = vrot.lane.b32.xlu0 %v3657, 32
    %v3690 = vpop.permute.xlu0 %3689
    %3691 = vrot.lane.b32.xlu0 %v3658, 32
    %v3692 = vpop.permute.xlu0 %3691
    %v3693 = vsel %vm49, %v3678, %v3680
    %v3694 = vsel %vm49, %v3682, %v3684
    %v3695 = vsel %vm49, %v3686, %v3688
    %v3696 = vsel %vm49, %v3690, %v3692
    %3701 = vrot.lane.b32.xlu0 %v3664, 32
    %v3702 = vpop.permute.xlu0 %3701
    %3703 = vrot.lane.b32.xlu0 %v3668, 32
    %v3704 = vpop.permute.xlu0 %3703
    %v3705 = vsel %vm49, %v3702, %v3704
    %v3708 = vsel %vm49, %v3647, 0
    %v3711 = vsel %vm49, %v3648, 0
    %v3714 = vsel %vm49, %v3649, 0
    %v3717 = vsel %vm49, %v3650, 0
    %3719 = vmatprep.subr.mxu0 0.0
    %3720 = vmatpush1.msra.mxu0 0.0
    %3721 = vmatprep.subr.mxu0 0.0
    %3722 = vmatpush1.msra.mxu0 0.0
    %3723 = vmatprep.subr.mxu0 0.0
    %3724 = vmatpush1.msra.mxu0 0.0
    %3725 = vmatprep.subr.mxu0 0.0
    %3726 = vmatpush1.msra.mxu0 0.0
    %3727 = vmatprep.subr.mxu0 0.0
    %3728 = vmatpush1.msra.mxu0 0.0
    %3729 = vmatprep.subr.mxu0 0.0
    %3730 = vmatpush1.msra.mxu0 0.0
    %3731 = vmatprep.subr.mxu0 0.0
    %3732 = vmatpush1.msra.mxu0 0.0
    %3733 = vmatprep.subr.mxu0 0.0
    %3734 = vmatpush1.msra.mxu0 0.0
    %3735 = vmatprep.subr.mxu0 0.0
    %3736 = vmatpush1.msra.mxu0 0.0
    %3737 = vmatprep.subr.mxu0 0.0
    %3738 = vmatpush1.msra.mxu0 0.0
    %3739 = vmatprep.subr.mxu0 0.0
    %3740 = vmatpush1.msra.mxu0 0.0
    %3741 = vmatprep.subr.mxu0 0.0
    %3742 = vmatpush1.msra.mxu0 0.0
    %3743 = vmatprep.subr.mxu0 0.0
    %3744 = vmatpush1.msra.mxu0 %v3696
    %3745 = vmatprep.subr.mxu0 0.0
    %3746 = vmatpush1.msra.mxu0 %v3695
    %3747 = vmatprep.subr.mxu0 0.0
    %3748 = vmatpush1.msra.mxu0 %v3694
    %3749 = vmatprep.subr.mxu0 0.0
    %3750 = vmatpush1.msra.mxu0 %v3693
    %3751 = vmatprep.subr.mxu0 0.0
    %3752 = vmatpush2.msra.mxu0 0.0
    %3753 = vmatprep.subr.mxu0 0.0
    %3754 = vmatpush2.msra.mxu0 0.0
    %3755 = vmatprep.subr.mxu0 0.0
    %3756 = vmatpush2.msra.mxu0 0.0
    %3757 = vmatprep.subr.mxu0 0.0
    %3758 = vmatpush2.msra.mxu0 0.0
    %3759 = vmatprep.subr.mxu0 0.0
    %3760 = vmatpush2.msra.mxu0 0.0
    %3761 = vmatprep.subr.mxu0 0.0
    %3762 = vmatpush2.msra.mxu0 0.0
    %3763 = vmatprep.subr.mxu0 0.0
    %3764 = vmatpush2.msra.mxu0 0.0
    %3765 = vmatprep.subr.mxu0 0.0
    %3766 = vmatpush2.msra.mxu0 0.0
    %3767 = vmatprep.subr.mxu0 0.0
    %3768 = vmatpush2.msra.mxu0 0.0
    %3769 = vmatprep.subr.mxu0 0.0
    %3770 = vmatpush2.msra.mxu0 0.0
    %3771 = vmatprep.subr.mxu0 0.0
    %3772 = vmatpush2.msra.mxu0 0.0
    %3773 = vmatprep.subr.mxu0 0.0
    %3774 = vmatpush2.msra.mxu0 0.0
    %3775 = vmatprep.subr.mxu0 0.0
    %3776 = vmatpush2.msra.mxu0 0.0
    %3777 = vmatprep.subr.mxu0 0.0
    %3778 = vmatpush2.msra.mxu0 0.0
    %3779 = vmatprep.subr.mxu0 0.0
    %3780 = vmatpush2.msra.mxu0 0.0
    %3781 = vmatprep.subr.mxu0 0.0
    %3782 = vmatpush2.msra.mxu0 0.0
    %3783 = vmatprep.mubr.f32.mxu0 0.0
    %3784 = vmatmul.mubr.f32.gmra.mxu0 %v3708
    %v3785 = vpop.f32.mrf.mxu0
    %v3786 = vadd.f32 %v3705, %v3785
    %v3787 = vpop.f32.mrf.mxu0
    %3788 = vmatprep.mubr.f32.mxu0 0.0
    %3789 = vmatmul.mubr.f32.gmra.mxu0 %v3711
    %v3790 = vpop.f32.mrf.mxu0
    %v3791 = vadd.f32 %v3705, %v3790
    %v3792 = vpop.f32.mrf.mxu0
    %3793 = vmatprep.mubr.f32.mxu0 0.0
    %3794 = vmatmul.mubr.f32.gmra.mxu0 %v3714
    %v3795 = vpop.f32.mrf.mxu0
    %v3796 = vadd.f32 %v3705, %v3795
    %v3797 = vpop.f32.mrf.mxu0
    %3798 = vmatprep.mubr.f32.mxu0 0.0
    %3799 = vmatmul.mubr.f32.gmra.mxu0 %v3717
    %v3800 = vpop.f32.mrf.mxu0
    %v3801 = vadd.f32 %v3705, %v3800
    %v3802 = vpop.f32.mrf.mxu0
    %3803 = vdwg.mxu0
    %v3804 = vmax.f32 %v3786, 0.0
    %v3805 = vmax.f32 %v3791, 0.0
    %v3806 = vmax.f32 %v3796, 0.0
    %v3807 = vmax.f32 %v3801, 0.0
    %v3808 = vld [vmem:[%s6] sm:$0xff]
    %v3809 = vld [vmem:[%s6 + $0x8] sm:$0xff]
    %v3810 = vld [vmem:[%s6 + $0x10] sm:$0xff]
    %v3811 = vld [vmem:[%s6 + $0x18] sm:$0xff]
    %v3812 = vld [vmem:[%s6 + $0x20] sm:$0xff]
    %v3813 = vld [vmem:[%s6 + $0x28] sm:$0xff]
    %v3814 = vld [vmem:[%s6 + $0x30] sm:$0xff]
    %v3815 = vld [vmem:[%s6 + $0x38] sm:$0xff]
    %3816 = vrot.lane.b32.xlu0 %v3566, 96
    %v3817 = vpop.permute.xlu0 %3816
    %vm3819 = vcmask 523264
    %v3821 = vsel %vm3819, %v3804, 0
    %v3824 = vsel %vm3819, %v3805, 0
    %v3827 = vsel %vm3819, %v3806, 0
    %v3830 = vsel %vm3819, %v3807, 0
    %3832 = vmatprep.subr.mxu0 0.0
    %3833 = vmatpush1.msra.mxu0 0.0
    %3834 = vmatprep.subr.mxu0 0.0
    %3835 = vmatpush1.msra.mxu0 0.0
    %3836 = vmatprep.subr.mxu0 0.0
    %3837 = vmatpush1.msra.mxu0 0.0
    %3838 = vmatprep.subr.mxu0 0.0
    %3839 = vmatpush1.msra.mxu0 0.0
    %3840 = vmatprep.subr.mxu0 0.0
    %3841 = vmatpush1.msra.mxu0 0.0
    %3842 = vmatprep.subr.mxu0 0.0
    %3843 = vmatpush1.msra.mxu0 0.0
    %3844 = vmatprep.subr.mxu0 0.0
    %3845 = vmatpush1.msra.mxu0 0.0
    %3846 = vmatprep.subr.mxu0 0.0
    %3847 = vmatpush1.msra.mxu0 0.0
    %3848 = vmatprep.subr.mxu0 0.0
    %3849 = vmatpush1.msra.mxu0 %v3815
    %3850 = vmatprep.subr.mxu0 0.0
    %3851 = vmatpush1.msra.mxu0 %v3814
    %3852 = vmatprep.subr.mxu0 0.0
    %3853 = vmatpush1.msra.mxu0 %v3813
    %3854 = vmatprep.subr.mxu0 0.0
    %3855 = vmatpush1.msra.mxu0 %v3812
    %3856 = vmatprep.subr.mxu0 0.0
    %3857 = vmatpush1.msra.mxu0 %v3811
    %3858 = vmatprep.subr.mxu0 0.0
    %3859 = vmatpush1.msra.mxu0 %v3810
    %3860 = vmatprep.subr.mxu0 0.0
    %3861 = vmatpush1.msra.mxu0 %v3809
    %3862 = vmatprep.subr.mxu0 0.0
    %3863 = vmatpush1.msra.mxu0 %v3808
    %3864 = vmatprep.subr.mxu0 0.0
    %3865 = vmatpush2.msra.mxu0 0.0
    %3866 = vmatprep.subr.mxu0 0.0
    %3867 = vmatpush2.msra.mxu0 0.0
    %3868 = vmatprep.subr.mxu0 0.0
    %3869 = vmatpush2.msra.mxu0 0.0
    %3870 = vmatprep.subr.mxu0 0.0
    %3871 = vmatpush2.msra.mxu0 0.0
    %3872 = vmatprep.subr.mxu0 0.0
    %3873 = vmatpush2.msra.mxu0 0.0
    %3874 = vmatprep.subr.mxu0 0.0
    %3875 = vmatpush2.msra.mxu0 0.0
    %3876 = vmatprep.subr.mxu0 0.0
    %3877 = vmatpush2.msra.mxu0 0.0
    %3878 = vmatprep.subr.mxu0 0.0
    %3879 = vmatpush2.msra.mxu0 0.0
    %3880 = vmatprep.subr.mxu0 0.0
    %3881 = vmatpush2.msra.mxu0 0.0
    %3882 = vmatprep.subr.mxu0 0.0
    %3883 = vmatpush2.msra.mxu0 0.0
    %3884 = vmatprep.subr.mxu0 0.0
    %3885 = vmatpush2.msra.mxu0 0.0
    %3886 = vmatprep.subr.mxu0 0.0
    %3887 = vmatpush2.msra.mxu0 0.0
    %3888 = vmatprep.subr.mxu0 0.0
    %3889 = vmatpush2.msra.mxu0 0.0
    %3890 = vmatprep.subr.mxu0 0.0
    %3891 = vmatpush2.msra.mxu0 0.0
    %3892 = vmatprep.subr.mxu0 0.0
    %3893 = vmatpush2.msra.mxu0 0.0
    %3894 = vmatprep.subr.mxu0 0.0
    %3895 = vmatpush2.msra.mxu0 0.0
    %3896 = vmatprep.mubr.f32.mxu0 0.0
    %3897 = vmatmul.mubr.f32.gmra.mxu0 %v3821
    %v3898 = vpop.f32.mrf.mxu0
    %v3899 = vadd.f32 %v3817, %v3898
    %v3900 = vpop.f32.mrf.mxu0
    %3901 = vmatprep.mubr.f32.mxu0 0.0
    %3902 = vmatmul.mubr.f32.gmra.mxu0 %v3824
    %v3903 = vpop.f32.mrf.mxu0
    %v3904 = vadd.f32 %v3817, %v3903
    %v3905 = vpop.f32.mrf.mxu0
    %3906 = vmatprep.mubr.f32.mxu0 0.0
    %3907 = vmatmul.mubr.f32.gmra.mxu0 %v3827
    %v3908 = vpop.f32.mrf.mxu0
    %v3909 = vadd.f32 %v3817, %v3908
    %v3910 = vpop.f32.mrf.mxu0
    %3911 = vmatprep.mubr.f32.mxu0 0.0
    %3912 = vmatmul.mubr.f32.gmra.mxu0 %v3830
    %v3913 = vpop.f32.mrf.mxu0
    %v3914 = vadd.f32 %v3817, %v3913
    %v3915 = vpop.f32.mrf.mxu0
    %3916 = vdwg.mxu0
    %v3917 = vadd.f32 %v3899, %v3647
    %v3918 = vadd.f32 %v3904, %v3648
    %v3919 = vadd.f32 %v3909, %v3649
    %v3920 = vadd.f32 %v3914, %v3650
    %v3921 = vsel %vm49, %v3917, 0.0
    %3922 = vadd.xlane.f32.xlu0 %v3921
    %v3923 = vpop.xlane.xlu0 %3922
    %v3924 = vsel %vm49, %v3918, 0.0
    %3925 = vadd.xlane.f32.xlu0 %v3924
    %v3926 = vpop.xlane.xlu0 %3925
    %v3927 = vsel %vm49, %v3919, 0.0
    %3928 = vadd.xlane.f32.xlu0 %v3927
    %v3929 = vpop.xlane.xlu0 %3928
    %v3930 = vsel %vm49, %v3920, 0.0
    %3931 = vadd.xlane.f32.xlu0 %v3930
    %v3932 = vpop.xlane.xlu0 %3931
    %v3933 = vmul.f32 %v3923, %v3541
    %v3934 = vmul.f32 %v3926, %v3541
    %v3935 = vmul.f32 %v3929, %v3541
    %v3936 = vmul.f32 %v3932, %v3541
    %v3937 = vsub.f32 %v3917, %v3933
    %v3938 = vsub.f32 %v3918, %v3934
    %v3939 = vsub.f32 %v3919, %v3935
    %v3940 = vsub.f32 %v3920, %v3936
    %v3941 = vmul.f32 %v3937, %v3937
    %v3942 = vmul.f32 %v3938, %v3938
    %v3943 = vmul.f32 %v3939, %v3939
    %v3944 = vmul.f32 %v3940, %v3940
    %v3945 = vsel %vm49, %v3941, 0.0
    %3946 = vadd.xlane.f32.xlu0 %v3945
    %v3947 = vpop.xlane.xlu0 %3946
    %v3948 = vsel %vm49, %v3942, 0.0
    %3949 = vadd.xlane.f32.xlu0 %v3948
    %v3950 = vpop.xlane.xlu0 %3949
    %v3951 = vsel %vm49, %v3943, 0.0
    %3952 = vadd.xlane.f32.xlu0 %v3951
    %v3953 = vpop.xlane.xlu0 %3952
    %v3954 = vsel %vm49, %v3944, 0.0
    %3955 = vadd.xlane.f32.xlu0 %v3954
    %v3956 = vpop.xlane.xlu0 %3955
    %v3957 = vmul.f32 %v3947, %v3541
    %v3958 = vmul.f32 %v3950, %v3541
    %v3959 = vmul.f32 %v3953, %v3541
    %v3960 = vmul.f32 %v3956, %v3541
    %v3961 = vadd.f32 %v3957, 1e-05
    %v3962 = vadd.f32 %v3958, 1e-05
    %v3963 = vadd.f32 %v3959, 1e-05
    %v3964 = vadd.f32 %v3960, 1e-05
    %v3965 = vrsqrt.pop %v3961
    %v3966 = vrsqrt.pop %v3962
    %v3967 = vrsqrt.pop %v3963
    %v3968 = vrsqrt.pop %v3964
    %v3969 = vmul.f32 %v3937, %v3965
    %v3970 = vmul.f32 %v3938, %v3966
    %v3971 = vmul.f32 %v3939, %v3967
    %v3972 = vmul.f32 %v3940, %v3968
    %3973 = vrot.lane.b32.xlu0 %v3638, 64
    %v3974 = vpop.permute.xlu0 %3973
    %v3976 = vmul.f32 %v3969, %v3974
    %v3977 = vmul.f32 %v3970, %v3974
    %v3978 = vmul.f32 %v3971, %v3974
    %v3979 = vmul.f32 %v3972, %v3974
    %3980 = vrot.lane.b32.xlu0 %v3638, 32
    %v3981 = vpop.permute.xlu0 %3980
    %v3983 = vadd.f32 %v3976, %v3981
    %v3984 = vadd.f32 %v3977, %v3981
    %v3985 = vadd.f32 %v3978, %v3981
    %v3986 = vadd.f32 %v3979, %v3981
    %3987 = vst.msk [vmem:[#allocation4] sm:$0xff] %vm49, %v3983
    %3988 = vst.msk [vmem:[#allocation4 + $0x8] sm:$0xff] %vm49, %v3984
    %3989 = vst.msk [vmem:[#allocation4 + $0x10] sm:$0xff] %vm49, %v3985
    %3990 = vst.msk [vmem:[#allocation4 + $0x18] sm:$0xff] %vm49, %v3986
    %3991 = vst.msk [vmem:[#allocation6] sm:$0xff] %vm49, %v3575
    %3992 = vst.msk [vmem:[#allocation6 + $0x8] sm:$0xff] %vm49, %v3576
    // Predicated region
    $region30: #{luna_encoder_layer.1} parent=1 // pred_check
      _
    $region31: #{luna_encoder_layer.1} parent=1 // pred_check_branch
      %3994 = sbr.rel (0) target = $region33
    $region32: #{luna_encoder_layer.1} parent=1 // pred_region
      %s3996 = ssub.s32 512, 512
      %3997 = vsyncadd [#allocation5], %s3996
      %s3998 = sshll.u32 [#allocation4], 4
      %s3999 = int_to_ptr.vmem [resolvable:$true] %s3998
      %4004 = dma.vmem_to_hbm [thread:$0]  %s3999, 512, %s7, [#allocation5], 128, 128, 8
    $region33: #{luna_encoder_layer.1} parent=1 // pred_fallthru
      _
    // Predicated region
    $region34: #{luna_encoder_layer.1} parent=1 // pred_check
      _
    $region35: #{luna_encoder_layer.1} parent=1 // pred_check_branch
      %4006 = sbr.rel (0) target = $region37
    $region36: #{luna_encoder_layer.1} parent=1 // pred_region
      %s4008 = ssub.s32 256, 256
      %4009 = vsyncadd [#allocation7], %s4008
      %s4010 = sshll.u32 [#allocation6], 4
      %s4011 = int_to_ptr.vmem [resolvable:$true] %s4010
      %4016 = dma.vmem_to_hbm [thread:$0]  %s4011, 256, %s8, [#allocation7], 128, 128, 8
    $region37: #{luna_encoder_layer.1} parent=1 // pred_fallthru
      _
    // Predicated region
    $region38: #{luna_encoder_layer.1} parent=1 // pred_check
      _
    $region39: #{luna_encoder_layer.1} parent=1 // pred_check_branch
      %4018 = sbr.rel (0) target = $region41
    $region40: #{luna_encoder_layer.1} parent=1 // pred_region
      %4019 = dma.done [#allocation5], 512
    $region41: #{luna_encoder_layer.1} parent=1 // pred_fallthru
      _
    // Predicated region
    $region42: #{luna_encoder_layer.1} parent=1 // pred_check
      _
    $region43: #{luna_encoder_layer.1} parent=1 // pred_check_branch
      %4021 = sbr.rel (0) target = $region45
    $region44: #{luna_encoder_layer.1} parent=1 // pred_region
      %4022 = dma.done [#allocation7], 256
    $region45: #{luna_encoder_layer.1} parent=1 // pred_fallthru
      _
    %4023 = vsyncpa [#allocation5], 1
    %4024 = vsyncpa [#allocation7], 1

</llo_original>
